<compile_context>
chip_gen: v6e
topology: v6e:2x2x1
jax: 0.10.0
libtpu: 0.0.40
codegen_flags: <defaults>
</compile_context>

<pallas_src>
import jax
import jax.numpy as jnp
from jax import lax
from jax.experimental import pallas as pl
from jax.experimental.pallas import tpu as pltpu

_BOX_LANES = 512     # 128 boxes * 4 interleaved components per lane row
_OUT_LANES = 128     # boxes per lane row after compaction
_GB_TARGET = 512     # rows per grid step (~2.25 MiB HBM traffic per step, f32)


def _shift_lanes_left(x, k):
    """y[:, l] = x[:, l + k] (last k lanes wrap; those lanes are never consumed)."""
    return jnp.concatenate([x[:, k:], x[:, :k]], axis=1)


def _giou_kernel(a_ref, b_ref, o_ref):
    f32 = jnp.float32
    a = a_ref[...].astype(f32)          # (gb, 512): [x1 y1 x2 y2] * 128 per row
    b = b_ref[...].astype(f32)
    a2 = _shift_lanes_left(a, 2)        # x2/y2 of the same box on the x1/y1 lanes
    b2 = _shift_lanes_left(b, 2)

    # At lanes 4k / 4k+1 these hold per-box width / height terms.
    lo = jnp.maximum(a, b)                           # max(x1a,x1b), max(y1a,y1b)
    hi = jnp.minimum(a2, b2)                         # min(x2a,x2b), min(y2a,y2b)
    i_dim = jnp.maximum(hi - lo, 0.0)                # intersection w/h (clamped)
    d_a = jnp.maximum(a2 - a, 0.0)                   # boxes_1 w/h (clamped)
    d_b = jnp.maximum(b2 - b, 0.0)                   # boxes_2 w/h (clamped)
    e_dim = jnp.maximum(a2, b2) - jnp.minimum(a, b)  # enclosure w/h (no clamp)

    # width * height lands at lanes 4k after multiplying by the lane+1 shift.
    i_area = i_dim * _shift_lanes_left(i_dim, 1)
    area_a = d_a * _shift_lanes_left(d_a, 1)
    area_b = d_b * _shift_lanes_left(d_b, 1)
    enc = e_dim * _shift_lanes_left(e_dim, 1)
    union = area_a + area_b - i_area

    # Compact lanes 4k -> k with a one-hot matmul on the otherwise idle MXU.
    rows = lax.broadcasted_iota(jnp.int32, (_BOX_LANES, _OUT_LANES), 0)
    cols = lax.broadcasted_iota(jnp.int32, (_BOX_LANES, _OUT_LANES), 1)
    sel = (rows == 4 * cols).astype(f32)
    compact = lambda x: jnp.dot(x, sel, preferred_element_type=f32,
                                precision=lax.Precision.HIGHEST)
    i_area_c = compact(i_area)          # (gb, 128) dense, one value per box
    union_c = compact(union)
    enc_c = compact(enc)

    # IoU = I/union where union > 0 else 0 (matches the torch masked assignment).
    pos = union_c > 0.0
    safe_u = jnp.where(pos, union_c, 1.0)
    r_u = pl.reciprocal(safe_u, approx=True)   # EUP; 2 Newton steps -> ~f32 exact
    r_u = r_u * (2.0 - safe_u * r_u)
    r_u = r_u * (2.0 - safe_u * r_u)
    iou = jnp.where(pos, i_area_c * r_u, 0.0)

    # loss = 1 - GIoU = 2 - IoU - union/enclosure.  enc == 0 gives NaN/Inf,
    # mirroring the torch reference's own divide-by-zero for degenerate boxes.
    r_e = pl.reciprocal(enc_c, approx=True)
    r_e = r_e * (2.0 - enc_c * r_e)
    r_e = r_e * (2.0 - enc_c * r_e)

    o_ref[...] = (2.0 - iou - union_c * r_e).astype(o_ref.dtype)


def giou_loss(boxes_1: jax.Array, boxes_2: jax.Array) -> jax.Array:
    """GIoU loss.  boxes_*: (B, n, 4) [x1, y1, x2, y2] -> (B, n)."""
    assert boxes_1.shape == boxes_2.shape and boxes_1.shape[-1] == 4
    assert boxes_1.dtype == boxes_2.dtype
    dt = boxes_1.dtype
    assert dt in (jnp.float32, jnp.bfloat16), f"unsupported dtype {dt}"
    B, n, _ = boxes_1.shape

    # TODO(synk): when n % 128 != 0 we fall back to an edge-pad copy; fuse that
    # pad into whatever upstream op produces the boxes to keep the zero-copy path.
    n_pad = -(-n // _OUT_LANES) * _OUT_LANES
    if n_pad != n:
        pad = ((0, 0), (0, n_pad - n), (0, 0))
        boxes_1 = jnp.pad(boxes_1, pad, mode="edge")
        boxes_2 = jnp.pad(boxes_2, pad, mode="edge")

    R = B * (n_pad // _OUT_LANES)            # number of 128-box rows
    a = boxes_1.reshape(R, _BOX_LANES)       # free reshape: lanes stay interleaved
    b = boxes_2.reshape(R, _BOX_LANES)

    # Rows per grid step: large enough to amortize per-step overhead, small
    # enough that double-buffered input blocks + f32 intermediates stay well
    # inside the 32 MiB scoped VMEM limit (valid on v5e/v6e/v7x).  Use >= 2
    # blocks for non-tiny inputs so both v7x TensorCores are busy.
    if R <= _GB_TARGET:
        gb = R if R < 16 else (((R + 1) // 2 + 7) // 8) * 8
    else:
        gb = _GB_TARGET
    grid = (pl.cdiv(R, gb),)

    itemsize = jnp.dtype(dt).itemsize
    boxes_total = R * _OUT_LANES
    cost = pl.CostEstimate(
        flops=(104 + 6 * _BOX_LANES) * boxes_total,   # elementwise + MXU compaction
        transcendentals=2 * boxes_total,              # two reciprocals per box
        bytes_accessed=9 * boxes_total * itemsize,    # 8 reads + 1 write per box
    )

    out = pl.pallas_call(
        _giou_kernel,
        out_shape=jax.ShapeDtypeStruct((R, _OUT_LANES), dt),
        grid=grid,
        in_specs=[
            pl.BlockSpec((gb, _BOX_LANES), lambda i: (i, 0)),
            pl.BlockSpec((gb, _BOX_LANES), lambda i: (i, 0)),
        ],
        out_specs=pl.BlockSpec((gb, _OUT_LANES), lambda i: (i, 0)),
        compiler_params=pltpu.CompilerParams(
            dimension_semantics=("parallel",),
            vmem_limit_bytes=32 * 1024 * 1024,
        ),
        cost_estimate=cost,
    )(a, b)

    out = out.reshape(B, n_pad)
    return out[:, :n] if n_pad != n else out


def _giou_ref(boxes_1, boxes_2):
    """Pure-JAX reference mirroring the torch module (exact divides, f32)."""
    b1 = boxes_1.astype(jnp.float32)
    b2 = boxes_2.astype(jnp.float32)
    x1a, y1a, x2a, y2a = (b1[..., i] for i in range(4))
    x1b, y1b, x2b, y2b = (b2[..., i] for i in range(4))
    i_w = jnp.maximum(0.0, jnp.minimum(x2a, x2b) - jnp.maximum(x1a, x1b))
    i_h = jnp.maximum(0.0, jnp.minimum(y2a, y2b) - jnp.maximum(y1a, y1b))
    i_area = i_w * i_h
    area_1 = jnp.maximum(0.0, x2a - x1a) * jnp.maximum(0.0, y2a - y1a)
    area_2 = jnp.maximum(0.0, x2b - x1b) * jnp.maximum(0.0, y2b - y1b)
    union = area_1 + area_2 - i_area
    iou = jnp.where(union > 0, i_area / jnp.where(union > 0, union, 1.0), 0.0)
    enc_w = jnp.maximum(x2a, x2b) - jnp.minimum(x1a, x1b)
    enc_h = jnp.maximum(y2a, y2b) - jnp.minimum(y1a, y1b)
    enc_area = enc_w * enc_h
    return 1.0 - (iou - (enc_area - union) / enc_area)


if __name__ == "__main__":
    B, n = 2, 512
    key = jax.random.PRNGKey(0)
    k1, k2, k3, k4 = jax.random.split(key, 4)

    def make_boxes(ka, kb):
        xy = jax.random.uniform(ka, (B, n, 2), minval=0.0, maxval=10.0)
        wh = jax.random.uniform(kb, (B, n, 2), minval=0.5, maxval=5.0)
        return jnp.concatenate([xy, xy + wh], axis=-1).astype(jnp.float32)

    boxes_1 = make_boxes(k1, k2)
    boxes_2 = make_boxes(k3, k4)

    loss = giou_loss(boxes_1, boxes_2)
    jax.block_until_ready(loss)

    ref = _giou_ref(boxes_1, boxes_2)
    assert loss.shape == (B, n)
    max_err = float(jnp.max(jnp.abs(loss - ref)))
    # HIGHEST-precision one-hot compaction keeps the error ~1e-6; the tolerance
    # only guards against platform matmul-precision policy differences.
    assert jnp.allclose(loss, ref, atol=5e-3, rtol=5e-3), max_err
    print("KERNEL_OK")
</pallas_src>

<mosaic_0001>
module attributes {stable_mosaic.version = 11 : i64} {
  func.func @_giou_kernel(%arg0: i32, %arg1: memref<8x512xf32, #tpu.memory_space<vmem>>, %arg2: memref<8x512xf32, #tpu.memory_space<vmem>>, %arg3: memref<8x128xf32, #tpu.memory_space<vmem>>) attributes {dimension_semantics = [#tpu.dimension_semantics<parallel>], iteration_bounds = array<i64: 1>, scalar_prefetch = 0 : i64, scratch_operands = 0 : i64, tpu.core_type = #tpu.core_type<tc>, window_params = [{transform_indices = @transform_0, window_bounds = array<i64: 8, 512>}, {transform_indices = @transform_1, window_bounds = array<i64: 8, 512>}, {transform_indices = @transform_2, window_bounds = array<i64: 8, 128>}]} {
    %c0 = arith.constant 0 : index
    %c0_0 = arith.constant 0 : index
    %0 = vector.load %arg1[%c0, %c0_0] : memref<8x512xf32, #tpu.memory_space<vmem>>, vector<8x512xf32>
    %c0_1 = arith.constant 0 : index
    %c0_2 = arith.constant 0 : index
    %1 = vector.load %arg2[%c0_1, %c0_2] : memref<8x512xf32, #tpu.memory_space<vmem>>, vector<8x512xf32>
    %2 = vector.extract_strided_slice %0 {offsets = [0, 2], sizes = [8, 510], strides = [1, 1]} : vector<8x512xf32> to vector<8x510xf32>
    %3 = vector.extract_strided_slice %0 {offsets = [0, 0], sizes = [8, 2], strides = [1, 1]} : vector<8x512xf32> to vector<8x2xf32>
    %4 = tpu.concatenate %2, %3 in 1 : vector<8x510xf32>, vector<8x2xf32> -> vector<8x512xf32>
    %5 = vector.extract_strided_slice %1 {offsets = [0, 2], sizes = [8, 510], strides = [1, 1]} : vector<8x512xf32> to vector<8x510xf32>
    %6 = vector.extract_strided_slice %1 {offsets = [0, 0], sizes = [8, 2], strides = [1, 1]} : vector<8x512xf32> to vector<8x2xf32>
    %7 = tpu.concatenate %5, %6 in 1 : vector<8x510xf32>, vector<8x2xf32> -> vector<8x512xf32>
    %8 = arith.maximumf %0, %1 : vector<8x512xf32>
    %9 = arith.minimumf %4, %7 : vector<8x512xf32>
    %10 = arith.subf %9, %8 : vector<8x512xf32>
    %cst = arith.constant 0.000000e+00 : f32
    %11 = vector.broadcast %cst : f32 to vector<8x512xf32>
    %12 = arith.maximumf %10, %11 : vector<8x512xf32>
    %13 = arith.subf %4, %0 : vector<8x512xf32>
    %cst_3 = arith.constant 0.000000e+00 : f32
    %14 = vector.broadcast %cst_3 : f32 to vector<8x512xf32>
    %15 = arith.maximumf %13, %14 : vector<8x512xf32>
    %16 = arith.subf %7, %1 : vector<8x512xf32>
    %cst_4 = arith.constant 0.000000e+00 : f32
    %17 = vector.broadcast %cst_4 : f32 to vector<8x512xf32>
    %18 = arith.maximumf %16, %17 : vector<8x512xf32>
    %19 = arith.maximumf %4, %7 : vector<8x512xf32>
    %20 = arith.minimumf %0, %1 : vector<8x512xf32>
    %21 = arith.subf %19, %20 : vector<8x512xf32>
    %22 = vector.extract_strided_slice %12 {offsets = [0, 1], sizes = [8, 511], strides = [1, 1]} : vector<8x512xf32> to vector<8x511xf32>
    %23 = vector.extract_strided_slice %12 {offsets = [0, 0], sizes = [8, 1], strides = [1, 1]} : vector<8x512xf32> to vector<8x1xf32>
    %24 = tpu.concatenate %22, %23 in 1 : vector<8x511xf32>, vector<8x1xf32> -> vector<8x512xf32>
    %25 = arith.mulf %12, %24 : vector<8x512xf32>
    %26 = vector.extract_strided_slice %15 {offsets = [0, 1], sizes = [8, 511], strides = [1, 1]} : vector<8x512xf32> to vector<8x511xf32>
    %27 = vector.extract_strided_slice %15 {offsets = [0, 0], sizes = [8, 1], strides = [1, 1]} : vector<8x512xf32> to vector<8x1xf32>
    %28 = tpu.concatenate %26, %27 in 1 : vector<8x511xf32>, vector<8x1xf32> -> vector<8x512xf32>
    %29 = arith.mulf %15, %28 : vector<8x512xf32>
    %30 = vector.extract_strided_slice %18 {offsets = [0, 1], sizes = [8, 511], strides = [1, 1]} : vector<8x512xf32> to vector<8x511xf32>
    %31 = vector.extract_strided_slice %18 {offsets = [0, 0], sizes = [8, 1], strides = [1, 1]} : vector<8x512xf32> to vector<8x1xf32>
    %32 = tpu.concatenate %30, %31 in 1 : vector<8x511xf32>, vector<8x1xf32> -> vector<8x512xf32>
    %33 = arith.mulf %18, %32 : vector<8x512xf32>
    %34 = vector.extract_strided_slice %21 {offsets = [0, 1], sizes = [8, 511], strides = [1, 1]} : vector<8x512xf32> to vector<8x511xf32>
    %35 = vector.extract_strided_slice %21 {offsets = [0, 0], sizes = [8, 1], strides = [1, 1]} : vector<8x512xf32> to vector<8x1xf32>
    %36 = tpu.concatenate %34, %35 in 1 : vector<8x511xf32>, vector<8x1xf32> -> vector<8x512xf32>
    %37 = arith.mulf %21, %36 : vector<8x512xf32>
    %38 = arith.addf %29, %33 : vector<8x512xf32>
    %39 = arith.subf %38, %25 : vector<8x512xf32>
    %40 = tpu.iota {dimensions = array<i32: 0>} : vector<512x128xi32>
    %41 = tpu.iota {dimensions = array<i32: 1>} : vector<512x128xi32>
    %c4_i32 = arith.constant 4 : i32
    %42 = vector.broadcast %c4_i32 : i32 to vector<512x128xi32>
    %43 = arith.muli %42, %41 : vector<512x128xi32>
    %44 = arith.cmpi eq, %40, %43 : vector<512x128xi32>
    %45 = arith.extui %44 : vector<512x128xi1> to vector<512x128xi32>
    %46 = arith.sitofp %45 : vector<512x128xi32> to vector<512x128xf32>
    %cst_5 = arith.constant dense<0.000000e+00> : vector<8x128xf32>
    %47 = tpu.matmul %25, %46, %cst_5 {dimension_numbers = #tpu.dot_dimension_numbers<[1], [0], [0], [1], [0, 0, 1, 1], [], []>, precision = #tpu.contract_precision<fp32>} : vector<8x512xf32>, vector<512x128xf32>, vector<8x128xf32> -> vector<8x128xf32>
    %cst_6 = arith.constant dense<0.000000e+00> : vector<8x128xf32>
    %48 = tpu.matmul %39, %46, %cst_6 {dimension_numbers = #tpu.dot_dimension_numbers<[1], [0], [0], [1], [0, 0, 1, 1], [], []>, precision = #tpu.contract_precision<fp32>} : vector<8x512xf32>, vector<512x128xf32>, vector<8x128xf32> -> vector<8x128xf32>
    %cst_7 = arith.constant dense<0.000000e+00> : vector<8x128xf32>
    %49 = tpu.matmul %37, %46, %cst_7 {dimension_numbers = #tpu.dot_dimension_numbers<[1], [0], [0], [1], [0, 0, 1, 1], [], []>, precision = #tpu.contract_precision<fp32>} : vector<8x512xf32>, vector<512x128xf32>, vector<8x128xf32> -> vector<8x128xf32>
    %cst_8 = arith.constant 0.000000e+00 : f32
    %50 = vector.broadcast %cst_8 : f32 to vector<8x128xf32>
    %51 = arith.cmpf ogt, %48, %50 : vector<8x128xf32>
    %cst_9 = arith.constant 1.000000e+00 : f32
    %52 = vector.broadcast %cst_9 : f32 to vector<8x128xf32>
    %53 = arith.select %51, %48, %52 : vector<8x128xi1>, vector<8x128xf32>
    %54 = tpu.reciprocal %53 {approx = true} : vector<8x128xf32> -> vector<8x128xf32>
    %55 = arith.mulf %53, %54 : vector<8x128xf32>
    %cst_10 = arith.constant 2.000000e+00 : f32
    %56 = vector.broadcast %cst_10 : f32 to vector<8x128xf32>
    %57 = arith.subf %56, %55 : vector<8x128xf32>
    %58 = arith.mulf %54, %57 : vector<8x128xf32>
    %59 = arith.mulf %53, %58 : vector<8x128xf32>
    %cst_11 = arith.constant 2.000000e+00 : f32
    %60 = vector.broadcast %cst_11 : f32 to vector<8x128xf32>
    %61 = arith.subf %60, %59 : vector<8x128xf32>
    %62 = arith.mulf %58, %61 : vector<8x128xf32>
    %63 = arith.mulf %47, %62 : vector<8x128xf32>
    %cst_12 = arith.constant 0.000000e+00 : f32
    %64 = vector.broadcast %cst_12 : f32 to vector<8x128xf32>
    %65 = arith.select %51, %63, %64 : vector<8x128xi1>, vector<8x128xf32>
    %66 = tpu.reciprocal %49 {approx = true} : vector<8x128xf32> -> vector<8x128xf32>
    %67 = arith.mulf %49, %66 : vector<8x128xf32>
    %cst_13 = arith.constant 2.000000e+00 : f32
    %68 = vector.broadcast %cst_13 : f32 to vector<8x128xf32>
    %69 = arith.subf %68, %67 : vector<8x128xf32>
    %70 = arith.mulf %66, %69 : vector<8x128xf32>
    %71 = arith.mulf %49, %70 : vector<8x128xf32>
    %cst_14 = arith.constant 2.000000e+00 : f32
    %72 = vector.broadcast %cst_14 : f32 to vector<8x128xf32>
    %73 = arith.subf %72, %71 : vector<8x128xf32>
    %74 = arith.mulf %70, %73 : vector<8x128xf32>
    %cst_15 = arith.constant 2.000000e+00 : f32
    %75 = vector.broadcast %cst_15 : f32 to vector<8x128xf32>
    %76 = arith.subf %75, %65 : vector<8x128xf32>
    %77 = arith.mulf %48, %74 : vector<8x128xf32>
    %78 = arith.subf %76, %77 : vector<8x128xf32>
    %c0_16 = arith.constant 0 : index
    %c0_17 = arith.constant 0 : index
    %79 = vector.load %arg3[%c0_16, %c0_17] : memref<8x128xf32, #tpu.memory_space<vmem>>, vector<8x128xf32>
    tpu.vector_store %arg3[%c0_16, %c0_17], %78 {strides = array<i32>} : memref<8x128xf32, #tpu.memory_space<vmem>>, vector<8x128xf32>,
    return
  }
  func.func @transform_0(%arg0: i32) -> (i32, i32) {
    %c0_i32 = arith.constant 0 : i32
    %c0_i32_0 = arith.constant 0 : i32
    return %arg0, %c0_i32 : i32, i32
  }
  func.func @transform_1(%arg0: i32) -> (i32, i32) {
    %c0_i32 = arith.constant 0 : i32
    %c0_i32_0 = arith.constant 0 : i32
    return %arg0, %c0_i32 : i32, i32
  }
  func.func @transform_2(%arg0: i32) -> (i32, i32) {
    %c0_i32 = arith.constant 0 : i32
    %c0_i32_0 = arith.constant 0 : i32
    return %arg0, %c0_i32 : i32, i32
  }
}

</mosaic_0001>

<llo_original>
// kernel: tpu_custom_call.1
$region0: #{tpu_custom_call.1}
  #allocation0 [shape = 'u32[]', space=smem, size = 0x4, offset = 0x4, fixed_abs, tag = 'smem constant byte address 0x4 - core index']
  #allocation1 [shape = 'u32[144,128]{1,0:T(1,128)}', space=vmem, size = 0x12000, scoped, tag = 'internal scratch']
  %s0 = inlined_call_operand.hbm [shape: f32[8,512], index: 0, kind: input, shape index: {}]
  %s1 = inlined_call_operand.hbm [shape: f32[8,512], index: 1, kind: input, shape index: {}]
  %s2 = inlined_call_operand.hbm [shape: f32[8,128], index: 2, kind: output, shape index: {}]
  %s3 = sld [smem:[#allocation0]]
  $region26: #{tpu_custom_call.1} parent=0
    _
  %s5 = ssub.s32 1, %s3
  %s6 = scalar_select 0, %s5, %s3
  $region1: #{tpu_custom_call.1} parent=0
    #allocation2 [shape = 'u8[16384]{0}', space=vmem, size = 0x4000, scoped, tag = 'input window, operand 0, single buffered']
    #allocation3 [shape = 's32[1]{0}', space=sflag, size = 0x4, scoped, tag = 'scoped memory for tpu_custom_call.1']
    #allocation4 [shape = 's32[1]{0}', space=sflag, size = 0x4, scoped, tag = 'scoped memory for tpu_custom_call.1']
    #allocation5 [shape = 'u8[16384]{0}', space=vmem, size = 0x4000, scoped, tag = 'input window, operand 1, single buffered']
    #allocation6 [shape = 's32[1]{0}', space=sflag, size = 0x4, scoped, tag = 'scoped memory for tpu_custom_call.1']
    #allocation7 [shape = 'u8[4096]{0}', space=vmem, size = 0x1000, scoped, tag = 'output window, operand 0, single buffered']
    %7 = vsyncpa [#allocation3], 0
    %8 = vsyncpa [#allocation6], 0
    %9 = vsyncpa [#allocation4], 0
    // Predicated region
    $region2: #{tpu_custom_call.1} parent=1 // pred_check
      _
    $region3: #{tpu_custom_call.1} parent=1 // pred_check_branch
      %11 = sbr.rel (0) target = $region5
    $region4: #{tpu_custom_call.1} parent=1 // pred_region
      %s13 = ssub.s32 512, 512
      %14 = vsyncadd [#allocation3], %s13
      %s16 = sshll.u32 [#allocation2], 4
      %s17 = int_to_ptr.vmem [resolvable:$true] %s16
      %19 = dma.hbm_to_vmem [thread:$0]  %s0, 512, %s17, [#allocation3]
    $region5: #{tpu_custom_call.1} parent=1 // pred_fallthru
      _
    // Predicated region
    $region6: #{tpu_custom_call.1} parent=1 // pred_check
      _
    $region7: #{tpu_custom_call.1} parent=1 // pred_check_branch
      %21 = sbr.rel (0) target = $region9
    $region8: #{tpu_custom_call.1} parent=1 // pred_region
      %s23 = ssub.s32 512, 512
      %24 = vsyncadd [#allocation6], %s23
      %s26 = sshll.u32 [#allocation5], 4
      %s27 = int_to_ptr.vmem [resolvable:$true] %s26
      %29 = dma.hbm_to_vmem [thread:$0]  %s1, 512, %s27, [#allocation6]
    $region9: #{tpu_custom_call.1} parent=1 // pred_fallthru
      _
    // Predicated region
    $region10: #{tpu_custom_call.1} parent=1 // pred_check
      _
    $region11: #{tpu_custom_call.1} parent=1 // pred_check_branch
      %31 = sbr.rel (0) target = $region13
    $region12: #{tpu_custom_call.1} parent=1 // pred_region
      %32 = dma.done [#allocation3], 512
    $region13: #{tpu_custom_call.1} parent=1 // pred_fallthru
      _
    // Predicated region
    $region14: #{tpu_custom_call.1} parent=1 // pred_check
      _
    $region15: #{tpu_custom_call.1} parent=1 // pred_check_branch
      %34 = sbr.rel (0) target = $region17
    $region16: #{tpu_custom_call.1} parent=1 // pred_region
      %35 = dma.done [#allocation6], 512
    $region17: #{tpu_custom_call.1} parent=1 // pred_fallthru
      _
    %v36 = vld [vmem:[#allocation2] sm:$0xff]
    %v37 = vld [vmem:[#allocation2 + $0x8] sm:$0xff]
    %v38 = vld [vmem:[#allocation2 + $0x10] sm:$0xff]
    %v39 = vld [vmem:[#allocation2 + $0x18] sm:$0xff]
    %v40 = vld [vmem:[#allocation5] sm:$0xff]
    %v41 = vld [vmem:[#allocation5 + $0x8] sm:$0xff]
    %v42 = vld [vmem:[#allocation5 + $0x10] sm:$0xff]
    %v43 = vld [vmem:[#allocation5 + $0x18] sm:$0xff]
    %48 = vrot.lane.b32.xlu0 %v36, 126
    %v49 = vpop.permute.xlu0 %48
    %50 = vrot.lane.b32.xlu0 %v37, 126
    %v51 = vpop.permute.xlu0 %50
    %52 = vrot.lane.b32.xlu0 %v38, 126
    %v53 = vpop.permute.xlu0 %52
    %54 = vrot.lane.b32.xlu0 %v39, 126
    %v55 = vpop.permute.xlu0 %54
    %vm56 = vcmask 1031168
    %v57 = vsel %vm56, %v49, %v51
    %v58 = vsel %vm56, %v51, %v53
    %v59 = vsel %vm56, %v53, %v55
    %v65 = vsel %vm56, %v55, %v49
    %70 = vrot.lane.b32.xlu0 %v40, 126
    %v71 = vpop.permute.xlu0 %70
    %72 = vrot.lane.b32.xlu0 %v41, 126
    %v73 = vpop.permute.xlu0 %72
    %74 = vrot.lane.b32.xlu0 %v42, 126
    %v75 = vpop.permute.xlu0 %74
    %76 = vrot.lane.b32.xlu0 %v43, 126
    %v77 = vpop.permute.xlu0 %76
    %v78 = vsel %vm56, %v71, %v73
    %v79 = vsel %vm56, %v73, %v75
    %v80 = vsel %vm56, %v75, %v77
    %v86 = vsel %vm56, %v77, %v71
    %v87 = vmax.f32 %v36, %v40
    %v88 = vmax.f32 %v37, %v41
    %v89 = vmax.f32 %v38, %v42
    %v90 = vmax.f32 %v39, %v43
    %v91 = vmin.f32 %v57, %v78
    %v92 = vmin.f32 %v58, %v79
    %v93 = vmin.f32 %v59, %v80
    %v94 = vmin.f32 %v65, %v86
    %v95 = vsub.f32 %v91, %v87
    %v96 = vsub.f32 %v92, %v88
    %v97 = vsub.f32 %v93, %v89
    %v98 = vsub.f32 %v94, %v90
    %v99 = vmax.f32 %v95, 0.0
    %v100 = vmax.f32 %v96, 0.0
    %v101 = vmax.f32 %v97, 0.0
    %v102 = vmax.f32 %v98, 0.0
    %v103 = vsub.f32 %v57, %v36
    %v104 = vsub.f32 %v58, %v37
    %v105 = vsub.f32 %v59, %v38
    %v106 = vsub.f32 %v65, %v39
    %v107 = vmax.f32 %v103, 0.0
    %v108 = vmax.f32 %v104, 0.0
    %v109 = vmax.f32 %v105, 0.0
    %v110 = vmax.f32 %v106, 0.0
    %v111 = vsub.f32 %v78, %v40
    %v112 = vsub.f32 %v79, %v41
    %v113 = vsub.f32 %v80, %v42
    %v114 = vsub.f32 %v86, %v43
    %v115 = vmax.f32 %v111, 0.0
    %v116 = vmax.f32 %v112, 0.0
    %v117 = vmax.f32 %v113, 0.0
    %v118 = vmax.f32 %v114, 0.0
    %v119 = vmax.f32 %v57, %v78
    %v120 = vmax.f32 %v58, %v79
    %v121 = vmax.f32 %v59, %v80
    %v122 = vmax.f32 %v65, %v86
    %v123 = vmin.f32 %v36, %v40
    %v124 = vmin.f32 %v37, %v41
    %v125 = vmin.f32 %v38, %v42
    %v126 = vmin.f32 %v39, %v43
    %v127 = vsub.f32 %v119, %v123
    %v128 = vsub.f32 %v120, %v124
    %v129 = vsub.f32 %v121, %v125
    %v130 = vsub.f32 %v122, %v126
    %135 = vrot.lane.b32.xlu0 %v99, 127
    %v136 = vpop.permute.xlu0 %135
    %137 = vrot.lane.b32.xlu0 %v100, 127
    %v138 = vpop.permute.xlu0 %137
    %139 = vrot.lane.b32.xlu0 %v101, 127
    %v140 = vpop.permute.xlu0 %139
    %141 = vrot.lane.b32.xlu0 %v102, 127
    %v142 = vpop.permute.xlu0 %141
    %vm143 = vcmask 1039360
    %v144 = vsel %vm143, %v136, %v138
    %v145 = vsel %vm143, %v138, %v140
    %v146 = vsel %vm143, %v140, %v142
    %v152 = vsel %vm143, %v142, %v136
    %v153 = vmul.f32 %v99, %v144
    %v154 = vmul.f32 %v100, %v145
    %v155 = vmul.f32 %v101, %v146
    %v156 = vmul.f32 %v102, %v152
    %161 = vrot.lane.b32.xlu0 %v107, 127
    %v162 = vpop.permute.xlu0 %161
    %163 = vrot.lane.b32.xlu0 %v108, 127
    %v164 = vpop.permute.xlu0 %163
    %165 = vrot.lane.b32.xlu0 %v109, 127
    %v166 = vpop.permute.xlu0 %165
    %167 = vrot.lane.b32.xlu0 %v110, 127
    %v168 = vpop.permute.xlu0 %167
    %v169 = vsel %vm143, %v162, %v164
    %v170 = vsel %vm143, %v164, %v166
    %v171 = vsel %vm143, %v166, %v168
    %v177 = vsel %vm143, %v168, %v162
    %v178 = vmul.f32 %v107, %v169
    %v179 = vmul.f32 %v108, %v170
    %v180 = vmul.f32 %v109, %v171
    %v181 = vmul.f32 %v110, %v177
    %186 = vrot.lane.b32.xlu0 %v115, 127
    %v187 = vpop.permute.xlu0 %186
    %188 = vrot.lane.b32.xlu0 %v116, 127
    %v189 = vpop.permute.xlu0 %188
    %190 = vrot.lane.b32.xlu0 %v117, 127
    %v191 = vpop.permute.xlu0 %190
    %192 = vrot.lane.b32.xlu0 %v118, 127
    %v193 = vpop.permute.xlu0 %192
    %v194 = vsel %vm143, %v187, %v189
    %v195 = vsel %vm143, %v189, %v191
    %v196 = vsel %vm143, %v191, %v193
    %v202 = vsel %vm143, %v193, %v187
    %v203 = vmul.f32 %v115, %v194
    %v204 = vmul.f32 %v116, %v195
    %v205 = vmul.f32 %v117, %v196
    %v206 = vmul.f32 %v118, %v202
    %211 = vrot.lane.b32.xlu0 %v127, 127
    %v212 = vpop.permute.xlu0 %211
    %213 = vrot.lane.b32.xlu0 %v128, 127
    %v214 = vpop.permute.xlu0 %213
    %215 = vrot.lane.b32.xlu0 %v129, 127
    %v216 = vpop.permute.xlu0 %215
    %217 = vrot.lane.b32.xlu0 %v130, 127
    %v218 = vpop.permute.xlu0 %217
    %v219 = vsel %vm143, %v212, %v214
    %v220 = vsel %vm143, %v214, %v216
    %v221 = vsel %vm143, %v216, %v218
    %v227 = vsel %vm143, %v218, %v212
    %v228 = vmul.f32 %v127, %v219
    %v229 = vmul.f32 %v128, %v220
    %v230 = vmul.f32 %v129, %v221
    %v231 = vmul.f32 %v130, %v227
    %v232 = vadd.f32 %v178, %v203
    %v233 = vadd.f32 %v179, %v204
    %v234 = vadd.f32 %v180, %v205
    %v235 = vadd.f32 %v181, %v206
    %v236 = vsub.f32 %v232, %v153
    %v237 = vsub.f32 %v233, %v154
    %v238 = vsub.f32 %v234, %v155
    %v239 = vsub.f32 %v235, %v156
    %v240 = vlaneseq
    %v241 = vshrl.u32 %v240, 7
    %v242 = vadd.s32 %v241, 8
    %v243 = vadd.s32 %v241, 16
    %v244 = vadd.s32 %v241, 24
    %v245 = vadd.s32 %v241, 32
    %v246 = vadd.s32 %v241, 40
    %v247 = vadd.s32 %v241, 48
    %v248 = vadd.s32 %v241, 56
    %v249 = vadd.s32 %v241, 64
    %v250 = vadd.s32 %v241, 72
    %v251 = vadd.s32 %v241, 80
    %v252 = vadd.s32 %v241, 88
    %v253 = vadd.s32 %v241, 96
    %v254 = vadd.s32 %v241, 104
    %v255 = vadd.s32 %v241, 112
    %v256 = vadd.s32 %v241, 120
    %v257 = vadd.s32 %v241, 128
    %v258 = vadd.s32 %v241, 136
    %v259 = vadd.s32 %v241, 144
    %v260 = vadd.s32 %v241, 152
    %v261 = vadd.s32 %v241, 160
    %v262 = vadd.s32 %v241, 168
    %v263 = vadd.s32 %v241, 176
    %v264 = vadd.s32 %v241, 184
    %v265 = vadd.s32 %v241, 192
    %v266 = vadd.s32 %v241, 200
    %v267 = vadd.s32 %v241, 208
    %v268 = vadd.s32 %v241, 216
    %v269 = vadd.s32 %v241, 224
    %v270 = vadd.s32 %v241, 232
    %v271 = vadd.s32 %v241, 240
    %v272 = vadd.s32 %v241, 248
    %v273 = vadd.s32 %v241, 256
    %v274 = vadd.s32 %v241, 264
    %v275 = vadd.s32 %v241, 272
    %v276 = vadd.s32 %v241, 280
    %v277 = vadd.s32 %v241, 288
    %v278 = vadd.s32 %v241, 296
    %v279 = vadd.s32 %v241, 304
    %v280 = vadd.s32 %v241, 312
    %v281 = vadd.s32 %v241, 320
    %v282 = vadd.s32 %v241, 328
    %v283 = vadd.s32 %v241, 336
    %v284 = vadd.s32 %v241, 344
    %v285 = vadd.s32 %v241, 352
    %v286 = vadd.s32 %v241, 360
    %v287 = vadd.s32 %v241, 368
    %v288 = vadd.s32 %v241, 376
    %v289 = vadd.s32 %v241, 384
    %v290 = vadd.s32 %v241, 392
    %v291 = vadd.s32 %v241, 400
    %v292 = vadd.s32 %v241, 408
    %v293 = vadd.s32 %v241, 416
    %v294 = vadd.s32 %v241, 424
    %v295 = vadd.s32 %v241, 432
    %v296 = vadd.s32 %v241, 440
    %v297 = vadd.s32 %v241, 448
    %v298 = vadd.s32 %v241, 456
    %v299 = vadd.s32 %v241, 464
    %v300 = vadd.s32 %v241, 472
    %v301 = vadd.s32 %v241, 480
    %v302 = vadd.s32 %v241, 488
    %v303 = vadd.s32 %v241, 496
    %v304 = vadd.s32 %v241, 504
    %v305 = vlaneseq
    %v306 = vand.u32 %v305, 127
    %v307 = vmul.u32 %v306, 4
    %vm308 = vcmp.eq.s32.totalorder %v241, %v307
    %vm309 = vcmp.eq.s32.totalorder %v242, %v307
    %vm310 = vcmp.eq.s32.totalorder %v243, %v307
    %vm311 = vcmp.eq.s32.totalorder %v244, %v307
    %vm312 = vcmp.eq.s32.totalorder %v245, %v307
    %vm313 = vcmp.eq.s32.totalorder %v246, %v307
    %vm314 = vcmp.eq.s32.totalorder %v247, %v307
    %vm315 = vcmp.eq.s32.totalorder %v248, %v307
    %vm316 = vcmp.eq.s32.totalorder %v249, %v307
    %vm317 = vcmp.eq.s32.totalorder %v250, %v307
    %vm318 = vcmp.eq.s32.totalorder %v251, %v307
    %vm319 = vcmp.eq.s32.totalorder %v252, %v307
    %vm320 = vcmp.eq.s32.totalorder %v253, %v307
    %vm321 = vcmp.eq.s32.totalorder %v254, %v307
    %vm322 = vcmp.eq.s32.totalorder %v255, %v307
    %vm323 = vcmp.eq.s32.totalorder %v256, %v307
    %vm324 = vcmp.eq.s32.totalorder %v257, %v307
    %vm325 = vcmp.eq.s32.totalorder %v258, %v307
    %vm326 = vcmp.eq.s32.totalorder %v259, %v307
    %vm327 = vcmp.eq.s32.totalorder %v260, %v307
    %vm328 = vcmp.eq.s32.totalorder %v261, %v307
    %vm329 = vcmp.eq.s32.totalorder %v262, %v307
    %vm330 = vcmp.eq.s32.totalorder %v263, %v307
    %vm331 = vcmp.eq.s32.totalorder %v264, %v307
    %vm332 = vcmp.eq.s32.totalorder %v265, %v307
    %vm333 = vcmp.eq.s32.totalorder %v266, %v307
    %vm334 = vcmp.eq.s32.totalorder %v267, %v307
    %vm335 = vcmp.eq.s32.totalorder %v268, %v307
    %vm336 = vcmp.eq.s32.totalorder %v269, %v307
    %vm337 = vcmp.eq.s32.totalorder %v270, %v307
    %vm338 = vcmp.eq.s32.totalorder %v271, %v307
    %vm339 = vcmp.eq.s32.totalorder %v272, %v307
    %vm340 = vcmp.eq.s32.totalorder %v273, %v307
    %vm341 = vcmp.eq.s32.totalorder %v274, %v307
    %vm342 = vcmp.eq.s32.totalorder %v275, %v307
    %vm343 = vcmp.eq.s32.totalorder %v276, %v307
    %vm344 = vcmp.eq.s32.totalorder %v277, %v307
    %vm345 = vcmp.eq.s32.totalorder %v278, %v307
    %vm346 = vcmp.eq.s32.totalorder %v279, %v307
    %vm347 = vcmp.eq.s32.totalorder %v280, %v307
    %vm348 = vcmp.eq.s32.totalorder %v281, %v307
    %vm349 = vcmp.eq.s32.totalorder %v282, %v307
    %vm350 = vcmp.eq.s32.totalorder %v283, %v307
    %vm351 = vcmp.eq.s32.totalorder %v284, %v307
    %vm352 = vcmp.eq.s32.totalorder %v285, %v307
    %vm353 = vcmp.eq.s32.totalorder %v286, %v307
    %vm354 = vcmp.eq.s32.totalorder %v287, %v307
    %vm355 = vcmp.eq.s32.totalorder %v288, %v307
    %vm356 = vcmp.eq.s32.totalorder %v289, %v307
    %vm357 = vcmp.eq.s32.totalorder %v290, %v307
    %vm358 = vcmp.eq.s32.totalorder %v291, %v307
    %vm359 = vcmp.eq.s32.totalorder %v292, %v307
    %vm360 = vcmp.eq.s32.totalorder %v293, %v307
    %vm361 = vcmp.eq.s32.totalorder %v294, %v307
    %vm362 = vcmp.eq.s32.totalorder %v295, %v307
    %vm363 = vcmp.eq.s32.totalorder %v296, %v307
    %vm364 = vcmp.eq.s32.totalorder %v297, %v307
    %vm365 = vcmp.eq.s32.totalorder %v298, %v307
    %vm366 = vcmp.eq.s32.totalorder %v299, %v307
    %vm367 = vcmp.eq.s32.totalorder %v300, %v307
    %vm368 = vcmp.eq.s32.totalorder %v301, %v307
    %vm369 = vcmp.eq.s32.totalorder %v302, %v307
    %vm370 = vcmp.eq.s32.totalorder %v303, %v307
    %vm371 = vcmp.eq.s32.totalorder %v304, %v307
    %v372 = vsel %vm308, 1, 0
    %v373 = vsel %vm309, 1, 0
    %v374 = vsel %vm310, 1, 0
    %v375 = vsel %vm311, 1, 0
    %v376 = vsel %vm312, 1, 0
    %v377 = vsel %vm313, 1, 0
    %v378 = vsel %vm314, 1, 0
    %v379 = vsel %vm315, 1, 0
    %v380 = vsel %vm316, 1, 0
    %v381 = vsel %vm317, 1, 0
    %v382 = vsel %vm318, 1, 0
    %v383 = vsel %vm319, 1, 0
    %v384 = vsel %vm320, 1, 0
    %v385 = vsel %vm321, 1, 0
    %v386 = vsel %vm322, 1, 0
    %v387 = vsel %vm323, 1, 0
    %v388 = vsel %vm324, 1, 0
    %v389 = vsel %vm325, 1, 0
    %v390 = vsel %vm326, 1, 0
    %v391 = vsel %vm327, 1, 0
    %v392 = vsel %vm328, 1, 0
    %v393 = vsel %vm329, 1, 0
    %v394 = vsel %vm330, 1, 0
    %v395 = vsel %vm331, 1, 0
    %v396 = vsel %vm332, 1, 0
    %v397 = vsel %vm333, 1, 0
    %v398 = vsel %vm334, 1, 0
    %v399 = vsel %vm335, 1, 0
    %v400 = vsel %vm336, 1, 0
    %v401 = vsel %vm337, 1, 0
    %v402 = vsel %vm338, 1, 0
    %v403 = vsel %vm339, 1, 0
    %v404 = vsel %vm340, 1, 0
    %v405 = vsel %vm341, 1, 0
    %v406 = vsel %vm342, 1, 0
    %v407 = vsel %vm343, 1, 0
    %v408 = vsel %vm344, 1, 0
    %v409 = vsel %vm345, 1, 0
    %v410 = vsel %vm346, 1, 0
    %v411 = vsel %vm347, 1, 0
    %v412 = vsel %vm348, 1, 0
    %v413 = vsel %vm349, 1, 0
    %v414 = vsel %vm350, 1, 0
    %v415 = vsel %vm351, 1, 0
    %v416 = vsel %vm352, 1, 0
    %v417 = vsel %vm353, 1, 0
    %v418 = vsel %vm354, 1, 0
    %v419 = vsel %vm355, 1, 0
    %v420 = vsel %vm356, 1, 0
    %v421 = vsel %vm357, 1, 0
    %v422 = vsel %vm358, 1, 0
    %v423 = vsel %vm359, 1, 0
    %v424 = vsel %vm360, 1, 0
    %v425 = vsel %vm361, 1, 0
    %v426 = vsel %vm362, 1, 0
    %v427 = vsel %vm363, 1, 0
    %v428 = vsel %vm364, 1, 0
    %v429 = vsel %vm365, 1, 0
    %v430 = vsel %vm366, 1, 0
    %v431 = vsel %vm367, 1, 0
    %v432 = vsel %vm368, 1, 0
    %v433 = vsel %vm369, 1, 0
    %v434 = vsel %vm370, 1, 0
    %v435 = vsel %vm371, 1, 0
    %v436 = vcvt.s32.f32 %v372
    %v437 = vcvt.s32.f32 %v373
    %v438 = vcvt.s32.f32 %v374
    %v439 = vcvt.s32.f32 %v375
    %v440 = vcvt.s32.f32 %v376
    %v441 = vcvt.s32.f32 %v377
    %v442 = vcvt.s32.f32 %v378
    %v443 = vcvt.s32.f32 %v379
    %v444 = vcvt.s32.f32 %v380
    %v445 = vcvt.s32.f32 %v381
    %v446 = vcvt.s32.f32 %v382
    %v447 = vcvt.s32.f32 %v383
    %v448 = vcvt.s32.f32 %v384
    %v449 = vcvt.s32.f32 %v385
    %v450 = vcvt.s32.f32 %v386
    %v451 = vcvt.s32.f32 %v387
    %v452 = vcvt.s32.f32 %v388
    %v453 = vcvt.s32.f32 %v389
    %v454 = vcvt.s32.f32 %v390
    %v455 = vcvt.s32.f32 %v391
    %v456 = vcvt.s32.f32 %v392
    %v457 = vcvt.s32.f32 %v393
    %v458 = vcvt.s32.f32 %v394
    %v459 = vcvt.s32.f32 %v395
    %v460 = vcvt.s32.f32 %v396
    %v461 = vcvt.s32.f32 %v397
    %v462 = vcvt.s32.f32 %v398
    %v463 = vcvt.s32.f32 %v399
    %v464 = vcvt.s32.f32 %v400
    %v465 = vcvt.s32.f32 %v401
    %v466 = vcvt.s32.f32 %v402
    %v467 = vcvt.s32.f32 %v403
    %v468 = vcvt.s32.f32 %v404
    %v469 = vcvt.s32.f32 %v405
    %v470 = vcvt.s32.f32 %v406
    %v471 = vcvt.s32.f32 %v407
    %v472 = vcvt.s32.f32 %v408
    %v473 = vcvt.s32.f32 %v409
    %v474 = vcvt.s32.f32 %v410
    %v475 = vcvt.s32.f32 %v411
    %v476 = vcvt.s32.f32 %v412
    %v477 = vcvt.s32.f32 %v413
    %v478 = vcvt.s32.f32 %v414
    %v479 = vcvt.s32.f32 %v415
    %v480 = vcvt.s32.f32 %v416
    %v481 = vcvt.s32.f32 %v417
    %v482 = vcvt.s32.f32 %v418
    %v483 = vcvt.s32.f32 %v419
    %v484 = vcvt.s32.f32 %v420
    %v485 = vcvt.s32.f32 %v421
    %v486 = vcvt.s32.f32 %v422
    %v487 = vcvt.s32.f32 %v423
    %v488 = vcvt.s32.f32 %v424
    %v489 = vcvt.s32.f32 %v425
    %v490 = vcvt.s32.f32 %v426
    %v491 = vcvt.s32.f32 %v427
    %v492 = vcvt.s32.f32 %v428
    %v493 = vcvt.s32.f32 %v429
    %v494 = vcvt.s32.f32 %v430
    %v495 = vcvt.s32.f32 %v431
    %v496 = vcvt.s32.f32 %v432
    %v497 = vcvt.s32.f32 %v433
    %v498 = vcvt.s32.f32 %v434
    %v499 = vcvt.s32.f32 %v435
    %500 = vmatprep.subr.mxu0 0.0
    %v501 = vand.u32 %v451, 4294901760
    %502 = vmatpush1.msra.mxu0 %v501
    %503 = vmatprep.subr.mxu0 0.0
    %v504 = vand.u32 %v450, 4294901760
    %505 = vmatpush1.msra.mxu0 %v504
    %506 = vmatprep.subr.mxu0 0.0
    %v507 = vand.u32 %v449, 4294901760
    %508 = vmatpush1.msra.mxu0 %v507
    %509 = vmatprep.subr.mxu0 0.0
    %v510 = vand.u32 %v448, 4294901760
    %511 = vmatpush1.msra.mxu0 %v510
    %512 = vmatprep.subr.mxu0 0.0
    %v513 = vand.u32 %v447, 4294901760
    %514 = vmatpush1.msra.mxu0 %v513
    %515 = vmatprep.subr.mxu0 0.0
    %v516 = vand.u32 %v446, 4294901760
    %517 = vmatpush1.msra.mxu0 %v516
    %518 = vmatprep.subr.mxu0 0.0
    %v519 = vand.u32 %v445, 4294901760
    %520 = vmatpush1.msra.mxu0 %v519
    %521 = vmatprep.subr.mxu0 0.0
    %v522 = vand.u32 %v444, 4294901760
    %523 = vmatpush1.msra.mxu0 %v522
    %524 = vmatprep.subr.mxu0 0.0
    %v525 = vand.u32 %v443, 4294901760
    %526 = vmatpush1.msra.mxu0 %v525
    %527 = vmatprep.subr.mxu0 0.0
    %v528 = vand.u32 %v442, 4294901760
    %529 = vmatpush1.msra.mxu0 %v528
    %530 = vmatprep.subr.mxu0 0.0
    %v531 = vand.u32 %v441, 4294901760
    %532 = vmatpush1.msra.mxu0 %v531
    %533 = vmatprep.subr.mxu0 0.0
    %v534 = vand.u32 %v440, 4294901760
    %535 = vmatpush1.msra.mxu0 %v534
    %536 = vmatprep.subr.mxu0 0.0
    %v537 = vand.u32 %v439, 4294901760
    %538 = vmatpush1.msra.mxu0 %v537
    %539 = vmatprep.subr.mxu0 0.0
    %v540 = vand.u32 %v438, 4294901760
    %541 = vmatpush1.msra.mxu0 %v540
    %542 = vmatprep.subr.mxu0 0.0
    %v543 = vand.u32 %v437, 4294901760
    %544 = vmatpush1.msra.mxu0 %v543
    %545 = vmatprep.subr.mxu0 0.0
    %v546 = vand.u32 %v436, 4294901760
    %547 = vmatpush1.msra.mxu0 %v546
    %548 = vmatprep.subr.mxu0 0.0
    %v549 = vand.u32 %v467, 4294901760
    %550 = vmatpush2.msra.mxu0 %v549
    %551 = vmatprep.subr.mxu0 0.0
    %v552 = vand.u32 %v466, 4294901760
    %553 = vmatpush2.msra.mxu0 %v552
    %554 = vmatprep.subr.mxu0 0.0
    %v555 = vand.u32 %v465, 4294901760
    %556 = vmatpush2.msra.mxu0 %v555
    %557 = vmatprep.subr.mxu0 0.0
    %v558 = vand.u32 %v464, 4294901760
    %559 = vmatpush2.msra.mxu0 %v558
    %560 = vmatprep.subr.mxu0 0.0
    %v561 = vand.u32 %v463, 4294901760
    %562 = vmatpush2.msra.mxu0 %v561
    %563 = vmatprep.subr.mxu0 0.0
    %v564 = vand.u32 %v462, 4294901760
    %565 = vmatpush2.msra.mxu0 %v564
    %566 = vmatprep.subr.mxu0 0.0
    %v567 = vand.u32 %v461, 4294901760
    %568 = vmatpush2.msra.mxu0 %v567
    %569 = vmatprep.subr.mxu0 0.0
    %v570 = vand.u32 %v460, 4294901760
    %571 = vmatpush2.msra.mxu0 %v570
    %572 = vmatprep.subr.mxu0 0.0
    %v573 = vand.u32 %v459, 4294901760
    %574 = vmatpush2.msra.mxu0 %v573
    %575 = vmatprep.subr.mxu0 0.0
    %v576 = vand.u32 %v458, 4294901760
    %577 = vmatpush2.msra.mxu0 %v576
    %578 = vmatprep.subr.mxu0 0.0
    %v579 = vand.u32 %v457, 4294901760
    %580 = vmatpush2.msra.mxu0 %v579
    %581 = vmatprep.subr.mxu0 0.0
    %v582 = vand.u32 %v456, 4294901760
    %583 = vmatpush2.msra.mxu0 %v582
    %584 = vmatprep.subr.mxu0 0.0
    %v585 = vand.u32 %v455, 4294901760
    %586 = vmatpush2.msra.mxu0 %v585
    %587 = vmatprep.subr.mxu0 0.0
    %v588 = vand.u32 %v454, 4294901760
    %589 = vmatpush2.msra.mxu0 %v588
    %590 = vmatprep.subr.mxu0 0.0
    %v591 = vand.u32 %v453, 4294901760
    %592 = vmatpush2.msra.mxu0 %v591
    %593 = vmatprep.subr.mxu0 0.0
    %v594 = vand.u32 %v452, 4294901760
    %595 = vmatpush2.msra.mxu0 %v594
    %v596 = vand.u32 %v154, 4294901760
    %v597 = vsub.f32 %v154, %v596
    %v598 = vand.u32 %v597, 4294901760
    %v599 = vsub.f32 %v597, %v598
    %v600 = vand.u32 %v599, 4294901760
    %601 = vmatprep.mubr.f32.mxu0 %v600
    %v602 = vand.u32 %v153, 4294901760
    %v603 = vsub.f32 %v153, %v602
    %v604 = vand.u32 %v603, 4294901760
    %v605 = vsub.f32 %v603, %v604
    %v606 = vand.u32 %v605, 4294901760
    %607 = vmatmul.mubr.f32.gmra.mxu0 %v606
    %v608 = vpop.f32.mrf.mxu0
    %v609 = vadd.f32 0.0, %v608
    %v610 = vpop.f32.mrf.mxu0
    %611 = vdwg.mxu0
    %612 = vmatprep.subr.mxu0 0.0
    %v613 = vand.u32 %v451, 4294901760
    %v614 = vsub.f32 %v451, %v613
    %v615 = vand.u32 %v614, 4294901760
    %v616 = vsub.f32 %v614, %v615
    %v617 = vand.u32 %v616, 4294901760
    %618 = vmatpush1.msra.mxu0 %v617
    %619 = vmatprep.subr.mxu0 0.0
    %v620 = vand.u32 %v450, 4294901760
    %v621 = vsub.f32 %v450, %v620
    %v622 = vand.u32 %v621, 4294901760
    %v623 = vsub.f32 %v621, %v622
    %v624 = vand.u32 %v623, 4294901760
    %625 = vmatpush1.msra.mxu0 %v624
    %626 = vmatprep.subr.mxu0 0.0
    %v627 = vand.u32 %v449, 4294901760
    %v628 = vsub.f32 %v449, %v627
    %v629 = vand.u32 %v628, 4294901760
    %v630 = vsub.f32 %v628, %v629
    %v631 = vand.u32 %v630, 4294901760
    %632 = vmatpush1.msra.mxu0 %v631
    %633 = vmatprep.subr.mxu0 0.0
    %v634 = vand.u32 %v448, 4294901760
    %v635 = vsub.f32 %v448, %v634
    %v636 = vand.u32 %v635, 4294901760
    %v637 = vsub.f32 %v635, %v636
    %v638 = vand.u32 %v637, 4294901760
    %639 = vmatpush1.msra.mxu0 %v638
    %640 = vmatprep.subr.mxu0 0.0
    %v641 = vand.u32 %v447, 4294901760
    %v642 = vsub.f32 %v447, %v641
    %v643 = vand.u32 %v642, 4294901760
    %v644 = vsub.f32 %v642, %v643
    %v645 = vand.u32 %v644, 4294901760
    %646 = vmatpush1.msra.mxu0 %v645
    %647 = vmatprep.subr.mxu0 0.0
    %v648 = vand.u32 %v446, 4294901760
    %v649 = vsub.f32 %v446, %v648
    %v650 = vand.u32 %v649, 4294901760
    %v651 = vsub.f32 %v649, %v650
    %v652 = vand.u32 %v651, 4294901760
    %653 = vmatpush1.msra.mxu0 %v652
    %654 = vmatprep.subr.mxu0 0.0
    %v655 = vand.u32 %v445, 4294901760
    %v656 = vsub.f32 %v445, %v655
    %v657 = vand.u32 %v656, 4294901760
    %v658 = vsub.f32 %v656, %v657
    %v659 = vand.u32 %v658, 4294901760
    %660 = vmatpush1.msra.mxu0 %v659
    %661 = vmatprep.subr.mxu0 0.0
    %v662 = vand.u32 %v444, 4294901760
    %v663 = vsub.f32 %v444, %v662
    %v664 = vand.u32 %v663, 4294901760
    %v665 = vsub.f32 %v663, %v664
    %v666 = vand.u32 %v665, 4294901760
    %667 = vmatpush1.msra.mxu0 %v666
    %668 = vmatprep.subr.mxu0 0.0
    %v669 = vand.u32 %v443, 4294901760
    %v670 = vsub.f32 %v443, %v669
    %v671 = vand.u32 %v670, 4294901760
    %v672 = vsub.f32 %v670, %v671
    %v673 = vand.u32 %v672, 4294901760
    %674 = vmatpush1.msra.mxu0 %v673
    %675 = vmatprep.subr.mxu0 0.0
    %v676 = vand.u32 %v442, 4294901760
    %v677 = vsub.f32 %v442, %v676
    %v678 = vand.u32 %v677, 4294901760
    %v679 = vsub.f32 %v677, %v678
    %v680 = vand.u32 %v679, 4294901760
    %681 = vmatpush1.msra.mxu0 %v680
    %682 = vmatprep.subr.mxu0 0.0
    %v683 = vand.u32 %v441, 4294901760
    %v684 = vsub.f32 %v441, %v683
    %v685 = vand.u32 %v684, 4294901760
    %v686 = vsub.f32 %v684, %v685
    %v687 = vand.u32 %v686, 4294901760
    %688 = vmatpush1.msra.mxu0 %v687
    %689 = vmatprep.subr.mxu0 0.0
    %v690 = vand.u32 %v440, 4294901760
    %v691 = vsub.f32 %v440, %v690
    %v692 = vand.u32 %v691, 4294901760
    %v693 = vsub.f32 %v691, %v692
    %v694 = vand.u32 %v693, 4294901760
    %695 = vmatpush1.msra.mxu0 %v694
    %696 = vmatprep.subr.mxu0 0.0
    %v697 = vand.u32 %v439, 4294901760
    %v698 = vsub.f32 %v439, %v697
    %v699 = vand.u32 %v698, 4294901760
    %v700 = vsub.f32 %v698, %v699
    %v701 = vand.u32 %v700, 4294901760
    %702 = vmatpush1.msra.mxu0 %v701
    %703 = vmatprep.subr.mxu0 0.0
    %v704 = vand.u32 %v438, 4294901760
    %v705 = vsub.f32 %v438, %v704
    %v706 = vand.u32 %v705, 4294901760
    %v707 = vsub.f32 %v705, %v706
    %v708 = vand.u32 %v707, 4294901760
    %709 = vmatpush1.msra.mxu0 %v708
    %710 = vmatprep.subr.mxu0 0.0
    %v711 = vand.u32 %v437, 4294901760
    %v712 = vsub.f32 %v437, %v711
    %v713 = vand.u32 %v712, 4294901760
    %v714 = vsub.f32 %v712, %v713
    %v715 = vand.u32 %v714, 4294901760
    %716 = vmatpush1.msra.mxu0 %v715
    %717 = vmatprep.subr.mxu0 0.0
    %v718 = vand.u32 %v436, 4294901760
    %v719 = vsub.f32 %v436, %v718
    %v720 = vand.u32 %v719, 4294901760
    %v721 = vsub.f32 %v719, %v720
    %v722 = vand.u32 %v721, 4294901760
    %723 = vmatpush1.msra.mxu0 %v722
    %724 = vmatprep.subr.mxu0 0.0
    %v725 = vand.u32 %v467, 4294901760
    %v726 = vsub.f32 %v467, %v725
    %v727 = vand.u32 %v726, 4294901760
    %v728 = vsub.f32 %v726, %v727
    %v729 = vand.u32 %v728, 4294901760
    %730 = vmatpush2.msra.mxu0 %v729
    %731 = vmatprep.subr.mxu0 0.0
    %v732 = vand.u32 %v466, 4294901760
    %v733 = vsub.f32 %v466, %v732
    %v734 = vand.u32 %v733, 4294901760
    %v735 = vsub.f32 %v733, %v734
    %v736 = vand.u32 %v735, 4294901760
    %737 = vmatpush2.msra.mxu0 %v736
    %738 = vmatprep.subr.mxu0 0.0
    %v739 = vand.u32 %v465, 4294901760
    %v740 = vsub.f32 %v465, %v739
    %v741 = vand.u32 %v740, 4294901760
    %v742 = vsub.f32 %v740, %v741
    %v743 = vand.u32 %v742, 4294901760
    %744 = vmatpush2.msra.mxu0 %v743
    %745 = vmatprep.subr.mxu0 0.0
    %v746 = vand.u32 %v464, 4294901760
    %v747 = vsub.f32 %v464, %v746
    %v748 = vand.u32 %v747, 4294901760
    %v749 = vsub.f32 %v747, %v748
    %v750 = vand.u32 %v749, 4294901760
    %751 = vmatpush2.msra.mxu0 %v750
    %752 = vmatprep.subr.mxu0 0.0
    %v753 = vand.u32 %v463, 4294901760
    %v754 = vsub.f32 %v463, %v753
    %v755 = vand.u32 %v754, 4294901760
    %v756 = vsub.f32 %v754, %v755
    %v757 = vand.u32 %v756, 4294901760
    %758 = vmatpush2.msra.mxu0 %v757
    %759 = vmatprep.subr.mxu0 0.0
    %v760 = vand.u32 %v462, 4294901760
    %v761 = vsub.f32 %v462, %v760
    %v762 = vand.u32 %v761, 4294901760
    %v763 = vsub.f32 %v761, %v762
    %v764 = vand.u32 %v763, 4294901760
    %765 = vmatpush2.msra.mxu0 %v764
    %766 = vmatprep.subr.mxu0 0.0
    %v767 = vand.u32 %v461, 4294901760
    %v768 = vsub.f32 %v461, %v767
    %v769 = vand.u32 %v768, 4294901760
    %v770 = vsub.f32 %v768, %v769
    %v771 = vand.u32 %v770, 4294901760
    %772 = vmatpush2.msra.mxu0 %v771
    %773 = vmatprep.subr.mxu0 0.0
    %v774 = vand.u32 %v460, 4294901760
    %v775 = vsub.f32 %v460, %v774
    %v776 = vand.u32 %v775, 4294901760
    %v777 = vsub.f32 %v775, %v776
    %v778 = vand.u32 %v777, 4294901760
    %779 = vmatpush2.msra.mxu0 %v778
    %780 = vmatprep.subr.mxu0 0.0
    %v781 = vand.u32 %v459, 4294901760
    %v782 = vsub.f32 %v459, %v781
    %v783 = vand.u32 %v782, 4294901760
    %v784 = vsub.f32 %v782, %v783
    %v785 = vand.u32 %v784, 4294901760
    %786 = vmatpush2.msra.mxu0 %v785
    %787 = vmatprep.subr.mxu0 0.0
    %v788 = vand.u32 %v458, 4294901760
    %v789 = vsub.f32 %v458, %v788
    %v790 = vand.u32 %v789, 4294901760
    %v791 = vsub.f32 %v789, %v790
    %v792 = vand.u32 %v791, 4294901760
    %793 = vmatpush2.msra.mxu0 %v792
    %794 = vmatprep.subr.mxu0 0.0
    %v795 = vand.u32 %v457, 4294901760
    %v796 = vsub.f32 %v457, %v795
    %v797 = vand.u32 %v796, 4294901760
    %v798 = vsub.f32 %v796, %v797
    %v799 = vand.u32 %v798, 4294901760
    %800 = vmatpush2.msra.mxu0 %v799
    %801 = vmatprep.subr.mxu0 0.0
    %v802 = vand.u32 %v456, 4294901760
    %v803 = vsub.f32 %v456, %v802
    %v804 = vand.u32 %v803, 4294901760
    %v805 = vsub.f32 %v803, %v804
    %v806 = vand.u32 %v805, 4294901760
    %807 = vmatpush2.msra.mxu0 %v806
    %808 = vmatprep.subr.mxu0 0.0
    %v809 = vand.u32 %v455, 4294901760
    %v810 = vsub.f32 %v455, %v809
    %v811 = vand.u32 %v810, 4294901760
    %v812 = vsub.f32 %v810, %v811
    %v813 = vand.u32 %v812, 4294901760
    %814 = vmatpush2.msra.mxu0 %v813
    %815 = vmatprep.subr.mxu0 0.0
    %v816 = vand.u32 %v454, 4294901760
    %v817 = vsub.f32 %v454, %v816
    %v818 = vand.u32 %v817, 4294901760
    %v819 = vsub.f32 %v817, %v818
    %v820 = vand.u32 %v819, 4294901760
    %821 = vmatpush2.msra.mxu0 %v820
    %822 = vmatprep.subr.mxu0 0.0
    %v823 = vand.u32 %v453, 4294901760
    %v824 = vsub.f32 %v453, %v823
    %v825 = vand.u32 %v824, 4294901760
    %v826 = vsub.f32 %v824, %v825
    %v827 = vand.u32 %v826, 4294901760
    %828 = vmatpush2.msra.mxu0 %v827
    %829 = vmatprep.subr.mxu0 0.0
    %v830 = vand.u32 %v452, 4294901760
    %v831 = vsub.f32 %v452, %v830
    %v832 = vand.u32 %v831, 4294901760
    %v833 = vsub.f32 %v831, %v832
    %v834 = vand.u32 %v833, 4294901760
    %835 = vmatpush2.msra.mxu0 %v834
    %v836 = vand.u32 %v154, 4294901760
    %837 = vmatprep.mubr.f32.mxu0 %v836
    %v838 = vand.u32 %v153, 4294901760
    %839 = vmatmul.mubr.f32.gmra.mxu0 %v838
    %v840 = vpop.f32.mrf.mxu0
    %v841 = vadd.f32 %v609, %v840
    %v842 = vpop.f32.mrf.mxu0
    %843 = vdwg.mxu0
    %844 = vmatprep.subr.mxu0 0.0
    %v845 = vand.u32 %v451, 4294901760
    %v846 = vsub.f32 %v451, %v845
    %847 = vmatpush1.msra.mxu0 %v846
    %848 = vmatprep.subr.mxu0 0.0
    %v849 = vand.u32 %v450, 4294901760
    %v850 = vsub.f32 %v450, %v849
    %851 = vmatpush1.msra.mxu0 %v850
    %852 = vmatprep.subr.mxu0 0.0
    %v853 = vand.u32 %v449, 4294901760
    %v854 = vsub.f32 %v449, %v853
    %855 = vmatpush1.msra.mxu0 %v854
    %856 = vmatprep.subr.mxu0 0.0
    %v857 = vand.u32 %v448, 4294901760
    %v858 = vsub.f32 %v448, %v857
    %859 = vmatpush1.msra.mxu0 %v858
    %860 = vmatprep.subr.mxu0 0.0
    %v861 = vand.u32 %v447, 4294901760
    %v862 = vsub.f32 %v447, %v861
    %863 = vmatpush1.msra.mxu0 %v862
    %864 = vmatprep.subr.mxu0 0.0
    %v865 = vand.u32 %v446, 4294901760
    %v866 = vsub.f32 %v446, %v865
    %867 = vmatpush1.msra.mxu0 %v866
    %868 = vmatprep.subr.mxu0 0.0
    %v869 = vand.u32 %v445, 4294901760
    %v870 = vsub.f32 %v445, %v869
    %871 = vmatpush1.msra.mxu0 %v870
    %872 = vmatprep.subr.mxu0 0.0
    %v873 = vand.u32 %v444, 4294901760
    %v874 = vsub.f32 %v444, %v873
    %875 = vmatpush1.msra.mxu0 %v874
    %876 = vmatprep.subr.mxu0 0.0
    %v877 = vand.u32 %v443, 4294901760
    %v878 = vsub.f32 %v443, %v877
    %879 = vmatpush1.msra.mxu0 %v878
    %880 = vmatprep.subr.mxu0 0.0
    %v881 = vand.u32 %v442, 4294901760
    %v882 = vsub.f32 %v442, %v881
    %883 = vmatpush1.msra.mxu0 %v882
    %884 = vmatprep.subr.mxu0 0.0
    %v885 = vand.u32 %v441, 4294901760
    %v886 = vsub.f32 %v441, %v885
    %887 = vmatpush1.msra.mxu0 %v886
    %888 = vmatprep.subr.mxu0 0.0
    %v889 = vand.u32 %v440, 4294901760
    %v890 = vsub.f32 %v440, %v889
    %891 = vmatpush1.msra.mxu0 %v890
    %892 = vmatprep.subr.mxu0 0.0
    %v893 = vand.u32 %v439, 4294901760
    %v894 = vsub.f32 %v439, %v893
    %895 = vmatpush1.msra.mxu0 %v894
    %896 = vmatprep.subr.mxu0 0.0
    %v897 = vand.u32 %v438, 4294901760
    %v898 = vsub.f32 %v438, %v897
    %899 = vmatpush1.msra.mxu0 %v898
    %900 = vmatprep.subr.mxu0 0.0
    %v901 = vand.u32 %v437, 4294901760
    %v902 = vsub.f32 %v437, %v901
    %903 = vmatpush1.msra.mxu0 %v902
    %904 = vmatprep.subr.mxu0 0.0
    %v905 = vand.u32 %v436, 4294901760
    %v906 = vsub.f32 %v436, %v905
    %907 = vmatpush1.msra.mxu0 %v906
    %908 = vmatprep.subr.mxu0 0.0
    %v909 = vand.u32 %v467, 4294901760
    %v910 = vsub.f32 %v467, %v909
    %911 = vmatpush2.msra.mxu0 %v910
    %912 = vmatprep.subr.mxu0 0.0
    %v913 = vand.u32 %v466, 4294901760
    %v914 = vsub.f32 %v466, %v913
    %915 = vmatpush2.msra.mxu0 %v914
    %916 = vmatprep.subr.mxu0 0.0
    %v917 = vand.u32 %v465, 4294901760
    %v918 = vsub.f32 %v465, %v917
    %919 = vmatpush2.msra.mxu0 %v918
    %920 = vmatprep.subr.mxu0 0.0
    %v921 = vand.u32 %v464, 4294901760
    %v922 = vsub.f32 %v464, %v921
    %923 = vmatpush2.msra.mxu0 %v922
    %924 = vmatprep.subr.mxu0 0.0
    %v925 = vand.u32 %v463, 4294901760
    %v926 = vsub.f32 %v463, %v925
    %927 = vmatpush2.msra.mxu0 %v926
    %928 = vmatprep.subr.mxu0 0.0
    %v929 = vand.u32 %v462, 4294901760
    %v930 = vsub.f32 %v462, %v929
    %931 = vmatpush2.msra.mxu0 %v930
    %932 = vmatprep.subr.mxu0 0.0
    %v933 = vand.u32 %v461, 4294901760
    %v934 = vsub.f32 %v461, %v933
    %935 = vmatpush2.msra.mxu0 %v934
    %936 = vmatprep.subr.mxu0 0.0
    %v937 = vand.u32 %v460, 4294901760
    %v938 = vsub.f32 %v460, %v937
    %939 = vmatpush2.msra.mxu0 %v938
    %940 = vmatprep.subr.mxu0 0.0
    %v941 = vand.u32 %v459, 4294901760
    %v942 = vsub.f32 %v459, %v941
    %943 = vmatpush2.msra.mxu0 %v942
    %944 = vmatprep.subr.mxu0 0.0
    %v945 = vand.u32 %v458, 4294901760
    %v946 = vsub.f32 %v458, %v945
    %947 = vmatpush2.msra.mxu0 %v946
    %948 = vmatprep.subr.mxu0 0.0
    %v949 = vand.u32 %v457, 4294901760
    %v950 = vsub.f32 %v457, %v949
    %951 = vmatpush2.msra.mxu0 %v950
    %952 = vmatprep.subr.mxu0 0.0
    %v953 = vand.u32 %v456, 4294901760
    %v954 = vsub.f32 %v456, %v953
    %955 = vmatpush2.msra.mxu0 %v954
    %956 = vmatprep.subr.mxu0 0.0
    %v957 = vand.u32 %v455, 4294901760
    %v958 = vsub.f32 %v455, %v957
    %959 = vmatpush2.msra.mxu0 %v958
    %960 = vmatprep.subr.mxu0 0.0
    %v961 = vand.u32 %v454, 4294901760
    %v962 = vsub.f32 %v454, %v961
    %963 = vmatpush2.msra.mxu0 %v962
    %964 = vmatprep.subr.mxu0 0.0
    %v965 = vand.u32 %v453, 4294901760
    %v966 = vsub.f32 %v453, %v965
    %967 = vmatpush2.msra.mxu0 %v966
    %968 = vmatprep.subr.mxu0 0.0
    %v969 = vand.u32 %v452, 4294901760
    %v970 = vsub.f32 %v452, %v969
    %971 = vmatpush2.msra.mxu0 %v970
    %v972 = vand.u32 %v154, 4294901760
    %v973 = vsub.f32 %v154, %v972
    %974 = vmatprep.mubr.f32.mxu0 %v973
    %v975 = vand.u32 %v153, 4294901760
    %v976 = vsub.f32 %v153, %v975
    %977 = vmatmul.mubr.f32.gmra.mxu0 %v976
    %v978 = vpop.f32.mrf.mxu0
    %v979 = vadd.f32 %v841, %v978
    %v980 = vpop.f32.mrf.mxu0
    %981 = vdwg.mxu0
    %982 = vmatprep.subr.mxu0 0.0
    %v983 = vand.u32 %v451, 4294901760
    %984 = vmatpush1.msra.mxu0 %v983
    %985 = vmatprep.subr.mxu0 0.0
    %v986 = vand.u32 %v450, 4294901760
    %987 = vmatpush1.msra.mxu0 %v986
    %988 = vmatprep.subr.mxu0 0.0
    %v989 = vand.u32 %v449, 4294901760
    %990 = vmatpush1.msra.mxu0 %v989
    %991 = vmatprep.subr.mxu0 0.0
    %v992 = vand.u32 %v448, 4294901760
    %993 = vmatpush1.msra.mxu0 %v992
    %994 = vmatprep.subr.mxu0 0.0
    %v995 = vand.u32 %v447, 4294901760
    %996 = vmatpush1.msra.mxu0 %v995
    %997 = vmatprep.subr.mxu0 0.0
    %v998 = vand.u32 %v446, 4294901760
    %999 = vmatpush1.msra.mxu0 %v998
    %1000 = vmatprep.subr.mxu0 0.0
    %v1001 = vand.u32 %v445, 4294901760
    %1002 = vmatpush1.msra.mxu0 %v1001
    %1003 = vmatprep.subr.mxu0 0.0
    %v1004 = vand.u32 %v444, 4294901760
    %1005 = vmatpush1.msra.mxu0 %v1004
    %1006 = vmatprep.subr.mxu0 0.0
    %v1007 = vand.u32 %v443, 4294901760
    %1008 = vmatpush1.msra.mxu0 %v1007
    %1009 = vmatprep.subr.mxu0 0.0
    %v1010 = vand.u32 %v442, 4294901760
    %1011 = vmatpush1.msra.mxu0 %v1010
    %1012 = vmatprep.subr.mxu0 0.0
    %v1013 = vand.u32 %v441, 4294901760
    %1014 = vmatpush1.msra.mxu0 %v1013
    %1015 = vmatprep.subr.mxu0 0.0
    %v1016 = vand.u32 %v440, 4294901760
    %1017 = vmatpush1.msra.mxu0 %v1016
    %1018 = vmatprep.subr.mxu0 0.0
    %v1019 = vand.u32 %v439, 4294901760
    %1020 = vmatpush1.msra.mxu0 %v1019
    %1021 = vmatprep.subr.mxu0 0.0
    %v1022 = vand.u32 %v438, 4294901760
    %1023 = vmatpush1.msra.mxu0 %v1022
    %1024 = vmatprep.subr.mxu0 0.0
    %v1025 = vand.u32 %v437, 4294901760
    %1026 = vmatpush1.msra.mxu0 %v1025
    %1027 = vmatprep.subr.mxu0 0.0
    %v1028 = vand.u32 %v436, 4294901760
    %1029 = vmatpush1.msra.mxu0 %v1028
    %1030 = vmatprep.subr.mxu0 0.0
    %v1031 = vand.u32 %v467, 4294901760
    %1032 = vmatpush2.msra.mxu0 %v1031
    %1033 = vmatprep.subr.mxu0 0.0
    %v1034 = vand.u32 %v466, 4294901760
    %1035 = vmatpush2.msra.mxu0 %v1034
    %1036 = vmatprep.subr.mxu0 0.0
    %v1037 = vand.u32 %v465, 4294901760
    %1038 = vmatpush2.msra.mxu0 %v1037
    %1039 = vmatprep.subr.mxu0 0.0
    %v1040 = vand.u32 %v464, 4294901760
    %1041 = vmatpush2.msra.mxu0 %v1040
    %1042 = vmatprep.subr.mxu0 0.0
    %v1043 = vand.u32 %v463, 4294901760
    %1044 = vmatpush2.msra.mxu0 %v1043
    %1045 = vmatprep.subr.mxu0 0.0
    %v1046 = vand.u32 %v462, 4294901760
    %1047 = vmatpush2.msra.mxu0 %v1046
    %1048 = vmatprep.subr.mxu0 0.0
    %v1049 = vand.u32 %v461, 4294901760
    %1050 = vmatpush2.msra.mxu0 %v1049
    %1051 = vmatprep.subr.mxu0 0.0
    %v1052 = vand.u32 %v460, 4294901760
    %1053 = vmatpush2.msra.mxu0 %v1052
    %1054 = vmatprep.subr.mxu0 0.0
    %v1055 = vand.u32 %v459, 4294901760
    %1056 = vmatpush2.msra.mxu0 %v1055
    %1057 = vmatprep.subr.mxu0 0.0
    %v1058 = vand.u32 %v458, 4294901760
    %1059 = vmatpush2.msra.mxu0 %v1058
    %1060 = vmatprep.subr.mxu0 0.0
    %v1061 = vand.u32 %v457, 4294901760
    %1062 = vmatpush2.msra.mxu0 %v1061
    %1063 = vmatprep.subr.mxu0 0.0
    %v1064 = vand.u32 %v456, 4294901760
    %1065 = vmatpush2.msra.mxu0 %v1064
    %1066 = vmatprep.subr.mxu0 0.0
    %v1067 = vand.u32 %v455, 4294901760
    %1068 = vmatpush2.msra.mxu0 %v1067
    %1069 = vmatprep.subr.mxu0 0.0
    %v1070 = vand.u32 %v454, 4294901760
    %1071 = vmatpush2.msra.mxu0 %v1070
    %1072 = vmatprep.subr.mxu0 0.0
    %v1073 = vand.u32 %v453, 4294901760
    %1074 = vmatpush2.msra.mxu0 %v1073
    %1075 = vmatprep.subr.mxu0 0.0
    %v1076 = vand.u32 %v452, 4294901760
    %1077 = vmatpush2.msra.mxu0 %v1076
    %v1078 = vand.u32 %v154, 4294901760
    %v1079 = vsub.f32 %v154, %v1078
    %v1080 = vand.u32 %v1079, 4294901760
    %1081 = vmatprep.mubr.f32.mxu0 %v1080
    %v1082 = vand.u32 %v153, 4294901760
    %v1083 = vsub.f32 %v153, %v1082
    %v1084 = vand.u32 %v1083, 4294901760
    %1085 = vmatmul.mubr.f32.gmra.mxu0 %v1084
    %v1086 = vpop.f32.mrf.mxu0
    %v1087 = vadd.f32 %v979, %v1086
    %v1088 = vpop.f32.mrf.mxu0
    %1089 = vdwg.mxu0
    %1090 = vmatprep.subr.mxu0 0.0
    %v1091 = vand.u32 %v451, 4294901760
    %v1092 = vsub.f32 %v451, %v1091
    %v1093 = vand.u32 %v1092, 4294901760
    %1094 = vmatpush1.msra.mxu0 %v1093
    %1095 = vmatprep.subr.mxu0 0.0
    %v1096 = vand.u32 %v450, 4294901760
    %v1097 = vsub.f32 %v450, %v1096
    %v1098 = vand.u32 %v1097, 4294901760
    %1099 = vmatpush1.msra.mxu0 %v1098
    %1100 = vmatprep.subr.mxu0 0.0
    %v1101 = vand.u32 %v449, 4294901760
    %v1102 = vsub.f32 %v449, %v1101
    %v1103 = vand.u32 %v1102, 4294901760
    %1104 = vmatpush1.msra.mxu0 %v1103
    %1105 = vmatprep.subr.mxu0 0.0
    %v1106 = vand.u32 %v448, 4294901760
    %v1107 = vsub.f32 %v448, %v1106
    %v1108 = vand.u32 %v1107, 4294901760
    %1109 = vmatpush1.msra.mxu0 %v1108
    %1110 = vmatprep.subr.mxu0 0.0
    %v1111 = vand.u32 %v447, 4294901760
    %v1112 = vsub.f32 %v447, %v1111
    %v1113 = vand.u32 %v1112, 4294901760
    %1114 = vmatpush1.msra.mxu0 %v1113
    %1115 = vmatprep.subr.mxu0 0.0
    %v1116 = vand.u32 %v446, 4294901760
    %v1117 = vsub.f32 %v446, %v1116
    %v1118 = vand.u32 %v1117, 4294901760
    %1119 = vmatpush1.msra.mxu0 %v1118
    %1120 = vmatprep.subr.mxu0 0.0
    %v1121 = vand.u32 %v445, 4294901760
    %v1122 = vsub.f32 %v445, %v1121
    %v1123 = vand.u32 %v1122, 4294901760
    %1124 = vmatpush1.msra.mxu0 %v1123
    %1125 = vmatprep.subr.mxu0 0.0
    %v1126 = vand.u32 %v444, 4294901760
    %v1127 = vsub.f32 %v444, %v1126
    %v1128 = vand.u32 %v1127, 4294901760
    %1129 = vmatpush1.msra.mxu0 %v1128
    %1130 = vmatprep.subr.mxu0 0.0
    %v1131 = vand.u32 %v443, 4294901760
    %v1132 = vsub.f32 %v443, %v1131
    %v1133 = vand.u32 %v1132, 4294901760
    %1134 = vmatpush1.msra.mxu0 %v1133
    %1135 = vmatprep.subr.mxu0 0.0
    %v1136 = vand.u32 %v442, 4294901760
    %v1137 = vsub.f32 %v442, %v1136
    %v1138 = vand.u32 %v1137, 4294901760
    %1139 = vmatpush1.msra.mxu0 %v1138
    %1140 = vmatprep.subr.mxu0 0.0
    %v1141 = vand.u32 %v441, 4294901760
    %v1142 = vsub.f32 %v441, %v1141
    %v1143 = vand.u32 %v1142, 4294901760
    %1144 = vmatpush1.msra.mxu0 %v1143
    %1145 = vmatprep.subr.mxu0 0.0
    %v1146 = vand.u32 %v440, 4294901760
    %v1147 = vsub.f32 %v440, %v1146
    %v1148 = vand.u32 %v1147, 4294901760
    %1149 = vmatpush1.msra.mxu0 %v1148
    %1150 = vmatprep.subr.mxu0 0.0
    %v1151 = vand.u32 %v439, 4294901760
    %v1152 = vsub.f32 %v439, %v1151
    %v1153 = vand.u32 %v1152, 4294901760
    %1154 = vmatpush1.msra.mxu0 %v1153
    %1155 = vmatprep.subr.mxu0 0.0
    %v1156 = vand.u32 %v438, 4294901760
    %v1157 = vsub.f32 %v438, %v1156
    %v1158 = vand.u32 %v1157, 4294901760
    %1159 = vmatpush1.msra.mxu0 %v1158
    %1160 = vmatprep.subr.mxu0 0.0
    %v1161 = vand.u32 %v437, 4294901760
    %v1162 = vsub.f32 %v437, %v1161
    %v1163 = vand.u32 %v1162, 4294901760
    %1164 = vmatpush1.msra.mxu0 %v1163
    %1165 = vmatprep.subr.mxu0 0.0
    %v1166 = vand.u32 %v436, 4294901760
    %v1167 = vsub.f32 %v436, %v1166
    %v1168 = vand.u32 %v1167, 4294901760
    %1169 = vmatpush1.msra.mxu0 %v1168
    %1170 = vmatprep.subr.mxu0 0.0
    %v1171 = vand.u32 %v467, 4294901760
    %v1172 = vsub.f32 %v467, %v1171
    %v1173 = vand.u32 %v1172, 4294901760
    %1174 = vmatpush2.msra.mxu0 %v1173
    %1175 = vmatprep.subr.mxu0 0.0
    %v1176 = vand.u32 %v466, 4294901760
    %v1177 = vsub.f32 %v466, %v1176
    %v1178 = vand.u32 %v1177, 4294901760
    %1179 = vmatpush2.msra.mxu0 %v1178
    %1180 = vmatprep.subr.mxu0 0.0
    %v1181 = vand.u32 %v465, 4294901760
    %v1182 = vsub.f32 %v465, %v1181
    %v1183 = vand.u32 %v1182, 4294901760
    %1184 = vmatpush2.msra.mxu0 %v1183
    %1185 = vmatprep.subr.mxu0 0.0
    %v1186 = vand.u32 %v464, 4294901760
    %v1187 = vsub.f32 %v464, %v1186
    %v1188 = vand.u32 %v1187, 4294901760
    %1189 = vmatpush2.msra.mxu0 %v1188
    %1190 = vmatprep.subr.mxu0 0.0
    %v1191 = vand.u32 %v463, 4294901760
    %v1192 = vsub.f32 %v463, %v1191
    %v1193 = vand.u32 %v1192, 4294901760
    %1194 = vmatpush2.msra.mxu0 %v1193
    %1195 = vmatprep.subr.mxu0 0.0
    %v1196 = vand.u32 %v462, 4294901760
    %v1197 = vsub.f32 %v462, %v1196
    %v1198 = vand.u32 %v1197, 4294901760
    %1199 = vmatpush2.msra.mxu0 %v1198
    %1200 = vmatprep.subr.mxu0 0.0
    %v1201 = vand.u32 %v461, 4294901760
    %v1202 = vsub.f32 %v461, %v1201
    %v1203 = vand.u32 %v1202, 4294901760
    %1204 = vmatpush2.msra.mxu0 %v1203
    %1205 = vmatprep.subr.mxu0 0.0
    %v1206 = vand.u32 %v460, 4294901760
    %v1207 = vsub.f32 %v460, %v1206
    %v1208 = vand.u32 %v1207, 4294901760
    %1209 = vmatpush2.msra.mxu0 %v1208
    %1210 = vmatprep.subr.mxu0 0.0
    %v1211 = vand.u32 %v459, 4294901760
    %v1212 = vsub.f32 %v459, %v1211
    %v1213 = vand.u32 %v1212, 4294901760
    %1214 = vmatpush2.msra.mxu0 %v1213
    %1215 = vmatprep.subr.mxu0 0.0
    %v1216 = vand.u32 %v458, 4294901760
    %v1217 = vsub.f32 %v458, %v1216
    %v1218 = vand.u32 %v1217, 4294901760
    %1219 = vmatpush2.msra.mxu0 %v1218
    %1220 = vmatprep.subr.mxu0 0.0
    %v1221 = vand.u32 %v457, 4294901760
    %v1222 = vsub.f32 %v457, %v1221
    %v1223 = vand.u32 %v1222, 4294901760
    %1224 = vmatpush2.msra.mxu0 %v1223
    %1225 = vmatprep.subr.mxu0 0.0
    %v1226 = vand.u32 %v456, 4294901760
    %v1227 = vsub.f32 %v456, %v1226
    %v1228 = vand.u32 %v1227, 4294901760
    %1229 = vmatpush2.msra.mxu0 %v1228
    %1230 = vmatprep.subr.mxu0 0.0
    %v1231 = vand.u32 %v455, 4294901760
    %v1232 = vsub.f32 %v455, %v1231
    %v1233 = vand.u32 %v1232, 4294901760
    %1234 = vmatpush2.msra.mxu0 %v1233
    %1235 = vmatprep.subr.mxu0 0.0
    %v1236 = vand.u32 %v454, 4294901760
    %v1237 = vsub.f32 %v454, %v1236
    %v1238 = vand.u32 %v1237, 4294901760
    %1239 = vmatpush2.msra.mxu0 %v1238
    %1240 = vmatprep.subr.mxu0 0.0
    %v1241 = vand.u32 %v453, 4294901760
    %v1242 = vsub.f32 %v453, %v1241
    %v1243 = vand.u32 %v1242, 4294901760
    %1244 = vmatpush2.msra.mxu0 %v1243
    %1245 = vmatprep.subr.mxu0 0.0
    %v1246 = vand.u32 %v452, 4294901760
    %v1247 = vsub.f32 %v452, %v1246
    %v1248 = vand.u32 %v1247, 4294901760
    %1249 = vmatpush2.msra.mxu0 %v1248
    %v1250 = vand.u32 %v154, 4294901760
    %1251 = vmatprep.mubr.f32.mxu0 %v1250
    %v1252 = vand.u32 %v153, 4294901760
    %1253 = vmatmul.mubr.f32.gmra.mxu0 %v1252
    %v1254 = vpop.f32.mrf.mxu0
    %v1255 = vadd.f32 %v1087, %v1254
    %v1256 = vpop.f32.mrf.mxu0
    %1257 = vdwg.mxu0
    %1258 = vmatprep.subr.mxu0 0.0
    %v1259 = vand.u32 %v451, 4294901760
    %1260 = vmatpush1.msra.mxu0 %v1259
    %1261 = vmatprep.subr.mxu0 0.0
    %v1262 = vand.u32 %v450, 4294901760
    %1263 = vmatpush1.msra.mxu0 %v1262
    %1264 = vmatprep.subr.mxu0 0.0
    %v1265 = vand.u32 %v449, 4294901760
    %1266 = vmatpush1.msra.mxu0 %v1265
    %1267 = vmatprep.subr.mxu0 0.0
    %v1268 = vand.u32 %v448, 4294901760
    %1269 = vmatpush1.msra.mxu0 %v1268
    %1270 = vmatprep.subr.mxu0 0.0
    %v1271 = vand.u32 %v447, 4294901760
    %1272 = vmatpush1.msra.mxu0 %v1271
    %1273 = vmatprep.subr.mxu0 0.0
    %v1274 = vand.u32 %v446, 4294901760
    %1275 = vmatpush1.msra.mxu0 %v1274
    %1276 = vmatprep.subr.mxu0 0.0
    %v1277 = vand.u32 %v445, 4294901760
    %1278 = vmatpush1.msra.mxu0 %v1277
    %1279 = vmatprep.subr.mxu0 0.0
    %v1280 = vand.u32 %v444, 4294901760
    %1281 = vmatpush1.msra.mxu0 %v1280
    %1282 = vmatprep.subr.mxu0 0.0
    %v1283 = vand.u32 %v443, 4294901760
    %1284 = vmatpush1.msra.mxu0 %v1283
    %1285 = vmatprep.subr.mxu0 0.0
    %v1286 = vand.u32 %v442, 4294901760
    %1287 = vmatpush1.msra.mxu0 %v1286
    %1288 = vmatprep.subr.mxu0 0.0
    %v1289 = vand.u32 %v441, 4294901760
    %1290 = vmatpush1.msra.mxu0 %v1289
    %1291 = vmatprep.subr.mxu0 0.0
    %v1292 = vand.u32 %v440, 4294901760
    %1293 = vmatpush1.msra.mxu0 %v1292
    %1294 = vmatprep.subr.mxu0 0.0
    %v1295 = vand.u32 %v439, 4294901760
    %1296 = vmatpush1.msra.mxu0 %v1295
    %1297 = vmatprep.subr.mxu0 0.0
    %v1298 = vand.u32 %v438, 4294901760
    %1299 = vmatpush1.msra.mxu0 %v1298
    %1300 = vmatprep.subr.mxu0 0.0
    %v1301 = vand.u32 %v437, 4294901760
    %1302 = vmatpush1.msra.mxu0 %v1301
    %1303 = vmatprep.subr.mxu0 0.0
    %v1304 = vand.u32 %v436, 4294901760
    %1305 = vmatpush1.msra.mxu0 %v1304
    %1306 = vmatprep.subr.mxu0 0.0
    %v1307 = vand.u32 %v467, 4294901760
    %1308 = vmatpush2.msra.mxu0 %v1307
    %1309 = vmatprep.subr.mxu0 0.0
    %v1310 = vand.u32 %v466, 4294901760
    %1311 = vmatpush2.msra.mxu0 %v1310
    %1312 = vmatprep.subr.mxu0 0.0
    %v1313 = vand.u32 %v465, 4294901760
    %1314 = vmatpush2.msra.mxu0 %v1313
    %1315 = vmatprep.subr.mxu0 0.0
    %v1316 = vand.u32 %v464, 4294901760
    %1317 = vmatpush2.msra.mxu0 %v1316
    %1318 = vmatprep.subr.mxu0 0.0
    %v1319 = vand.u32 %v463, 4294901760
    %1320 = vmatpush2.msra.mxu0 %v1319
    %1321 = vmatprep.subr.mxu0 0.0
    %v1322 = vand.u32 %v462, 4294901760
    %1323 = vmatpush2.msra.mxu0 %v1322
    %1324 = vmatprep.subr.mxu0 0.0
    %v1325 = vand.u32 %v461, 4294901760
    %1326 = vmatpush2.msra.mxu0 %v1325
    %1327 = vmatprep.subr.mxu0 0.0
    %v1328 = vand.u32 %v460, 4294901760
    %1329 = vmatpush2.msra.mxu0 %v1328
    %1330 = vmatprep.subr.mxu0 0.0
    %v1331 = vand.u32 %v459, 4294901760
    %1332 = vmatpush2.msra.mxu0 %v1331
    %1333 = vmatprep.subr.mxu0 0.0
    %v1334 = vand.u32 %v458, 4294901760
    %1335 = vmatpush2.msra.mxu0 %v1334
    %1336 = vmatprep.subr.mxu0 0.0
    %v1337 = vand.u32 %v457, 4294901760
    %1338 = vmatpush2.msra.mxu0 %v1337
    %1339 = vmatprep.subr.mxu0 0.0
    %v1340 = vand.u32 %v456, 4294901760
    %1341 = vmatpush2.msra.mxu0 %v1340
    %1342 = vmatprep.subr.mxu0 0.0
    %v1343 = vand.u32 %v455, 4294901760
    %1344 = vmatpush2.msra.mxu0 %v1343
    %1345 = vmatprep.subr.mxu0 0.0
    %v1346 = vand.u32 %v454, 4294901760
    %1347 = vmatpush2.msra.mxu0 %v1346
    %1348 = vmatprep.subr.mxu0 0.0
    %v1349 = vand.u32 %v453, 4294901760
    %1350 = vmatpush2.msra.mxu0 %v1349
    %1351 = vmatprep.subr.mxu0 0.0
    %v1352 = vand.u32 %v452, 4294901760
    %1353 = vmatpush2.msra.mxu0 %v1352
    %v1354 = vand.u32 %v154, 4294901760
    %1355 = vmatprep.mubr.f32.mxu0 %v1354
    %v1356 = vand.u32 %v153, 4294901760
    %1357 = vmatmul.mubr.f32.gmra.mxu0 %v1356
    %v1358 = vpop.f32.mrf.mxu0
    %v1359 = vadd.f32 %v1255, %v1358
    %v1360 = vpop.f32.mrf.mxu0
    %1361 = vdwg.mxu0
    %1362 = vmatprep.subr.mxu0 0.0
    %v1363 = vand.u32 %v483, 4294901760
    %1364 = vmatpush1.msra.mxu0 %v1363
    %1365 = vmatprep.subr.mxu0 0.0
    %v1366 = vand.u32 %v482, 4294901760
    %1367 = vmatpush1.msra.mxu0 %v1366
    %1368 = vmatprep.subr.mxu0 0.0
    %v1369 = vand.u32 %v481, 4294901760
    %1370 = vmatpush1.msra.mxu0 %v1369
    %1371 = vmatprep.subr.mxu0 0.0
    %v1372 = vand.u32 %v480, 4294901760
    %1373 = vmatpush1.msra.mxu0 %v1372
    %1374 = vmatprep.subr.mxu0 0.0
    %v1375 = vand.u32 %v479, 4294901760
    %1376 = vmatpush1.msra.mxu0 %v1375
    %1377 = vmatprep.subr.mxu0 0.0
    %v1378 = vand.u32 %v478, 4294901760
    %1379 = vmatpush1.msra.mxu0 %v1378
    %1380 = vmatprep.subr.mxu0 0.0
    %v1381 = vand.u32 %v477, 4294901760
    %1382 = vmatpush1.msra.mxu0 %v1381
    %1383 = vmatprep.subr.mxu0 0.0
    %v1384 = vand.u32 %v476, 4294901760
    %1385 = vmatpush1.msra.mxu0 %v1384
    %1386 = vmatprep.subr.mxu0 0.0
    %v1387 = vand.u32 %v475, 4294901760
    %1388 = vmatpush1.msra.mxu0 %v1387
    %1389 = vmatprep.subr.mxu0 0.0
    %v1390 = vand.u32 %v474, 4294901760
    %1391 = vmatpush1.msra.mxu0 %v1390
    %1392 = vmatprep.subr.mxu0 0.0
    %v1393 = vand.u32 %v473, 4294901760
    %1394 = vmatpush1.msra.mxu0 %v1393
    %1395 = vmatprep.subr.mxu0 0.0
    %v1396 = vand.u32 %v472, 4294901760
    %1397 = vmatpush1.msra.mxu0 %v1396
    %1398 = vmatprep.subr.mxu0 0.0
    %v1399 = vand.u32 %v471, 4294901760
    %1400 = vmatpush1.msra.mxu0 %v1399
    %1401 = vmatprep.subr.mxu0 0.0
    %v1402 = vand.u32 %v470, 4294901760
    %1403 = vmatpush1.msra.mxu0 %v1402
    %1404 = vmatprep.subr.mxu0 0.0
    %v1405 = vand.u32 %v469, 4294901760
    %1406 = vmatpush1.msra.mxu0 %v1405
    %1407 = vmatprep.subr.mxu0 0.0
    %v1408 = vand.u32 %v468, 4294901760
    %1409 = vmatpush1.msra.mxu0 %v1408
    %1410 = vmatprep.subr.mxu0 0.0
    %v1411 = vand.u32 %v499, 4294901760
    %1412 = vmatpush2.msra.mxu0 %v1411
    %1413 = vmatprep.subr.mxu0 0.0
    %v1414 = vand.u32 %v498, 4294901760
    %1415 = vmatpush2.msra.mxu0 %v1414
    %1416 = vmatprep.subr.mxu0 0.0
    %v1417 = vand.u32 %v497, 4294901760
    %1418 = vmatpush2.msra.mxu0 %v1417
    %1419 = vmatprep.subr.mxu0 0.0
    %v1420 = vand.u32 %v496, 4294901760
    %1421 = vmatpush2.msra.mxu0 %v1420
    %1422 = vmatprep.subr.mxu0 0.0
    %v1423 = vand.u32 %v495, 4294901760
    %1424 = vmatpush2.msra.mxu0 %v1423
    %1425 = vmatprep.subr.mxu0 0.0
    %v1426 = vand.u32 %v494, 4294901760
    %1427 = vmatpush2.msra.mxu0 %v1426
    %1428 = vmatprep.subr.mxu0 0.0
    %v1429 = vand.u32 %v493, 4294901760
    %1430 = vmatpush2.msra.mxu0 %v1429
    %1431 = vmatprep.subr.mxu0 0.0
    %v1432 = vand.u32 %v492, 4294901760
    %1433 = vmatpush2.msra.mxu0 %v1432
    %1434 = vmatprep.subr.mxu0 0.0
    %v1435 = vand.u32 %v491, 4294901760
    %1436 = vmatpush2.msra.mxu0 %v1435
    %1437 = vmatprep.subr.mxu0 0.0
    %v1438 = vand.u32 %v490, 4294901760
    %1439 = vmatpush2.msra.mxu0 %v1438
    %1440 = vmatprep.subr.mxu0 0.0
    %v1441 = vand.u32 %v489, 4294901760
    %1442 = vmatpush2.msra.mxu0 %v1441
    %1443 = vmatprep.subr.mxu0 0.0
    %v1444 = vand.u32 %v488, 4294901760
    %1445 = vmatpush2.msra.mxu0 %v1444
    %1446 = vmatprep.subr.mxu0 0.0
    %v1447 = vand.u32 %v487, 4294901760
    %1448 = vmatpush2.msra.mxu0 %v1447
    %1449 = vmatprep.subr.mxu0 0.0
    %v1450 = vand.u32 %v486, 4294901760
    %1451 = vmatpush2.msra.mxu0 %v1450
    %1452 = vmatprep.subr.mxu0 0.0
    %v1453 = vand.u32 %v485, 4294901760
    %1454 = vmatpush2.msra.mxu0 %v1453
    %1455 = vmatprep.subr.mxu0 0.0
    %v1456 = vand.u32 %v484, 4294901760
    %1457 = vmatpush2.msra.mxu0 %v1456
    %v1458 = vand.u32 %v156, 4294901760
    %v1459 = vsub.f32 %v156, %v1458
    %v1460 = vand.u32 %v1459, 4294901760
    %v1461 = vsub.f32 %v1459, %v1460
    %v1462 = vand.u32 %v1461, 4294901760
    %1463 = vmatprep.mubr.f32.mxu0 %v1462
    %v1464 = vand.u32 %v155, 4294901760
    %v1465 = vsub.f32 %v155, %v1464
    %v1466 = vand.u32 %v1465, 4294901760
    %v1467 = vsub.f32 %v1465, %v1466
    %v1468 = vand.u32 %v1467, 4294901760
    %1469 = vmatmul.mubr.f32.gmra.mxu0 %v1468
    %v1470 = vpop.f32.mrf.mxu0
    %v1471 = vadd.f32 %v1359, %v1470
    %v1472 = vpop.f32.mrf.mxu0
    %1473 = vdwg.mxu0
    %1474 = vmatprep.subr.mxu0 0.0
    %v1475 = vand.u32 %v483, 4294901760
    %v1476 = vsub.f32 %v483, %v1475
    %v1477 = vand.u32 %v1476, 4294901760
    %v1478 = vsub.f32 %v1476, %v1477
    %v1479 = vand.u32 %v1478, 4294901760
    %1480 = vmatpush1.msra.mxu0 %v1479
    %1481 = vmatprep.subr.mxu0 0.0
    %v1482 = vand.u32 %v482, 4294901760
    %v1483 = vsub.f32 %v482, %v1482
    %v1484 = vand.u32 %v1483, 4294901760
    %v1485 = vsub.f32 %v1483, %v1484
    %v1486 = vand.u32 %v1485, 4294901760
    %1487 = vmatpush1.msra.mxu0 %v1486
    %1488 = vmatprep.subr.mxu0 0.0
    %v1489 = vand.u32 %v481, 4294901760
    %v1490 = vsub.f32 %v481, %v1489
    %v1491 = vand.u32 %v1490, 4294901760
    %v1492 = vsub.f32 %v1490, %v1491
    %v1493 = vand.u32 %v1492, 4294901760
    %1494 = vmatpush1.msra.mxu0 %v1493
    %1495 = vmatprep.subr.mxu0 0.0
    %v1496 = vand.u32 %v480, 4294901760
    %v1497 = vsub.f32 %v480, %v1496
    %v1498 = vand.u32 %v1497, 4294901760
    %v1499 = vsub.f32 %v1497, %v1498
    %v1500 = vand.u32 %v1499, 4294901760
    %1501 = vmatpush1.msra.mxu0 %v1500
    %1502 = vmatprep.subr.mxu0 0.0
    %v1503 = vand.u32 %v479, 4294901760
    %v1504 = vsub.f32 %v479, %v1503
    %v1505 = vand.u32 %v1504, 4294901760
    %v1506 = vsub.f32 %v1504, %v1505
    %v1507 = vand.u32 %v1506, 4294901760
    %1508 = vmatpush1.msra.mxu0 %v1507
    %1509 = vmatprep.subr.mxu0 0.0
    %v1510 = vand.u32 %v478, 4294901760
    %v1511 = vsub.f32 %v478, %v1510
    %v1512 = vand.u32 %v1511, 4294901760
    %v1513 = vsub.f32 %v1511, %v1512
    %v1514 = vand.u32 %v1513, 4294901760
    %1515 = vmatpush1.msra.mxu0 %v1514
    %1516 = vmatprep.subr.mxu0 0.0
    %v1517 = vand.u32 %v477, 4294901760
    %v1518 = vsub.f32 %v477, %v1517
    %v1519 = vand.u32 %v1518, 4294901760
    %v1520 = vsub.f32 %v1518, %v1519
    %v1521 = vand.u32 %v1520, 4294901760
    %1522 = vmatpush1.msra.mxu0 %v1521
    %1523 = vmatprep.subr.mxu0 0.0
    %v1524 = vand.u32 %v476, 4294901760
    %v1525 = vsub.f32 %v476, %v1524
    %v1526 = vand.u32 %v1525, 4294901760
    %v1527 = vsub.f32 %v1525, %v1526
    %v1528 = vand.u32 %v1527, 4294901760
    %1529 = vmatpush1.msra.mxu0 %v1528
    %1530 = vmatprep.subr.mxu0 0.0
    %v1531 = vand.u32 %v475, 4294901760
    %v1532 = vsub.f32 %v475, %v1531
    %v1533 = vand.u32 %v1532, 4294901760
    %v1534 = vsub.f32 %v1532, %v1533
    %v1535 = vand.u32 %v1534, 4294901760
    %1536 = vmatpush1.msra.mxu0 %v1535
    %1537 = vmatprep.subr.mxu0 0.0
    %v1538 = vand.u32 %v474, 4294901760
    %v1539 = vsub.f32 %v474, %v1538
    %v1540 = vand.u32 %v1539, 4294901760
    %v1541 = vsub.f32 %v1539, %v1540
    %v1542 = vand.u32 %v1541, 4294901760
    %1543 = vmatpush1.msra.mxu0 %v1542
    %1544 = vmatprep.subr.mxu0 0.0
    %v1545 = vand.u32 %v473, 4294901760
    %v1546 = vsub.f32 %v473, %v1545
    %v1547 = vand.u32 %v1546, 4294901760
    %v1548 = vsub.f32 %v1546, %v1547
    %v1549 = vand.u32 %v1548, 4294901760
    %1550 = vmatpush1.msra.mxu0 %v1549
    %1551 = vmatprep.subr.mxu0 0.0
    %v1552 = vand.u32 %v472, 4294901760
    %v1553 = vsub.f32 %v472, %v1552
    %v1554 = vand.u32 %v1553, 4294901760
    %v1555 = vsub.f32 %v1553, %v1554
    %v1556 = vand.u32 %v1555, 4294901760
    %1557 = vmatpush1.msra.mxu0 %v1556
    %1558 = vmatprep.subr.mxu0 0.0
    %v1559 = vand.u32 %v471, 4294901760
    %v1560 = vsub.f32 %v471, %v1559
    %v1561 = vand.u32 %v1560, 4294901760
    %v1562 = vsub.f32 %v1560, %v1561
    %v1563 = vand.u32 %v1562, 4294901760
    %1564 = vmatpush1.msra.mxu0 %v1563
    %1565 = vmatprep.subr.mxu0 0.0
    %v1566 = vand.u32 %v470, 4294901760
    %v1567 = vsub.f32 %v470, %v1566
    %v1568 = vand.u32 %v1567, 4294901760
    %v1569 = vsub.f32 %v1567, %v1568
    %v1570 = vand.u32 %v1569, 4294901760
    %1571 = vmatpush1.msra.mxu0 %v1570
    %1572 = vmatprep.subr.mxu0 0.0
    %v1573 = vand.u32 %v469, 4294901760
    %v1574 = vsub.f32 %v469, %v1573
    %v1575 = vand.u32 %v1574, 4294901760
    %v1576 = vsub.f32 %v1574, %v1575
    %v1577 = vand.u32 %v1576, 4294901760
    %1578 = vmatpush1.msra.mxu0 %v1577
    %1579 = vmatprep.subr.mxu0 0.0
    %v1580 = vand.u32 %v468, 4294901760
    %v1581 = vsub.f32 %v468, %v1580
    %v1582 = vand.u32 %v1581, 4294901760
    %v1583 = vsub.f32 %v1581, %v1582
    %v1584 = vand.u32 %v1583, 4294901760
    %1585 = vmatpush1.msra.mxu0 %v1584
    %1586 = vmatprep.subr.mxu0 0.0
    %v1587 = vand.u32 %v499, 4294901760
    %v1588 = vsub.f32 %v499, %v1587
    %v1589 = vand.u32 %v1588, 4294901760
    %v1590 = vsub.f32 %v1588, %v1589
    %v1591 = vand.u32 %v1590, 4294901760
    %1592 = vmatpush2.msra.mxu0 %v1591
    %1593 = vmatprep.subr.mxu0 0.0
    %v1594 = vand.u32 %v498, 4294901760
    %v1595 = vsub.f32 %v498, %v1594
    %v1596 = vand.u32 %v1595, 4294901760
    %v1597 = vsub.f32 %v1595, %v1596
    %v1598 = vand.u32 %v1597, 4294901760
    %1599 = vmatpush2.msra.mxu0 %v1598
    %1600 = vmatprep.subr.mxu0 0.0
    %v1601 = vand.u32 %v497, 4294901760
    %v1602 = vsub.f32 %v497, %v1601
    %v1603 = vand.u32 %v1602, 4294901760
    %v1604 = vsub.f32 %v1602, %v1603
    %v1605 = vand.u32 %v1604, 4294901760
    %1606 = vmatpush2.msra.mxu0 %v1605
    %1607 = vmatprep.subr.mxu0 0.0
    %v1608 = vand.u32 %v496, 4294901760
    %v1609 = vsub.f32 %v496, %v1608
    %v1610 = vand.u32 %v1609, 4294901760
    %v1611 = vsub.f32 %v1609, %v1610
    %v1612 = vand.u32 %v1611, 4294901760
    %1613 = vmatpush2.msra.mxu0 %v1612
    %1614 = vmatprep.subr.mxu0 0.0
    %v1615 = vand.u32 %v495, 4294901760
    %v1616 = vsub.f32 %v495, %v1615
    %v1617 = vand.u32 %v1616, 4294901760
    %v1618 = vsub.f32 %v1616, %v1617
    %v1619 = vand.u32 %v1618, 4294901760
    %1620 = vmatpush2.msra.mxu0 %v1619
    %1621 = vmatprep.subr.mxu0 0.0
    %v1622 = vand.u32 %v494, 4294901760
    %v1623 = vsub.f32 %v494, %v1622
    %v1624 = vand.u32 %v1623, 4294901760
    %v1625 = vsub.f32 %v1623, %v1624
    %v1626 = vand.u32 %v1625, 4294901760
    %1627 = vmatpush2.msra.mxu0 %v1626
    %1628 = vmatprep.subr.mxu0 0.0
    %v1629 = vand.u32 %v493, 4294901760
    %v1630 = vsub.f32 %v493, %v1629
    %v1631 = vand.u32 %v1630, 4294901760
    %v1632 = vsub.f32 %v1630, %v1631
    %v1633 = vand.u32 %v1632, 4294901760
    %1634 = vmatpush2.msra.mxu0 %v1633
    %1635 = vmatprep.subr.mxu0 0.0
    %v1636 = vand.u32 %v492, 4294901760
    %v1637 = vsub.f32 %v492, %v1636
    %v1638 = vand.u32 %v1637, 4294901760
    %v1639 = vsub.f32 %v1637, %v1638
    %v1640 = vand.u32 %v1639, 4294901760
    %1641 = vmatpush2.msra.mxu0 %v1640
    %1642 = vmatprep.subr.mxu0 0.0
    %v1643 = vand.u32 %v491, 4294901760
    %v1644 = vsub.f32 %v491, %v1643
    %v1645 = vand.u32 %v1644, 4294901760
    %v1646 = vsub.f32 %v1644, %v1645
    %v1647 = vand.u32 %v1646, 4294901760
    %1648 = vmatpush2.msra.mxu0 %v1647
    %1649 = vmatprep.subr.mxu0 0.0
    %v1650 = vand.u32 %v490, 4294901760
    %v1651 = vsub.f32 %v490, %v1650
    %v1652 = vand.u32 %v1651, 4294901760
    %v1653 = vsub.f32 %v1651, %v1652
    %v1654 = vand.u32 %v1653, 4294901760
    %1655 = vmatpush2.msra.mxu0 %v1654
    %1656 = vmatprep.subr.mxu0 0.0
    %v1657 = vand.u32 %v489, 4294901760
    %v1658 = vsub.f32 %v489, %v1657
    %v1659 = vand.u32 %v1658, 4294901760
    %v1660 = vsub.f32 %v1658, %v1659
    %v1661 = vand.u32 %v1660, 4294901760
    %1662 = vmatpush2.msra.mxu0 %v1661
    %1663 = vmatprep.subr.mxu0 0.0
    %v1664 = vand.u32 %v488, 4294901760
    %v1665 = vsub.f32 %v488, %v1664
    %v1666 = vand.u32 %v1665, 4294901760
    %v1667 = vsub.f32 %v1665, %v1666
    %v1668 = vand.u32 %v1667, 4294901760
    %1669 = vmatpush2.msra.mxu0 %v1668
    %1670 = vmatprep.subr.mxu0 0.0
    %v1671 = vand.u32 %v487, 4294901760
    %v1672 = vsub.f32 %v487, %v1671
    %v1673 = vand.u32 %v1672, 4294901760
    %v1674 = vsub.f32 %v1672, %v1673
    %v1675 = vand.u32 %v1674, 4294901760
    %1676 = vmatpush2.msra.mxu0 %v1675
    %1677 = vmatprep.subr.mxu0 0.0
    %v1678 = vand.u32 %v486, 4294901760
    %v1679 = vsub.f32 %v486, %v1678
    %v1680 = vand.u32 %v1679, 4294901760
    %v1681 = vsub.f32 %v1679, %v1680
    %v1682 = vand.u32 %v1681, 4294901760
    %1683 = vmatpush2.msra.mxu0 %v1682
    %1684 = vmatprep.subr.mxu0 0.0
    %v1685 = vand.u32 %v485, 4294901760
    %v1686 = vsub.f32 %v485, %v1685
    %v1687 = vand.u32 %v1686, 4294901760
    %v1688 = vsub.f32 %v1686, %v1687
    %v1689 = vand.u32 %v1688, 4294901760
    %1690 = vmatpush2.msra.mxu0 %v1689
    %1691 = vmatprep.subr.mxu0 0.0
    %v1692 = vand.u32 %v484, 4294901760
    %v1693 = vsub.f32 %v484, %v1692
    %v1694 = vand.u32 %v1693, 4294901760
    %v1695 = vsub.f32 %v1693, %v1694
    %v1696 = vand.u32 %v1695, 4294901760
    %1697 = vmatpush2.msra.mxu0 %v1696
    %v1698 = vand.u32 %v156, 4294901760
    %1699 = vmatprep.mubr.f32.mxu0 %v1698
    %v1700 = vand.u32 %v155, 4294901760
    %1701 = vmatmul.mubr.f32.gmra.mxu0 %v1700
    %v1702 = vpop.f32.mrf.mxu0
    %v1703 = vadd.f32 %v1471, %v1702
    %v1704 = vpop.f32.mrf.mxu0
    %1705 = vdwg.mxu0
    %1706 = vmatprep.subr.mxu0 0.0
    %v1707 = vand.u32 %v483, 4294901760
    %v1708 = vsub.f32 %v483, %v1707
    %1709 = vmatpush1.msra.mxu0 %v1708
    %1710 = vmatprep.subr.mxu0 0.0
    %v1711 = vand.u32 %v482, 4294901760
    %v1712 = vsub.f32 %v482, %v1711
    %1713 = vmatpush1.msra.mxu0 %v1712
    %1714 = vmatprep.subr.mxu0 0.0
    %v1715 = vand.u32 %v481, 4294901760
    %v1716 = vsub.f32 %v481, %v1715
    %1717 = vmatpush1.msra.mxu0 %v1716
    %1718 = vmatprep.subr.mxu0 0.0
    %v1719 = vand.u32 %v480, 4294901760
    %v1720 = vsub.f32 %v480, %v1719
    %1721 = vmatpush1.msra.mxu0 %v1720
    %1722 = vmatprep.subr.mxu0 0.0
    %v1723 = vand.u32 %v479, 4294901760
    %v1724 = vsub.f32 %v479, %v1723
    %1725 = vmatpush1.msra.mxu0 %v1724
    %1726 = vmatprep.subr.mxu0 0.0
    %v1727 = vand.u32 %v478, 4294901760
    %v1728 = vsub.f32 %v478, %v1727
    %1729 = vmatpush1.msra.mxu0 %v1728
    %1730 = vmatprep.subr.mxu0 0.0
    %v1731 = vand.u32 %v477, 4294901760
    %v1732 = vsub.f32 %v477, %v1731
    %1733 = vmatpush1.msra.mxu0 %v1732
    %1734 = vmatprep.subr.mxu0 0.0
    %v1735 = vand.u32 %v476, 4294901760
    %v1736 = vsub.f32 %v476, %v1735
    %1737 = vmatpush1.msra.mxu0 %v1736
    %1738 = vmatprep.subr.mxu0 0.0
    %v1739 = vand.u32 %v475, 4294901760
    %v1740 = vsub.f32 %v475, %v1739
    %1741 = vmatpush1.msra.mxu0 %v1740
    %1742 = vmatprep.subr.mxu0 0.0
    %v1743 = vand.u32 %v474, 4294901760
    %v1744 = vsub.f32 %v474, %v1743
    %1745 = vmatpush1.msra.mxu0 %v1744
    %1746 = vmatprep.subr.mxu0 0.0
    %v1747 = vand.u32 %v473, 4294901760
    %v1748 = vsub.f32 %v473, %v1747
    %1749 = vmatpush1.msra.mxu0 %v1748
    %1750 = vmatprep.subr.mxu0 0.0
    %v1751 = vand.u32 %v472, 4294901760
    %v1752 = vsub.f32 %v472, %v1751
    %1753 = vmatpush1.msra.mxu0 %v1752
    %1754 = vmatprep.subr.mxu0 0.0
    %v1755 = vand.u32 %v471, 4294901760
    %v1756 = vsub.f32 %v471, %v1755
    %1757 = vmatpush1.msra.mxu0 %v1756
    %1758 = vmatprep.subr.mxu0 0.0
    %v1759 = vand.u32 %v470, 4294901760
    %v1760 = vsub.f32 %v470, %v1759
    %1761 = vmatpush1.msra.mxu0 %v1760
    %1762 = vmatprep.subr.mxu0 0.0
    %v1763 = vand.u32 %v469, 4294901760
    %v1764 = vsub.f32 %v469, %v1763
    %1765 = vmatpush1.msra.mxu0 %v1764
    %1766 = vmatprep.subr.mxu0 0.0
    %v1767 = vand.u32 %v468, 4294901760
    %v1768 = vsub.f32 %v468, %v1767
    %1769 = vmatpush1.msra.mxu0 %v1768
    %1770 = vmatprep.subr.mxu0 0.0
    %v1771 = vand.u32 %v499, 4294901760
    %v1772 = vsub.f32 %v499, %v1771
    %1773 = vmatpush2.msra.mxu0 %v1772
    %1774 = vmatprep.subr.mxu0 0.0
    %v1775 = vand.u32 %v498, 4294901760
    %v1776 = vsub.f32 %v498, %v1775
    %1777 = vmatpush2.msra.mxu0 %v1776
    %1778 = vmatprep.subr.mxu0 0.0
    %v1779 = vand.u32 %v497, 4294901760
    %v1780 = vsub.f32 %v497, %v1779
    %1781 = vmatpush2.msra.mxu0 %v1780
    %1782 = vmatprep.subr.mxu0 0.0
    %v1783 = vand.u32 %v496, 4294901760
    %v1784 = vsub.f32 %v496, %v1783
    %1785 = vmatpush2.msra.mxu0 %v1784
    %1786 = vmatprep.subr.mxu0 0.0
    %v1787 = vand.u32 %v495, 4294901760
    %v1788 = vsub.f32 %v495, %v1787
    %1789 = vmatpush2.msra.mxu0 %v1788
    %1790 = vmatprep.subr.mxu0 0.0
    %v1791 = vand.u32 %v494, 4294901760
    %v1792 = vsub.f32 %v494, %v1791
    %1793 = vmatpush2.msra.mxu0 %v1792
    %1794 = vmatprep.subr.mxu0 0.0
    %v1795 = vand.u32 %v493, 4294901760
    %v1796 = vsub.f32 %v493, %v1795
    %1797 = vmatpush2.msra.mxu0 %v1796
    %1798 = vmatprep.subr.mxu0 0.0
    %v1799 = vand.u32 %v492, 4294901760
    %v1800 = vsub.f32 %v492, %v1799
    %1801 = vmatpush2.msra.mxu0 %v1800
    %1802 = vmatprep.subr.mxu0 0.0
    %v1803 = vand.u32 %v491, 4294901760
    %v1804 = vsub.f32 %v491, %v1803
    %1805 = vmatpush2.msra.mxu0 %v1804
    %1806 = vmatprep.subr.mxu0 0.0
    %v1807 = vand.u32 %v490, 4294901760
    %v1808 = vsub.f32 %v490, %v1807
    %1809 = vmatpush2.msra.mxu0 %v1808
    %1810 = vmatprep.subr.mxu0 0.0
    %v1811 = vand.u32 %v489, 4294901760
    %v1812 = vsub.f32 %v489, %v1811
    %1813 = vmatpush2.msra.mxu0 %v1812
    %1814 = vmatprep.subr.mxu0 0.0
    %v1815 = vand.u32 %v488, 4294901760
    %v1816 = vsub.f32 %v488, %v1815
    %1817 = vmatpush2.msra.mxu0 %v1816
    %1818 = vmatprep.subr.mxu0 0.0
    %v1819 = vand.u32 %v487, 4294901760
    %v1820 = vsub.f32 %v487, %v1819
    %1821 = vmatpush2.msra.mxu0 %v1820
    %1822 = vmatprep.subr.mxu0 0.0
    %v1823 = vand.u32 %v486, 4294901760
    %v1824 = vsub.f32 %v486, %v1823
    %1825 = vmatpush2.msra.mxu0 %v1824
    %1826 = vmatprep.subr.mxu0 0.0
    %v1827 = vand.u32 %v485, 4294901760
    %v1828 = vsub.f32 %v485, %v1827
    %1829 = vmatpush2.msra.mxu0 %v1828
    %1830 = vmatprep.subr.mxu0 0.0
    %v1831 = vand.u32 %v484, 4294901760
    %v1832 = vsub.f32 %v484, %v1831
    %1833 = vmatpush2.msra.mxu0 %v1832
    %v1834 = vand.u32 %v156, 4294901760
    %v1835 = vsub.f32 %v156, %v1834
    %1836 = vmatprep.mubr.f32.mxu0 %v1835
    %v1837 = vand.u32 %v155, 4294901760
    %v1838 = vsub.f32 %v155, %v1837
    %1839 = vmatmul.mubr.f32.gmra.mxu0 %v1838
    %v1840 = vpop.f32.mrf.mxu0
    %v1841 = vadd.f32 %v1703, %v1840
    %v1842 = vpop.f32.mrf.mxu0
    %1843 = vdwg.mxu0
    %1844 = vmatprep.subr.mxu0 0.0
    %v1845 = vand.u32 %v483, 4294901760
    %1846 = vmatpush1.msra.mxu0 %v1845
    %1847 = vmatprep.subr.mxu0 0.0
    %v1848 = vand.u32 %v482, 4294901760
    %1849 = vmatpush1.msra.mxu0 %v1848
    %1850 = vmatprep.subr.mxu0 0.0
    %v1851 = vand.u32 %v481, 4294901760
    %1852 = vmatpush1.msra.mxu0 %v1851
    %1853 = vmatprep.subr.mxu0 0.0
    %v1854 = vand.u32 %v480, 4294901760
    %1855 = vmatpush1.msra.mxu0 %v1854
    %1856 = vmatprep.subr.mxu0 0.0
    %v1857 = vand.u32 %v479, 4294901760
    %1858 = vmatpush1.msra.mxu0 %v1857
    %1859 = vmatprep.subr.mxu0 0.0
    %v1860 = vand.u32 %v478, 4294901760
    %1861 = vmatpush1.msra.mxu0 %v1860
    %1862 = vmatprep.subr.mxu0 0.0
    %v1863 = vand.u32 %v477, 4294901760
    %1864 = vmatpush1.msra.mxu0 %v1863
    %1865 = vmatprep.subr.mxu0 0.0
    %v1866 = vand.u32 %v476, 4294901760
    %1867 = vmatpush1.msra.mxu0 %v1866
    %1868 = vmatprep.subr.mxu0 0.0
    %v1869 = vand.u32 %v475, 4294901760
    %1870 = vmatpush1.msra.mxu0 %v1869
    %1871 = vmatprep.subr.mxu0 0.0
    %v1872 = vand.u32 %v474, 4294901760
    %1873 = vmatpush1.msra.mxu0 %v1872
    %1874 = vmatprep.subr.mxu0 0.0
    %v1875 = vand.u32 %v473, 4294901760
    %1876 = vmatpush1.msra.mxu0 %v1875
    %1877 = vmatprep.subr.mxu0 0.0
    %v1878 = vand.u32 %v472, 4294901760
    %1879 = vmatpush1.msra.mxu0 %v1878
    %1880 = vmatprep.subr.mxu0 0.0
    %v1881 = vand.u32 %v471, 4294901760
    %1882 = vmatpush1.msra.mxu0 %v1881
    %1883 = vmatprep.subr.mxu0 0.0
    %v1884 = vand.u32 %v470, 4294901760
    %1885 = vmatpush1.msra.mxu0 %v1884
    %1886 = vmatprep.subr.mxu0 0.0
    %v1887 = vand.u32 %v469, 4294901760
    %1888 = vmatpush1.msra.mxu0 %v1887
    %1889 = vmatprep.subr.mxu0 0.0
    %v1890 = vand.u32 %v468, 4294901760
    %1891 = vmatpush1.msra.mxu0 %v1890
    %1892 = vmatprep.subr.mxu0 0.0
    %v1893 = vand.u32 %v499, 4294901760
    %1894 = vmatpush2.msra.mxu0 %v1893
    %1895 = vmatprep.subr.mxu0 0.0
    %v1896 = vand.u32 %v498, 4294901760
    %1897 = vmatpush2.msra.mxu0 %v1896
    %1898 = vmatprep.subr.mxu0 0.0
    %v1899 = vand.u32 %v497, 4294901760
    %1900 = vmatpush2.msra.mxu0 %v1899
    %1901 = vmatprep.subr.mxu0 0.0
    %v1902 = vand.u32 %v496, 4294901760
    %1903 = vmatpush2.msra.mxu0 %v1902
    %1904 = vmatprep.subr.mxu0 0.0
    %v1905 = vand.u32 %v495, 4294901760
    %1906 = vmatpush2.msra.mxu0 %v1905
    %1907 = vmatprep.subr.mxu0 0.0
    %v1908 = vand.u32 %v494, 4294901760
    %1909 = vmatpush2.msra.mxu0 %v1908
    %1910 = vmatprep.subr.mxu0 0.0
    %v1911 = vand.u32 %v493, 4294901760
    %1912 = vmatpush2.msra.mxu0 %v1911
    %1913 = vmatprep.subr.mxu0 0.0
    %v1914 = vand.u32 %v492, 4294901760
    %1915 = vmatpush2.msra.mxu0 %v1914
    %1916 = vmatprep.subr.mxu0 0.0
    %v1917 = vand.u32 %v491, 4294901760
    %1918 = vmatpush2.msra.mxu0 %v1917
    %1919 = vmatprep.subr.mxu0 0.0
    %v1920 = vand.u32 %v490, 4294901760
    %1921 = vmatpush2.msra.mxu0 %v1920
    %1922 = vmatprep.subr.mxu0 0.0
    %v1923 = vand.u32 %v489, 4294901760
    %1924 = vmatpush2.msra.mxu0 %v1923
    %1925 = vmatprep.subr.mxu0 0.0
    %v1926 = vand.u32 %v488, 4294901760
    %1927 = vmatpush2.msra.mxu0 %v1926
    %1928 = vmatprep.subr.mxu0 0.0
    %v1929 = vand.u32 %v487, 4294901760
    %1930 = vmatpush2.msra.mxu0 %v1929
    %1931 = vmatprep.subr.mxu0 0.0
    %v1932 = vand.u32 %v486, 4294901760
    %1933 = vmatpush2.msra.mxu0 %v1932
    %1934 = vmatprep.subr.mxu0 0.0
    %v1935 = vand.u32 %v485, 4294901760
    %1936 = vmatpush2.msra.mxu0 %v1935
    %1937 = vmatprep.subr.mxu0 0.0
    %v1938 = vand.u32 %v484, 4294901760
    %1939 = vmatpush2.msra.mxu0 %v1938
    %v1940 = vand.u32 %v156, 4294901760
    %v1941 = vsub.f32 %v156, %v1940
    %v1942 = vand.u32 %v1941, 4294901760
    %1943 = vmatprep.mubr.f32.mxu0 %v1942
    %v1944 = vand.u32 %v155, 4294901760
    %v1945 = vsub.f32 %v155, %v1944
    %v1946 = vand.u32 %v1945, 4294901760
    %1947 = vmatmul.mubr.f32.gmra.mxu0 %v1946
    %v1948 = vpop.f32.mrf.mxu0
    %v1949 = vadd.f32 %v1841, %v1948
    %v1950 = vpop.f32.mrf.mxu0
    %1951 = vdwg.mxu0
    %1952 = vmatprep.subr.mxu0 0.0
    %v1953 = vand.u32 %v483, 4294901760
    %v1954 = vsub.f32 %v483, %v1953
    %v1955 = vand.u32 %v1954, 4294901760
    %1956 = vmatpush1.msra.mxu0 %v1955
    %1957 = vmatprep.subr.mxu0 0.0
    %v1958 = vand.u32 %v482, 4294901760
    %v1959 = vsub.f32 %v482, %v1958
    %v1960 = vand.u32 %v1959, 4294901760
    %1961 = vmatpush1.msra.mxu0 %v1960
    %1962 = vmatprep.subr.mxu0 0.0
    %v1963 = vand.u32 %v481, 4294901760
    %v1964 = vsub.f32 %v481, %v1963
    %v1965 = vand.u32 %v1964, 4294901760
    %1966 = vmatpush1.msra.mxu0 %v1965
    %1967 = vmatprep.subr.mxu0 0.0
    %v1968 = vand.u32 %v480, 4294901760
    %v1969 = vsub.f32 %v480, %v1968
    %v1970 = vand.u32 %v1969, 4294901760
    %1971 = vmatpush1.msra.mxu0 %v1970
    %1972 = vmatprep.subr.mxu0 0.0
    %v1973 = vand.u32 %v479, 4294901760
    %v1974 = vsub.f32 %v479, %v1973
    %v1975 = vand.u32 %v1974, 4294901760
    %1976 = vmatpush1.msra.mxu0 %v1975
    %1977 = vmatprep.subr.mxu0 0.0
    %v1978 = vand.u32 %v478, 4294901760
    %v1979 = vsub.f32 %v478, %v1978
    %v1980 = vand.u32 %v1979, 4294901760
    %1981 = vmatpush1.msra.mxu0 %v1980
    %1982 = vmatprep.subr.mxu0 0.0
    %v1983 = vand.u32 %v477, 4294901760
    %v1984 = vsub.f32 %v477, %v1983
    %v1985 = vand.u32 %v1984, 4294901760
    %1986 = vmatpush1.msra.mxu0 %v1985
    %1987 = vmatprep.subr.mxu0 0.0
    %v1988 = vand.u32 %v476, 4294901760
    %v1989 = vsub.f32 %v476, %v1988
    %v1990 = vand.u32 %v1989, 4294901760
    %1991 = vmatpush1.msra.mxu0 %v1990
    %1992 = vmatprep.subr.mxu0 0.0
    %v1993 = vand.u32 %v475, 4294901760
    %v1994 = vsub.f32 %v475, %v1993
    %v1995 = vand.u32 %v1994, 4294901760
    %1996 = vmatpush1.msra.mxu0 %v1995
    %1997 = vmatprep.subr.mxu0 0.0
    %v1998 = vand.u32 %v474, 4294901760
    %v1999 = vsub.f32 %v474, %v1998
    %v2000 = vand.u32 %v1999, 4294901760
    %2001 = vmatpush1.msra.mxu0 %v2000
    %2002 = vmatprep.subr.mxu0 0.0
    %v2003 = vand.u32 %v473, 4294901760
    %v2004 = vsub.f32 %v473, %v2003
    %v2005 = vand.u32 %v2004, 4294901760
    %2006 = vmatpush1.msra.mxu0 %v2005
    %2007 = vmatprep.subr.mxu0 0.0
    %v2008 = vand.u32 %v472, 4294901760
    %v2009 = vsub.f32 %v472, %v2008
    %v2010 = vand.u32 %v2009, 4294901760
    %2011 = vmatpush1.msra.mxu0 %v2010
    %2012 = vmatprep.subr.mxu0 0.0
    %v2013 = vand.u32 %v471, 4294901760
    %v2014 = vsub.f32 %v471, %v2013
    %v2015 = vand.u32 %v2014, 4294901760
    %2016 = vmatpush1.msra.mxu0 %v2015
    %2017 = vmatprep.subr.mxu0 0.0
    %v2018 = vand.u32 %v470, 4294901760
    %v2019 = vsub.f32 %v470, %v2018
    %v2020 = vand.u32 %v2019, 4294901760
    %2021 = vmatpush1.msra.mxu0 %v2020
    %2022 = vmatprep.subr.mxu0 0.0
    %v2023 = vand.u32 %v469, 4294901760
    %v2024 = vsub.f32 %v469, %v2023
    %v2025 = vand.u32 %v2024, 4294901760
    %2026 = vmatpush1.msra.mxu0 %v2025
    %2027 = vmatprep.subr.mxu0 0.0
    %v2028 = vand.u32 %v468, 4294901760
    %v2029 = vsub.f32 %v468, %v2028
    %v2030 = vand.u32 %v2029, 4294901760
    %2031 = vmatpush1.msra.mxu0 %v2030
    %2032 = vmatprep.subr.mxu0 0.0
    %v2033 = vand.u32 %v499, 4294901760
    %v2034 = vsub.f32 %v499, %v2033
    %v2035 = vand.u32 %v2034, 4294901760
    %2036 = vmatpush2.msra.mxu0 %v2035
    %2037 = vmatprep.subr.mxu0 0.0
    %v2038 = vand.u32 %v498, 4294901760
    %v2039 = vsub.f32 %v498, %v2038
    %v2040 = vand.u32 %v2039, 4294901760
    %2041 = vmatpush2.msra.mxu0 %v2040
    %2042 = vmatprep.subr.mxu0 0.0
    %v2043 = vand.u32 %v497, 4294901760
    %v2044 = vsub.f32 %v497, %v2043
    %v2045 = vand.u32 %v2044, 4294901760
    %2046 = vmatpush2.msra.mxu0 %v2045
    %2047 = vmatprep.subr.mxu0 0.0
    %v2048 = vand.u32 %v496, 4294901760
    %v2049 = vsub.f32 %v496, %v2048
    %v2050 = vand.u32 %v2049, 4294901760
    %2051 = vmatpush2.msra.mxu0 %v2050
    %2052 = vmatprep.subr.mxu0 0.0
    %v2053 = vand.u32 %v495, 4294901760
    %v2054 = vsub.f32 %v495, %v2053
    %v2055 = vand.u32 %v2054, 4294901760
    %2056 = vmatpush2.msra.mxu0 %v2055
    %2057 = vmatprep.subr.mxu0 0.0
    %v2058 = vand.u32 %v494, 4294901760
    %v2059 = vsub.f32 %v494, %v2058
    %v2060 = vand.u32 %v2059, 4294901760
    %2061 = vmatpush2.msra.mxu0 %v2060
    %2062 = vmatprep.subr.mxu0 0.0
    %v2063 = vand.u32 %v493, 4294901760
    %v2064 = vsub.f32 %v493, %v2063
    %v2065 = vand.u32 %v2064, 4294901760
    %2066 = vmatpush2.msra.mxu0 %v2065
    %2067 = vmatprep.subr.mxu0 0.0
    %v2068 = vand.u32 %v492, 4294901760
    %v2069 = vsub.f32 %v492, %v2068
    %v2070 = vand.u32 %v2069, 4294901760
    %2071 = vmatpush2.msra.mxu0 %v2070
    %2072 = vmatprep.subr.mxu0 0.0
    %v2073 = vand.u32 %v491, 4294901760
    %v2074 = vsub.f32 %v491, %v2073
    %v2075 = vand.u32 %v2074, 4294901760
    %2076 = vmatpush2.msra.mxu0 %v2075
    %2077 = vmatprep.subr.mxu0 0.0
    %v2078 = vand.u32 %v490, 4294901760
    %v2079 = vsub.f32 %v490, %v2078
    %v2080 = vand.u32 %v2079, 4294901760
    %2081 = vmatpush2.msra.mxu0 %v2080
    %2082 = vmatprep.subr.mxu0 0.0
    %v2083 = vand.u32 %v489, 4294901760
    %v2084 = vsub.f32 %v489, %v2083
    %v2085 = vand.u32 %v2084, 4294901760
    %2086 = vmatpush2.msra.mxu0 %v2085
    %2087 = vmatprep.subr.mxu0 0.0
    %v2088 = vand.u32 %v488, 4294901760
    %v2089 = vsub.f32 %v488, %v2088
    %v2090 = vand.u32 %v2089, 4294901760
    %2091 = vmatpush2.msra.mxu0 %v2090
    %2092 = vmatprep.subr.mxu0 0.0
    %v2093 = vand.u32 %v487, 4294901760
    %v2094 = vsub.f32 %v487, %v2093
    %v2095 = vand.u32 %v2094, 4294901760
    %2096 = vmatpush2.msra.mxu0 %v2095
    %2097 = vmatprep.subr.mxu0 0.0
    %v2098 = vand.u32 %v486, 4294901760
    %v2099 = vsub.f32 %v486, %v2098
    %v2100 = vand.u32 %v2099, 4294901760
    %2101 = vmatpush2.msra.mxu0 %v2100
    %2102 = vmatprep.subr.mxu0 0.0
    %v2103 = vand.u32 %v485, 4294901760
    %v2104 = vsub.f32 %v485, %v2103
    %v2105 = vand.u32 %v2104, 4294901760
    %2106 = vmatpush2.msra.mxu0 %v2105
    %2107 = vmatprep.subr.mxu0 0.0
    %v2108 = vand.u32 %v484, 4294901760
    %v2109 = vsub.f32 %v484, %v2108
    %v2110 = vand.u32 %v2109, 4294901760
    %2111 = vmatpush2.msra.mxu0 %v2110
    %v2112 = vand.u32 %v156, 4294901760
    %2113 = vmatprep.mubr.f32.mxu0 %v2112
    %v2114 = vand.u32 %v155, 4294901760
    %2115 = vmatmul.mubr.f32.gmra.mxu0 %v2114
    %v2116 = vpop.f32.mrf.mxu0
    %v2117 = vadd.f32 %v1949, %v2116
    %v2118 = vpop.f32.mrf.mxu0
    %2119 = vdwg.mxu0
    %2120 = vmatprep.subr.mxu0 0.0
    %v2121 = vand.u32 %v483, 4294901760
    %2122 = vmatpush1.msra.mxu0 %v2121
    %2123 = vmatprep.subr.mxu0 0.0
    %v2124 = vand.u32 %v482, 4294901760
    %2125 = vmatpush1.msra.mxu0 %v2124
    %2126 = vmatprep.subr.mxu0 0.0
    %v2127 = vand.u32 %v481, 4294901760
    %2128 = vmatpush1.msra.mxu0 %v2127
    %2129 = vmatprep.subr.mxu0 0.0
    %v2130 = vand.u32 %v480, 4294901760
    %2131 = vmatpush1.msra.mxu0 %v2130
    %2132 = vmatprep.subr.mxu0 0.0
    %v2133 = vand.u32 %v479, 4294901760
    %2134 = vmatpush1.msra.mxu0 %v2133
    %2135 = vmatprep.subr.mxu0 0.0
    %v2136 = vand.u32 %v478, 4294901760
    %2137 = vmatpush1.msra.mxu0 %v2136
    %2138 = vmatprep.subr.mxu0 0.0
    %v2139 = vand.u32 %v477, 4294901760
    %2140 = vmatpush1.msra.mxu0 %v2139
    %2141 = vmatprep.subr.mxu0 0.0
    %v2142 = vand.u32 %v476, 4294901760
    %2143 = vmatpush1.msra.mxu0 %v2142
    %2144 = vmatprep.subr.mxu0 0.0
    %v2145 = vand.u32 %v475, 4294901760
    %2146 = vmatpush1.msra.mxu0 %v2145
    %2147 = vmatprep.subr.mxu0 0.0
    %v2148 = vand.u32 %v474, 4294901760
    %2149 = vmatpush1.msra.mxu0 %v2148
    %2150 = vmatprep.subr.mxu0 0.0
    %v2151 = vand.u32 %v473, 4294901760
    %2152 = vmatpush1.msra.mxu0 %v2151
    %2153 = vmatprep.subr.mxu0 0.0
    %v2154 = vand.u32 %v472, 4294901760
    %2155 = vmatpush1.msra.mxu0 %v2154
    %2156 = vmatprep.subr.mxu0 0.0
    %v2157 = vand.u32 %v471, 4294901760
    %2158 = vmatpush1.msra.mxu0 %v2157
    %2159 = vmatprep.subr.mxu0 0.0
    %v2160 = vand.u32 %v470, 4294901760
    %2161 = vmatpush1.msra.mxu0 %v2160
    %2162 = vmatprep.subr.mxu0 0.0
    %v2163 = vand.u32 %v469, 4294901760
    %2164 = vmatpush1.msra.mxu0 %v2163
    %2165 = vmatprep.subr.mxu0 0.0
    %v2166 = vand.u32 %v468, 4294901760
    %2167 = vmatpush1.msra.mxu0 %v2166
    %2168 = vmatprep.subr.mxu0 0.0
    %v2169 = vand.u32 %v499, 4294901760
    %2170 = vmatpush2.msra.mxu0 %v2169
    %2171 = vmatprep.subr.mxu0 0.0
    %v2172 = vand.u32 %v498, 4294901760
    %2173 = vmatpush2.msra.mxu0 %v2172
    %2174 = vmatprep.subr.mxu0 0.0
    %v2175 = vand.u32 %v497, 4294901760
    %2176 = vmatpush2.msra.mxu0 %v2175
    %2177 = vmatprep.subr.mxu0 0.0
    %v2178 = vand.u32 %v496, 4294901760
    %2179 = vmatpush2.msra.mxu0 %v2178
    %2180 = vmatprep.subr.mxu0 0.0
    %v2181 = vand.u32 %v495, 4294901760
    %2182 = vmatpush2.msra.mxu0 %v2181
    %2183 = vmatprep.subr.mxu0 0.0
    %v2184 = vand.u32 %v494, 4294901760
    %2185 = vmatpush2.msra.mxu0 %v2184
    %2186 = vmatprep.subr.mxu0 0.0
    %v2187 = vand.u32 %v493, 4294901760
    %2188 = vmatpush2.msra.mxu0 %v2187
    %2189 = vmatprep.subr.mxu0 0.0
    %v2190 = vand.u32 %v492, 4294901760
    %2191 = vmatpush2.msra.mxu0 %v2190
    %2192 = vmatprep.subr.mxu0 0.0
    %v2193 = vand.u32 %v491, 4294901760
    %2194 = vmatpush2.msra.mxu0 %v2193
    %2195 = vmatprep.subr.mxu0 0.0
    %v2196 = vand.u32 %v490, 4294901760
    %2197 = vmatpush2.msra.mxu0 %v2196
    %2198 = vmatprep.subr.mxu0 0.0
    %v2199 = vand.u32 %v489, 4294901760
    %2200 = vmatpush2.msra.mxu0 %v2199
    %2201 = vmatprep.subr.mxu0 0.0
    %v2202 = vand.u32 %v488, 4294901760
    %2203 = vmatpush2.msra.mxu0 %v2202
    %2204 = vmatprep.subr.mxu0 0.0
    %v2205 = vand.u32 %v487, 4294901760
    %2206 = vmatpush2.msra.mxu0 %v2205
    %2207 = vmatprep.subr.mxu0 0.0
    %v2208 = vand.u32 %v486, 4294901760
    %2209 = vmatpush2.msra.mxu0 %v2208
    %2210 = vmatprep.subr.mxu0 0.0
    %v2211 = vand.u32 %v485, 4294901760
    %2212 = vmatpush2.msra.mxu0 %v2211
    %2213 = vmatprep.subr.mxu0 0.0
    %v2214 = vand.u32 %v484, 4294901760
    %2215 = vmatpush2.msra.mxu0 %v2214
    %v2216 = vand.u32 %v156, 4294901760
    %2217 = vmatprep.mubr.f32.mxu0 %v2216
    %v2218 = vand.u32 %v155, 4294901760
    %2219 = vmatmul.mubr.f32.gmra.mxu0 %v2218
    %v2220 = vpop.f32.mrf.mxu0
    %v2221 = vadd.f32 %v2117, %v2220
    %v2222 = vpop.f32.mrf.mxu0
    %2223 = vdwg.mxu0
    %2224 = vmatprep.subr.mxu0 0.0
    %v2225 = vand.u32 %v451, 4294901760
    %2226 = vmatpush1.msra.mxu0 %v2225
    %2227 = vmatprep.subr.mxu0 0.0
    %v2228 = vand.u32 %v450, 4294901760
    %2229 = vmatpush1.msra.mxu0 %v2228
    %2230 = vmatprep.subr.mxu0 0.0
    %v2231 = vand.u32 %v449, 4294901760
    %2232 = vmatpush1.msra.mxu0 %v2231
    %2233 = vmatprep.subr.mxu0 0.0
    %v2234 = vand.u32 %v448, 4294901760
    %2235 = vmatpush1.msra.mxu0 %v2234
    %2236 = vmatprep.subr.mxu0 0.0
    %v2237 = vand.u32 %v447, 4294901760
    %2238 = vmatpush1.msra.mxu0 %v2237
    %2239 = vmatprep.subr.mxu0 0.0
    %v2240 = vand.u32 %v446, 4294901760
    %2241 = vmatpush1.msra.mxu0 %v2240
    %2242 = vmatprep.subr.mxu0 0.0
    %v2243 = vand.u32 %v445, 4294901760
    %2244 = vmatpush1.msra.mxu0 %v2243
    %2245 = vmatprep.subr.mxu0 0.0
    %v2246 = vand.u32 %v444, 4294901760
    %2247 = vmatpush1.msra.mxu0 %v2246
    %2248 = vmatprep.subr.mxu0 0.0
    %v2249 = vand.u32 %v443, 4294901760
    %2250 = vmatpush1.msra.mxu0 %v2249
    %2251 = vmatprep.subr.mxu0 0.0
    %v2252 = vand.u32 %v442, 4294901760
    %2253 = vmatpush1.msra.mxu0 %v2252
    %2254 = vmatprep.subr.mxu0 0.0
    %v2255 = vand.u32 %v441, 4294901760
    %2256 = vmatpush1.msra.mxu0 %v2255
    %2257 = vmatprep.subr.mxu0 0.0
    %v2258 = vand.u32 %v440, 4294901760
    %2259 = vmatpush1.msra.mxu0 %v2258
    %2260 = vmatprep.subr.mxu0 0.0
    %v2261 = vand.u32 %v439, 4294901760
    %2262 = vmatpush1.msra.mxu0 %v2261
    %2263 = vmatprep.subr.mxu0 0.0
    %v2264 = vand.u32 %v438, 4294901760
    %2265 = vmatpush1.msra.mxu0 %v2264
    %2266 = vmatprep.subr.mxu0 0.0
    %v2267 = vand.u32 %v437, 4294901760
    %2268 = vmatpush1.msra.mxu0 %v2267
    %2269 = vmatprep.subr.mxu0 0.0
    %v2270 = vand.u32 %v436, 4294901760
    %2271 = vmatpush1.msra.mxu0 %v2270
    %2272 = vmatprep.subr.mxu0 0.0
    %v2273 = vand.u32 %v467, 4294901760
    %2274 = vmatpush2.msra.mxu0 %v2273
    %2275 = vmatprep.subr.mxu0 0.0
    %v2276 = vand.u32 %v466, 4294901760
    %2277 = vmatpush2.msra.mxu0 %v2276
    %2278 = vmatprep.subr.mxu0 0.0
    %v2279 = vand.u32 %v465, 4294901760
    %2280 = vmatpush2.msra.mxu0 %v2279
    %2281 = vmatprep.subr.mxu0 0.0
    %v2282 = vand.u32 %v464, 4294901760
    %2283 = vmatpush2.msra.mxu0 %v2282
    %2284 = vmatprep.subr.mxu0 0.0
    %v2285 = vand.u32 %v463, 4294901760
    %2286 = vmatpush2.msra.mxu0 %v2285
    %2287 = vmatprep.subr.mxu0 0.0
    %v2288 = vand.u32 %v462, 4294901760
    %2289 = vmatpush2.msra.mxu0 %v2288
    %2290 = vmatprep.subr.mxu0 0.0
    %v2291 = vand.u32 %v461, 4294901760
    %2292 = vmatpush2.msra.mxu0 %v2291
    %2293 = vmatprep.subr.mxu0 0.0
    %v2294 = vand.u32 %v460, 4294901760
    %2295 = vmatpush2.msra.mxu0 %v2294
    %2296 = vmatprep.subr.mxu0 0.0
    %v2297 = vand.u32 %v459, 4294901760
    %2298 = vmatpush2.msra.mxu0 %v2297
    %2299 = vmatprep.subr.mxu0 0.0
    %v2300 = vand.u32 %v458, 4294901760
    %2301 = vmatpush2.msra.mxu0 %v2300
    %2302 = vmatprep.subr.mxu0 0.0
    %v2303 = vand.u32 %v457, 4294901760
    %2304 = vmatpush2.msra.mxu0 %v2303
    %2305 = vmatprep.subr.mxu0 0.0
    %v2306 = vand.u32 %v456, 4294901760
    %2307 = vmatpush2.msra.mxu0 %v2306
    %2308 = vmatprep.subr.mxu0 0.0
    %v2309 = vand.u32 %v455, 4294901760
    %2310 = vmatpush2.msra.mxu0 %v2309
    %2311 = vmatprep.subr.mxu0 0.0
    %v2312 = vand.u32 %v454, 4294901760
    %2313 = vmatpush2.msra.mxu0 %v2312
    %2314 = vmatprep.subr.mxu0 0.0
    %v2315 = vand.u32 %v453, 4294901760
    %2316 = vmatpush2.msra.mxu0 %v2315
    %2317 = vmatprep.subr.mxu0 0.0
    %v2318 = vand.u32 %v452, 4294901760
    %2319 = vmatpush2.msra.mxu0 %v2318
    %v2320 = vand.u32 %v237, 4294901760
    %v2321 = vsub.f32 %v237, %v2320
    %v2322 = vand.u32 %v2321, 4294901760
    %v2323 = vsub.f32 %v2321, %v2322
    %v2324 = vand.u32 %v2323, 4294901760
    %2325 = vmatprep.mubr.f32.mxu0 %v2324
    %v2326 = vand.u32 %v236, 4294901760
    %v2327 = vsub.f32 %v236, %v2326
    %v2328 = vand.u32 %v2327, 4294901760
    %v2329 = vsub.f32 %v2327, %v2328
    %v2330 = vand.u32 %v2329, 4294901760
    %2331 = vmatmul.mubr.f32.gmra.mxu0 %v2330
    %v2332 = vpop.f32.mrf.mxu0
    %v2333 = vadd.f32 0.0, %v2332
    %v2334 = vpop.f32.mrf.mxu0
    %2335 = vdwg.mxu0
    %2336 = vmatprep.subr.mxu0 0.0
    %v2337 = vand.u32 %v451, 4294901760
    %v2338 = vsub.f32 %v451, %v2337
    %v2339 = vand.u32 %v2338, 4294901760
    %v2340 = vsub.f32 %v2338, %v2339
    %v2341 = vand.u32 %v2340, 4294901760
    %2342 = vmatpush1.msra.mxu0 %v2341
    %2343 = vmatprep.subr.mxu0 0.0
    %v2344 = vand.u32 %v450, 4294901760
    %v2345 = vsub.f32 %v450, %v2344
    %v2346 = vand.u32 %v2345, 4294901760
    %v2347 = vsub.f32 %v2345, %v2346
    %v2348 = vand.u32 %v2347, 4294901760
    %2349 = vmatpush1.msra.mxu0 %v2348
    %2350 = vmatprep.subr.mxu0 0.0
    %v2351 = vand.u32 %v449, 4294901760
    %v2352 = vsub.f32 %v449, %v2351
    %v2353 = vand.u32 %v2352, 4294901760
    %v2354 = vsub.f32 %v2352, %v2353
    %v2355 = vand.u32 %v2354, 4294901760
    %2356 = vmatpush1.msra.mxu0 %v2355
    %2357 = vmatprep.subr.mxu0 0.0
    %v2358 = vand.u32 %v448, 4294901760
    %v2359 = vsub.f32 %v448, %v2358
    %v2360 = vand.u32 %v2359, 4294901760
    %v2361 = vsub.f32 %v2359, %v2360
    %v2362 = vand.u32 %v2361, 4294901760
    %2363 = vmatpush1.msra.mxu0 %v2362
    %2364 = vmatprep.subr.mxu0 0.0
    %v2365 = vand.u32 %v447, 4294901760
    %v2366 = vsub.f32 %v447, %v2365
    %v2367 = vand.u32 %v2366, 4294901760
    %v2368 = vsub.f32 %v2366, %v2367
    %v2369 = vand.u32 %v2368, 4294901760
    %2370 = vmatpush1.msra.mxu0 %v2369
    %2371 = vmatprep.subr.mxu0 0.0
    %v2372 = vand.u32 %v446, 4294901760
    %v2373 = vsub.f32 %v446, %v2372
    %v2374 = vand.u32 %v2373, 4294901760
    %v2375 = vsub.f32 %v2373, %v2374
    %v2376 = vand.u32 %v2375, 4294901760
    %2377 = vmatpush1.msra.mxu0 %v2376
    %2378 = vmatprep.subr.mxu0 0.0
    %v2379 = vand.u32 %v445, 4294901760
    %v2380 = vsub.f32 %v445, %v2379
    %v2381 = vand.u32 %v2380, 4294901760
    %v2382 = vsub.f32 %v2380, %v2381
    %v2383 = vand.u32 %v2382, 4294901760
    %2384 = vmatpush1.msra.mxu0 %v2383
    %2385 = vmatprep.subr.mxu0 0.0
    %v2386 = vand.u32 %v444, 4294901760
    %v2387 = vsub.f32 %v444, %v2386
    %v2388 = vand.u32 %v2387, 4294901760
    %v2389 = vsub.f32 %v2387, %v2388
    %v2390 = vand.u32 %v2389, 4294901760
    %2391 = vmatpush1.msra.mxu0 %v2390
    %2392 = vmatprep.subr.mxu0 0.0
    %v2393 = vand.u32 %v443, 4294901760
    %v2394 = vsub.f32 %v443, %v2393
    %v2395 = vand.u32 %v2394, 4294901760
    %v2396 = vsub.f32 %v2394, %v2395
    %v2397 = vand.u32 %v2396, 4294901760
    %2398 = vmatpush1.msra.mxu0 %v2397
    %2399 = vmatprep.subr.mxu0 0.0
    %v2400 = vand.u32 %v442, 4294901760
    %v2401 = vsub.f32 %v442, %v2400
    %v2402 = vand.u32 %v2401, 4294901760
    %v2403 = vsub.f32 %v2401, %v2402
    %v2404 = vand.u32 %v2403, 4294901760
    %2405 = vmatpush1.msra.mxu0 %v2404
    %2406 = vmatprep.subr.mxu0 0.0
    %v2407 = vand.u32 %v441, 4294901760
    %v2408 = vsub.f32 %v441, %v2407
    %v2409 = vand.u32 %v2408, 4294901760
    %v2410 = vsub.f32 %v2408, %v2409
    %v2411 = vand.u32 %v2410, 4294901760
    %2412 = vmatpush1.msra.mxu0 %v2411
    %2413 = vmatprep.subr.mxu0 0.0
    %v2414 = vand.u32 %v440, 4294901760
    %v2415 = vsub.f32 %v440, %v2414
    %v2416 = vand.u32 %v2415, 4294901760
    %v2417 = vsub.f32 %v2415, %v2416
    %v2418 = vand.u32 %v2417, 4294901760
    %2419 = vmatpush1.msra.mxu0 %v2418
    %2420 = vmatprep.subr.mxu0 0.0
    %v2421 = vand.u32 %v439, 4294901760
    %v2422 = vsub.f32 %v439, %v2421
    %v2423 = vand.u32 %v2422, 4294901760
    %v2424 = vsub.f32 %v2422, %v2423
    %v2425 = vand.u32 %v2424, 4294901760
    %2426 = vmatpush1.msra.mxu0 %v2425
    %2427 = vmatprep.subr.mxu0 0.0
    %v2428 = vand.u32 %v438, 4294901760
    %v2429 = vsub.f32 %v438, %v2428
    %v2430 = vand.u32 %v2429, 4294901760
    %v2431 = vsub.f32 %v2429, %v2430
    %v2432 = vand.u32 %v2431, 4294901760
    %2433 = vmatpush1.msra.mxu0 %v2432
    %2434 = vmatprep.subr.mxu0 0.0
    %v2435 = vand.u32 %v437, 4294901760
    %v2436 = vsub.f32 %v437, %v2435
    %v2437 = vand.u32 %v2436, 4294901760
    %v2438 = vsub.f32 %v2436, %v2437
    %v2439 = vand.u32 %v2438, 4294901760
    %2440 = vmatpush1.msra.mxu0 %v2439
    %2441 = vmatprep.subr.mxu0 0.0
    %v2442 = vand.u32 %v436, 4294901760
    %v2443 = vsub.f32 %v436, %v2442
    %v2444 = vand.u32 %v2443, 4294901760
    %v2445 = vsub.f32 %v2443, %v2444
    %v2446 = vand.u32 %v2445, 4294901760
    %2447 = vmatpush1.msra.mxu0 %v2446
    %2448 = vmatprep.subr.mxu0 0.0
    %v2449 = vand.u32 %v467, 4294901760
    %v2450 = vsub.f32 %v467, %v2449
    %v2451 = vand.u32 %v2450, 4294901760
    %v2452 = vsub.f32 %v2450, %v2451
    %v2453 = vand.u32 %v2452, 4294901760
    %2454 = vmatpush2.msra.mxu0 %v2453
    %2455 = vmatprep.subr.mxu0 0.0
    %v2456 = vand.u32 %v466, 4294901760
    %v2457 = vsub.f32 %v466, %v2456
    %v2458 = vand.u32 %v2457, 4294901760
    %v2459 = vsub.f32 %v2457, %v2458
    %v2460 = vand.u32 %v2459, 4294901760
    %2461 = vmatpush2.msra.mxu0 %v2460
    %2462 = vmatprep.subr.mxu0 0.0
    %v2463 = vand.u32 %v465, 4294901760
    %v2464 = vsub.f32 %v465, %v2463
    %v2465 = vand.u32 %v2464, 4294901760
    %v2466 = vsub.f32 %v2464, %v2465
    %v2467 = vand.u32 %v2466, 4294901760
    %2468 = vmatpush2.msra.mxu0 %v2467
    %2469 = vmatprep.subr.mxu0 0.0
    %v2470 = vand.u32 %v464, 4294901760
    %v2471 = vsub.f32 %v464, %v2470
    %v2472 = vand.u32 %v2471, 4294901760
    %v2473 = vsub.f32 %v2471, %v2472
    %v2474 = vand.u32 %v2473, 4294901760
    %2475 = vmatpush2.msra.mxu0 %v2474
    %2476 = vmatprep.subr.mxu0 0.0
    %v2477 = vand.u32 %v463, 4294901760
    %v2478 = vsub.f32 %v463, %v2477
    %v2479 = vand.u32 %v2478, 4294901760
    %v2480 = vsub.f32 %v2478, %v2479
    %v2481 = vand.u32 %v2480, 4294901760
    %2482 = vmatpush2.msra.mxu0 %v2481
    %2483 = vmatprep.subr.mxu0 0.0
    %v2484 = vand.u32 %v462, 4294901760
    %v2485 = vsub.f32 %v462, %v2484
    %v2486 = vand.u32 %v2485, 4294901760
    %v2487 = vsub.f32 %v2485, %v2486
    %v2488 = vand.u32 %v2487, 4294901760
    %2489 = vmatpush2.msra.mxu0 %v2488
    %2490 = vmatprep.subr.mxu0 0.0
    %v2491 = vand.u32 %v461, 4294901760
    %v2492 = vsub.f32 %v461, %v2491
    %v2493 = vand.u32 %v2492, 4294901760
    %v2494 = vsub.f32 %v2492, %v2493
    %v2495 = vand.u32 %v2494, 4294901760
    %2496 = vmatpush2.msra.mxu0 %v2495
    %2497 = vmatprep.subr.mxu0 0.0
    %v2498 = vand.u32 %v460, 4294901760
    %v2499 = vsub.f32 %v460, %v2498
    %v2500 = vand.u32 %v2499, 4294901760
    %v2501 = vsub.f32 %v2499, %v2500
    %v2502 = vand.u32 %v2501, 4294901760
    %2503 = vmatpush2.msra.mxu0 %v2502
    %2504 = vmatprep.subr.mxu0 0.0
    %v2505 = vand.u32 %v459, 4294901760
    %v2506 = vsub.f32 %v459, %v2505
    %v2507 = vand.u32 %v2506, 4294901760
    %v2508 = vsub.f32 %v2506, %v2507
    %v2509 = vand.u32 %v2508, 4294901760
    %2510 = vmatpush2.msra.mxu0 %v2509
    %2511 = vmatprep.subr.mxu0 0.0
    %v2512 = vand.u32 %v458, 4294901760
    %v2513 = vsub.f32 %v458, %v2512
    %v2514 = vand.u32 %v2513, 4294901760
    %v2515 = vsub.f32 %v2513, %v2514
    %v2516 = vand.u32 %v2515, 4294901760
    %2517 = vmatpush2.msra.mxu0 %v2516
    %2518 = vmatprep.subr.mxu0 0.0
    %v2519 = vand.u32 %v457, 4294901760
    %v2520 = vsub.f32 %v457, %v2519
    %v2521 = vand.u32 %v2520, 4294901760
    %v2522 = vsub.f32 %v2520, %v2521
    %v2523 = vand.u32 %v2522, 4294901760
    %2524 = vmatpush2.msra.mxu0 %v2523
    %2525 = vmatprep.subr.mxu0 0.0
    %v2526 = vand.u32 %v456, 4294901760
    %v2527 = vsub.f32 %v456, %v2526
    %v2528 = vand.u32 %v2527, 4294901760
    %v2529 = vsub.f32 %v2527, %v2528
    %v2530 = vand.u32 %v2529, 4294901760
    %2531 = vmatpush2.msra.mxu0 %v2530
    %2532 = vmatprep.subr.mxu0 0.0
    %v2533 = vand.u32 %v455, 4294901760
    %v2534 = vsub.f32 %v455, %v2533
    %v2535 = vand.u32 %v2534, 4294901760
    %v2536 = vsub.f32 %v2534, %v2535
    %v2537 = vand.u32 %v2536, 4294901760
    %2538 = vmatpush2.msra.mxu0 %v2537
    %2539 = vmatprep.subr.mxu0 0.0
    %v2540 = vand.u32 %v454, 4294901760
    %v2541 = vsub.f32 %v454, %v2540
    %v2542 = vand.u32 %v2541, 4294901760
    %v2543 = vsub.f32 %v2541, %v2542
    %v2544 = vand.u32 %v2543, 4294901760
    %2545 = vmatpush2.msra.mxu0 %v2544
    %2546 = vmatprep.subr.mxu0 0.0
    %v2547 = vand.u32 %v453, 4294901760
    %v2548 = vsub.f32 %v453, %v2547
    %v2549 = vand.u32 %v2548, 4294901760
    %v2550 = vsub.f32 %v2548, %v2549
    %v2551 = vand.u32 %v2550, 4294901760
    %2552 = vmatpush2.msra.mxu0 %v2551
    %2553 = vmatprep.subr.mxu0 0.0
    %v2554 = vand.u32 %v452, 4294901760
    %v2555 = vsub.f32 %v452, %v2554
    %v2556 = vand.u32 %v2555, 4294901760
    %v2557 = vsub.f32 %v2555, %v2556
    %v2558 = vand.u32 %v2557, 4294901760
    %2559 = vmatpush2.msra.mxu0 %v2558
    %v2560 = vand.u32 %v237, 4294901760
    %2561 = vmatprep.mubr.f32.mxu0 %v2560
    %v2562 = vand.u32 %v236, 4294901760
    %2563 = vmatmul.mubr.f32.gmra.mxu0 %v2562
    %v2564 = vpop.f32.mrf.mxu0
    %v2565 = vadd.f32 %v2333, %v2564
    %v2566 = vpop.f32.mrf.mxu0
    %2567 = vdwg.mxu0
    %2568 = vmatprep.subr.mxu0 0.0
    %v2569 = vand.u32 %v451, 4294901760
    %v2570 = vsub.f32 %v451, %v2569
    %2571 = vmatpush1.msra.mxu0 %v2570
    %2572 = vmatprep.subr.mxu0 0.0
    %v2573 = vand.u32 %v450, 4294901760
    %v2574 = vsub.f32 %v450, %v2573
    %2575 = vmatpush1.msra.mxu0 %v2574
    %2576 = vmatprep.subr.mxu0 0.0
    %v2577 = vand.u32 %v449, 4294901760
    %v2578 = vsub.f32 %v449, %v2577
    %2579 = vmatpush1.msra.mxu0 %v2578
    %2580 = vmatprep.subr.mxu0 0.0
    %v2581 = vand.u32 %v448, 4294901760
    %v2582 = vsub.f32 %v448, %v2581
    %2583 = vmatpush1.msra.mxu0 %v2582
    %2584 = vmatprep.subr.mxu0 0.0
    %v2585 = vand.u32 %v447, 4294901760
    %v2586 = vsub.f32 %v447, %v2585
    %2587 = vmatpush1.msra.mxu0 %v2586
    %2588 = vmatprep.subr.mxu0 0.0
    %v2589 = vand.u32 %v446, 4294901760
    %v2590 = vsub.f32 %v446, %v2589
    %2591 = vmatpush1.msra.mxu0 %v2590
    %2592 = vmatprep.subr.mxu0 0.0
    %v2593 = vand.u32 %v445, 4294901760
    %v2594 = vsub.f32 %v445, %v2593
    %2595 = vmatpush1.msra.mxu0 %v2594
    %2596 = vmatprep.subr.mxu0 0.0
    %v2597 = vand.u32 %v444, 4294901760
    %v2598 = vsub.f32 %v444, %v2597
    %2599 = vmatpush1.msra.mxu0 %v2598
    %2600 = vmatprep.subr.mxu0 0.0
    %v2601 = vand.u32 %v443, 4294901760
    %v2602 = vsub.f32 %v443, %v2601
    %2603 = vmatpush1.msra.mxu0 %v2602
    %2604 = vmatprep.subr.mxu0 0.0
    %v2605 = vand.u32 %v442, 4294901760
    %v2606 = vsub.f32 %v442, %v2605
    %2607 = vmatpush1.msra.mxu0 %v2606
    %2608 = vmatprep.subr.mxu0 0.0
    %v2609 = vand.u32 %v441, 4294901760
    %v2610 = vsub.f32 %v441, %v2609
    %2611 = vmatpush1.msra.mxu0 %v2610
    %2612 = vmatprep.subr.mxu0 0.0
    %v2613 = vand.u32 %v440, 4294901760
    %v2614 = vsub.f32 %v440, %v2613
    %2615 = vmatpush1.msra.mxu0 %v2614
    %2616 = vmatprep.subr.mxu0 0.0
    %v2617 = vand.u32 %v439, 4294901760
    %v2618 = vsub.f32 %v439, %v2617
    %2619 = vmatpush1.msra.mxu0 %v2618
    %2620 = vmatprep.subr.mxu0 0.0
    %v2621 = vand.u32 %v438, 4294901760
    %v2622 = vsub.f32 %v438, %v2621
    %2623 = vmatpush1.msra.mxu0 %v2622
    %2624 = vmatprep.subr.mxu0 0.0
    %v2625 = vand.u32 %v437, 4294901760
    %v2626 = vsub.f32 %v437, %v2625
    %2627 = vmatpush1.msra.mxu0 %v2626
    %2628 = vmatprep.subr.mxu0 0.0
    %v2629 = vand.u32 %v436, 4294901760
    %v2630 = vsub.f32 %v436, %v2629
    %2631 = vmatpush1.msra.mxu0 %v2630
    %2632 = vmatprep.subr.mxu0 0.0
    %v2633 = vand.u32 %v467, 4294901760
    %v2634 = vsub.f32 %v467, %v2633
    %2635 = vmatpush2.msra.mxu0 %v2634
    %2636 = vmatprep.subr.mxu0 0.0
    %v2637 = vand.u32 %v466, 4294901760
    %v2638 = vsub.f32 %v466, %v2637
    %2639 = vmatpush2.msra.mxu0 %v2638
    %2640 = vmatprep.subr.mxu0 0.0
    %v2641 = vand.u32 %v465, 4294901760
    %v2642 = vsub.f32 %v465, %v2641
    %2643 = vmatpush2.msra.mxu0 %v2642
    %2644 = vmatprep.subr.mxu0 0.0
    %v2645 = vand.u32 %v464, 4294901760
    %v2646 = vsub.f32 %v464, %v2645
    %2647 = vmatpush2.msra.mxu0 %v2646
    %2648 = vmatprep.subr.mxu0 0.0
    %v2649 = vand.u32 %v463, 4294901760
    %v2650 = vsub.f32 %v463, %v2649
    %2651 = vmatpush2.msra.mxu0 %v2650
    %2652 = vmatprep.subr.mxu0 0.0
    %v2653 = vand.u32 %v462, 4294901760
    %v2654 = vsub.f32 %v462, %v2653
    %2655 = vmatpush2.msra.mxu0 %v2654
    %2656 = vmatprep.subr.mxu0 0.0
    %v2657 = vand.u32 %v461, 4294901760
    %v2658 = vsub.f32 %v461, %v2657
    %2659 = vmatpush2.msra.mxu0 %v2658
    %2660 = vmatprep.subr.mxu0 0.0
    %v2661 = vand.u32 %v460, 4294901760
    %v2662 = vsub.f32 %v460, %v2661
    %2663 = vmatpush2.msra.mxu0 %v2662
    %2664 = vmatprep.subr.mxu0 0.0
    %v2665 = vand.u32 %v459, 4294901760
    %v2666 = vsub.f32 %v459, %v2665
    %2667 = vmatpush2.msra.mxu0 %v2666
    %2668 = vmatprep.subr.mxu0 0.0
    %v2669 = vand.u32 %v458, 4294901760
    %v2670 = vsub.f32 %v458, %v2669
    %2671 = vmatpush2.msra.mxu0 %v2670
    %2672 = vmatprep.subr.mxu0 0.0
    %v2673 = vand.u32 %v457, 4294901760
    %v2674 = vsub.f32 %v457, %v2673
    %2675 = vmatpush2.msra.mxu0 %v2674
    %2676 = vmatprep.subr.mxu0 0.0
    %v2677 = vand.u32 %v456, 4294901760
    %v2678 = vsub.f32 %v456, %v2677
    %2679 = vmatpush2.msra.mxu0 %v2678
    %2680 = vmatprep.subr.mxu0 0.0
    %v2681 = vand.u32 %v455, 4294901760
    %v2682 = vsub.f32 %v455, %v2681
    %2683 = vmatpush2.msra.mxu0 %v2682
    %2684 = vmatprep.subr.mxu0 0.0
    %v2685 = vand.u32 %v454, 4294901760
    %v2686 = vsub.f32 %v454, %v2685
    %2687 = vmatpush2.msra.mxu0 %v2686
    %2688 = vmatprep.subr.mxu0 0.0
    %v2689 = vand.u32 %v453, 4294901760
    %v2690 = vsub.f32 %v453, %v2689
    %2691 = vmatpush2.msra.mxu0 %v2690
    %2692 = vmatprep.subr.mxu0 0.0
    %v2693 = vand.u32 %v452, 4294901760
    %v2694 = vsub.f32 %v452, %v2693
    %2695 = vmatpush2.msra.mxu0 %v2694
    %v2696 = vand.u32 %v237, 4294901760
    %v2697 = vsub.f32 %v237, %v2696
    %2698 = vmatprep.mubr.f32.mxu0 %v2697
    %v2699 = vand.u32 %v236, 4294901760
    %v2700 = vsub.f32 %v236, %v2699
    %2701 = vmatmul.mubr.f32.gmra.mxu0 %v2700
    %v2702 = vpop.f32.mrf.mxu0
    %v2703 = vadd.f32 %v2565, %v2702
    %v2704 = vpop.f32.mrf.mxu0
    %2705 = vdwg.mxu0
    %2706 = vmatprep.subr.mxu0 0.0
    %v2707 = vand.u32 %v451, 4294901760
    %2708 = vmatpush1.msra.mxu0 %v2707
    %2709 = vmatprep.subr.mxu0 0.0
    %v2710 = vand.u32 %v450, 4294901760
    %2711 = vmatpush1.msra.mxu0 %v2710
    %2712 = vmatprep.subr.mxu0 0.0
    %v2713 = vand.u32 %v449, 4294901760
    %2714 = vmatpush1.msra.mxu0 %v2713
    %2715 = vmatprep.subr.mxu0 0.0
    %v2716 = vand.u32 %v448, 4294901760
    %2717 = vmatpush1.msra.mxu0 %v2716
    %2718 = vmatprep.subr.mxu0 0.0
    %v2719 = vand.u32 %v447, 4294901760
    %2720 = vmatpush1.msra.mxu0 %v2719
    %2721 = vmatprep.subr.mxu0 0.0
    %v2722 = vand.u32 %v446, 4294901760
    %2723 = vmatpush1.msra.mxu0 %v2722
    %2724 = vmatprep.subr.mxu0 0.0
    %v2725 = vand.u32 %v445, 4294901760
    %2726 = vmatpush1.msra.mxu0 %v2725
    %2727 = vmatprep.subr.mxu0 0.0
    %v2728 = vand.u32 %v444, 4294901760
    %2729 = vmatpush1.msra.mxu0 %v2728
    %2730 = vmatprep.subr.mxu0 0.0
    %v2731 = vand.u32 %v443, 4294901760
    %2732 = vmatpush1.msra.mxu0 %v2731
    %2733 = vmatprep.subr.mxu0 0.0
    %v2734 = vand.u32 %v442, 4294901760
    %2735 = vmatpush1.msra.mxu0 %v2734
    %2736 = vmatprep.subr.mxu0 0.0
    %v2737 = vand.u32 %v441, 4294901760
    %2738 = vmatpush1.msra.mxu0 %v2737
    %2739 = vmatprep.subr.mxu0 0.0
    %v2740 = vand.u32 %v440, 4294901760
    %2741 = vmatpush1.msra.mxu0 %v2740
    %2742 = vmatprep.subr.mxu0 0.0
    %v2743 = vand.u32 %v439, 4294901760
    %2744 = vmatpush1.msra.mxu0 %v2743
    %2745 = vmatprep.subr.mxu0 0.0
    %v2746 = vand.u32 %v438, 4294901760
    %2747 = vmatpush1.msra.mxu0 %v2746
    %2748 = vmatprep.subr.mxu0 0.0
    %v2749 = vand.u32 %v437, 4294901760
    %2750 = vmatpush1.msra.mxu0 %v2749
    %2751 = vmatprep.subr.mxu0 0.0
    %v2752 = vand.u32 %v436, 4294901760
    %2753 = vmatpush1.msra.mxu0 %v2752
    %2754 = vmatprep.subr.mxu0 0.0
    %v2755 = vand.u32 %v467, 4294901760
    %2756 = vmatpush2.msra.mxu0 %v2755
    %2757 = vmatprep.subr.mxu0 0.0
    %v2758 = vand.u32 %v466, 4294901760
    %2759 = vmatpush2.msra.mxu0 %v2758
    %2760 = vmatprep.subr.mxu0 0.0
    %v2761 = vand.u32 %v465, 4294901760
    %2762 = vmatpush2.msra.mxu0 %v2761
    %2763 = vmatprep.subr.mxu0 0.0
    %v2764 = vand.u32 %v464, 4294901760
    %2765 = vmatpush2.msra.mxu0 %v2764
    %2766 = vmatprep.subr.mxu0 0.0
    %v2767 = vand.u32 %v463, 4294901760
    %2768 = vmatpush2.msra.mxu0 %v2767
    %2769 = vmatprep.subr.mxu0 0.0
    %v2770 = vand.u32 %v462, 4294901760
    %2771 = vmatpush2.msra.mxu0 %v2770
    %2772 = vmatprep.subr.mxu0 0.0
    %v2773 = vand.u32 %v461, 4294901760
    %2774 = vmatpush2.msra.mxu0 %v2773
    %2775 = vmatprep.subr.mxu0 0.0
    %v2776 = vand.u32 %v460, 4294901760
    %2777 = vmatpush2.msra.mxu0 %v2776
    %2778 = vmatprep.subr.mxu0 0.0
    %v2779 = vand.u32 %v459, 4294901760
    %2780 = vmatpush2.msra.mxu0 %v2779
    %2781 = vmatprep.subr.mxu0 0.0
    %v2782 = vand.u32 %v458, 4294901760
    %2783 = vmatpush2.msra.mxu0 %v2782
    %2784 = vmatprep.subr.mxu0 0.0
    %v2785 = vand.u32 %v457, 4294901760
    %2786 = vmatpush2.msra.mxu0 %v2785
    %2787 = vmatprep.subr.mxu0 0.0
    %v2788 = vand.u32 %v456, 4294901760
    %2789 = vmatpush2.msra.mxu0 %v2788
    %2790 = vmatprep.subr.mxu0 0.0
    %v2791 = vand.u32 %v455, 4294901760
    %2792 = vmatpush2.msra.mxu0 %v2791
    %2793 = vmatprep.subr.mxu0 0.0
    %v2794 = vand.u32 %v454, 4294901760
    %2795 = vmatpush2.msra.mxu0 %v2794
    %2796 = vmatprep.subr.mxu0 0.0
    %v2797 = vand.u32 %v453, 4294901760
    %2798 = vmatpush2.msra.mxu0 %v2797
    %2799 = vmatprep.subr.mxu0 0.0
    %v2800 = vand.u32 %v452, 4294901760
    %2801 = vmatpush2.msra.mxu0 %v2800
    %v2802 = vand.u32 %v237, 4294901760
    %v2803 = vsub.f32 %v237, %v2802
    %v2804 = vand.u32 %v2803, 4294901760
    %2805 = vmatprep.mubr.f32.mxu0 %v2804
    %v2806 = vand.u32 %v236, 4294901760
    %v2807 = vsub.f32 %v236, %v2806
    %v2808 = vand.u32 %v2807, 4294901760
    %2809 = vmatmul.mubr.f32.gmra.mxu0 %v2808
    %v2810 = vpop.f32.mrf.mxu0
    %v2811 = vadd.f32 %v2703, %v2810
    %v2812 = vpop.f32.mrf.mxu0
    %2813 = vdwg.mxu0
    %2814 = vmatprep.subr.mxu0 0.0
    %v2815 = vand.u32 %v451, 4294901760
    %v2816 = vsub.f32 %v451, %v2815
    %v2817 = vand.u32 %v2816, 4294901760
    %2818 = vmatpush1.msra.mxu0 %v2817
    %2819 = vmatprep.subr.mxu0 0.0
    %v2820 = vand.u32 %v450, 4294901760
    %v2821 = vsub.f32 %v450, %v2820
    %v2822 = vand.u32 %v2821, 4294901760
    %2823 = vmatpush1.msra.mxu0 %v2822
    %2824 = vmatprep.subr.mxu0 0.0
    %v2825 = vand.u32 %v449, 4294901760
    %v2826 = vsub.f32 %v449, %v2825
    %v2827 = vand.u32 %v2826, 4294901760
    %2828 = vmatpush1.msra.mxu0 %v2827
    %2829 = vmatprep.subr.mxu0 0.0
    %v2830 = vand.u32 %v448, 4294901760
    %v2831 = vsub.f32 %v448, %v2830
    %v2832 = vand.u32 %v2831, 4294901760
    %2833 = vmatpush1.msra.mxu0 %v2832
    %2834 = vmatprep.subr.mxu0 0.0
    %v2835 = vand.u32 %v447, 4294901760
    %v2836 = vsub.f32 %v447, %v2835
    %v2837 = vand.u32 %v2836, 4294901760
    %2838 = vmatpush1.msra.mxu0 %v2837
    %2839 = vmatprep.subr.mxu0 0.0
    %v2840 = vand.u32 %v446, 4294901760
    %v2841 = vsub.f32 %v446, %v2840
    %v2842 = vand.u32 %v2841, 4294901760
    %2843 = vmatpush1.msra.mxu0 %v2842
    %2844 = vmatprep.subr.mxu0 0.0
    %v2845 = vand.u32 %v445, 4294901760
    %v2846 = vsub.f32 %v445, %v2845
    %v2847 = vand.u32 %v2846, 4294901760
    %2848 = vmatpush1.msra.mxu0 %v2847
    %2849 = vmatprep.subr.mxu0 0.0
    %v2850 = vand.u32 %v444, 4294901760
    %v2851 = vsub.f32 %v444, %v2850
    %v2852 = vand.u32 %v2851, 4294901760
    %2853 = vmatpush1.msra.mxu0 %v2852
    %2854 = vmatprep.subr.mxu0 0.0
    %v2855 = vand.u32 %v443, 4294901760
    %v2856 = vsub.f32 %v443, %v2855
    %v2857 = vand.u32 %v2856, 4294901760
    %2858 = vmatpush1.msra.mxu0 %v2857
    %2859 = vmatprep.subr.mxu0 0.0
    %v2860 = vand.u32 %v442, 4294901760
    %v2861 = vsub.f32 %v442, %v2860
    %v2862 = vand.u32 %v2861, 4294901760
    %2863 = vmatpush1.msra.mxu0 %v2862
    %2864 = vmatprep.subr.mxu0 0.0
    %v2865 = vand.u32 %v441, 4294901760
    %v2866 = vsub.f32 %v441, %v2865
    %v2867 = vand.u32 %v2866, 4294901760
    %2868 = vmatpush1.msra.mxu0 %v2867
    %2869 = vmatprep.subr.mxu0 0.0
    %v2870 = vand.u32 %v440, 4294901760
    %v2871 = vsub.f32 %v440, %v2870
    %v2872 = vand.u32 %v2871, 4294901760
    %2873 = vmatpush1.msra.mxu0 %v2872
    %2874 = vmatprep.subr.mxu0 0.0
    %v2875 = vand.u32 %v439, 4294901760
    %v2876 = vsub.f32 %v439, %v2875
    %v2877 = vand.u32 %v2876, 4294901760
    %2878 = vmatpush1.msra.mxu0 %v2877
    %2879 = vmatprep.subr.mxu0 0.0
    %v2880 = vand.u32 %v438, 4294901760
    %v2881 = vsub.f32 %v438, %v2880
    %v2882 = vand.u32 %v2881, 4294901760
    %2883 = vmatpush1.msra.mxu0 %v2882
    %2884 = vmatprep.subr.mxu0 0.0
    %v2885 = vand.u32 %v437, 4294901760
    %v2886 = vsub.f32 %v437, %v2885
    %v2887 = vand.u32 %v2886, 4294901760
    %2888 = vmatpush1.msra.mxu0 %v2887
    %2889 = vmatprep.subr.mxu0 0.0
    %v2890 = vand.u32 %v436, 4294901760
    %v2891 = vsub.f32 %v436, %v2890
    %v2892 = vand.u32 %v2891, 4294901760
    %2893 = vmatpush1.msra.mxu0 %v2892
    %2894 = vmatprep.subr.mxu0 0.0
    %v2895 = vand.u32 %v467, 4294901760
    %v2896 = vsub.f32 %v467, %v2895
    %v2897 = vand.u32 %v2896, 4294901760
    %2898 = vmatpush2.msra.mxu0 %v2897
    %2899 = vmatprep.subr.mxu0 0.0
    %v2900 = vand.u32 %v466, 4294901760
    %v2901 = vsub.f32 %v466, %v2900
    %v2902 = vand.u32 %v2901, 4294901760
    %2903 = vmatpush2.msra.mxu0 %v2902
    %2904 = vmatprep.subr.mxu0 0.0
    %v2905 = vand.u32 %v465, 4294901760
    %v2906 = vsub.f32 %v465, %v2905
    %v2907 = vand.u32 %v2906, 4294901760
    %2908 = vmatpush2.msra.mxu0 %v2907
    %2909 = vmatprep.subr.mxu0 0.0
    %v2910 = vand.u32 %v464, 4294901760
    %v2911 = vsub.f32 %v464, %v2910
    %v2912 = vand.u32 %v2911, 4294901760
    %2913 = vmatpush2.msra.mxu0 %v2912
    %2914 = vmatprep.subr.mxu0 0.0
    %v2915 = vand.u32 %v463, 4294901760
    %v2916 = vsub.f32 %v463, %v2915
    %v2917 = vand.u32 %v2916, 4294901760
    %2918 = vmatpush2.msra.mxu0 %v2917
    %2919 = vmatprep.subr.mxu0 0.0
    %v2920 = vand.u32 %v462, 4294901760
    %v2921 = vsub.f32 %v462, %v2920
    %v2922 = vand.u32 %v2921, 4294901760
    %2923 = vmatpush2.msra.mxu0 %v2922
    %2924 = vmatprep.subr.mxu0 0.0
    %v2925 = vand.u32 %v461, 4294901760
    %v2926 = vsub.f32 %v461, %v2925
    %v2927 = vand.u32 %v2926, 4294901760
    %2928 = vmatpush2.msra.mxu0 %v2927
    %2929 = vmatprep.subr.mxu0 0.0
    %v2930 = vand.u32 %v460, 4294901760
    %v2931 = vsub.f32 %v460, %v2930
    %v2932 = vand.u32 %v2931, 4294901760
    %2933 = vmatpush2.msra.mxu0 %v2932
    %2934 = vmatprep.subr.mxu0 0.0
    %v2935 = vand.u32 %v459, 4294901760
    %v2936 = vsub.f32 %v459, %v2935
    %v2937 = vand.u32 %v2936, 4294901760
    %2938 = vmatpush2.msra.mxu0 %v2937
    %2939 = vmatprep.subr.mxu0 0.0
    %v2940 = vand.u32 %v458, 4294901760
    %v2941 = vsub.f32 %v458, %v2940
    %v2942 = vand.u32 %v2941, 4294901760
    %2943 = vmatpush2.msra.mxu0 %v2942
    %2944 = vmatprep.subr.mxu0 0.0
    %v2945 = vand.u32 %v457, 4294901760
    %v2946 = vsub.f32 %v457, %v2945
    %v2947 = vand.u32 %v2946, 4294901760
    %2948 = vmatpush2.msra.mxu0 %v2947
    %2949 = vmatprep.subr.mxu0 0.0
    %v2950 = vand.u32 %v456, 4294901760
    %v2951 = vsub.f32 %v456, %v2950
    %v2952 = vand.u32 %v2951, 4294901760
    %2953 = vmatpush2.msra.mxu0 %v2952
    %2954 = vmatprep.subr.mxu0 0.0
    %v2955 = vand.u32 %v455, 4294901760
    %v2956 = vsub.f32 %v455, %v2955
    %v2957 = vand.u32 %v2956, 4294901760
    %2958 = vmatpush2.msra.mxu0 %v2957
    %2959 = vmatprep.subr.mxu0 0.0
    %v2960 = vand.u32 %v454, 4294901760
    %v2961 = vsub.f32 %v454, %v2960
    %v2962 = vand.u32 %v2961, 4294901760
    %2963 = vmatpush2.msra.mxu0 %v2962
    %2964 = vmatprep.subr.mxu0 0.0
    %v2965 = vand.u32 %v453, 4294901760
    %v2966 = vsub.f32 %v453, %v2965
    %v2967 = vand.u32 %v2966, 4294901760
    %2968 = vmatpush2.msra.mxu0 %v2967
    %2969 = vmatprep.subr.mxu0 0.0
    %v2970 = vand.u32 %v452, 4294901760
    %v2971 = vsub.f32 %v452, %v2970
    %v2972 = vand.u32 %v2971, 4294901760
    %2973 = vmatpush2.msra.mxu0 %v2972
    %v2974 = vand.u32 %v237, 4294901760
    %2975 = vmatprep.mubr.f32.mxu0 %v2974
    %v2976 = vand.u32 %v236, 4294901760
    %2977 = vmatmul.mubr.f32.gmra.mxu0 %v2976
    %v2978 = vpop.f32.mrf.mxu0
    %v2979 = vadd.f32 %v2811, %v2978
    %v2980 = vpop.f32.mrf.mxu0
    %2981 = vdwg.mxu0
    %2982 = vmatprep.subr.mxu0 0.0
    %v2983 = vand.u32 %v451, 4294901760
    %2984 = vmatpush1.msra.mxu0 %v2983
    %2985 = vmatprep.subr.mxu0 0.0
    %v2986 = vand.u32 %v450, 4294901760
    %2987 = vmatpush1.msra.mxu0 %v2986
    %2988 = vmatprep.subr.mxu0 0.0
    %v2989 = vand.u32 %v449, 4294901760
    %2990 = vmatpush1.msra.mxu0 %v2989
    %2991 = vmatprep.subr.mxu0 0.0
    %v2992 = vand.u32 %v448, 4294901760
    %2993 = vmatpush1.msra.mxu0 %v2992
    %2994 = vmatprep.subr.mxu0 0.0
    %v2995 = vand.u32 %v447, 4294901760
    %2996 = vmatpush1.msra.mxu0 %v2995
    %2997 = vmatprep.subr.mxu0 0.0
    %v2998 = vand.u32 %v446, 4294901760
    %2999 = vmatpush1.msra.mxu0 %v2998
    %3000 = vmatprep.subr.mxu0 0.0
    %v3001 = vand.u32 %v445, 4294901760
    %3002 = vmatpush1.msra.mxu0 %v3001
    %3003 = vmatprep.subr.mxu0 0.0
    %v3004 = vand.u32 %v444, 4294901760
    %3005 = vmatpush1.msra.mxu0 %v3004
    %3006 = vmatprep.subr.mxu0 0.0
    %v3007 = vand.u32 %v443, 4294901760
    %3008 = vmatpush1.msra.mxu0 %v3007
    %3009 = vmatprep.subr.mxu0 0.0
    %v3010 = vand.u32 %v442, 4294901760
    %3011 = vmatpush1.msra.mxu0 %v3010
    %3012 = vmatprep.subr.mxu0 0.0
    %v3013 = vand.u32 %v441, 4294901760
    %3014 = vmatpush1.msra.mxu0 %v3013
    %3015 = vmatprep.subr.mxu0 0.0
    %v3016 = vand.u32 %v440, 4294901760
    %3017 = vmatpush1.msra.mxu0 %v3016
    %3018 = vmatprep.subr.mxu0 0.0
    %v3019 = vand.u32 %v439, 4294901760
    %3020 = vmatpush1.msra.mxu0 %v3019
    %3021 = vmatprep.subr.mxu0 0.0
    %v3022 = vand.u32 %v438, 4294901760
    %3023 = vmatpush1.msra.mxu0 %v3022
    %3024 = vmatprep.subr.mxu0 0.0
    %v3025 = vand.u32 %v437, 4294901760
    %3026 = vmatpush1.msra.mxu0 %v3025
    %3027 = vmatprep.subr.mxu0 0.0
    %v3028 = vand.u32 %v436, 4294901760
    %3029 = vmatpush1.msra.mxu0 %v3028
    %3030 = vmatprep.subr.mxu0 0.0
    %v3031 = vand.u32 %v467, 4294901760
    %3032 = vmatpush2.msra.mxu0 %v3031
    %3033 = vmatprep.subr.mxu0 0.0
    %v3034 = vand.u32 %v466, 4294901760
    %3035 = vmatpush2.msra.mxu0 %v3034
    %3036 = vmatprep.subr.mxu0 0.0
    %v3037 = vand.u32 %v465, 4294901760
    %3038 = vmatpush2.msra.mxu0 %v3037
    %3039 = vmatprep.subr.mxu0 0.0
    %v3040 = vand.u32 %v464, 4294901760
    %3041 = vmatpush2.msra.mxu0 %v3040
    %3042 = vmatprep.subr.mxu0 0.0
    %v3043 = vand.u32 %v463, 4294901760
    %3044 = vmatpush2.msra.mxu0 %v3043
    %3045 = vmatprep.subr.mxu0 0.0
    %v3046 = vand.u32 %v462, 4294901760
    %3047 = vmatpush2.msra.mxu0 %v3046
    %3048 = vmatprep.subr.mxu0 0.0
    %v3049 = vand.u32 %v461, 4294901760
    %3050 = vmatpush2.msra.mxu0 %v3049
    %3051 = vmatprep.subr.mxu0 0.0
    %v3052 = vand.u32 %v460, 4294901760
    %3053 = vmatpush2.msra.mxu0 %v3052
    %3054 = vmatprep.subr.mxu0 0.0
    %v3055 = vand.u32 %v459, 4294901760
    %3056 = vmatpush2.msra.mxu0 %v3055
    %3057 = vmatprep.subr.mxu0 0.0
    %v3058 = vand.u32 %v458, 4294901760
    %3059 = vmatpush2.msra.mxu0 %v3058
    %3060 = vmatprep.subr.mxu0 0.0
    %v3061 = vand.u32 %v457, 4294901760
    %3062 = vmatpush2.msra.mxu0 %v3061
    %3063 = vmatprep.subr.mxu0 0.0
    %v3064 = vand.u32 %v456, 4294901760
    %3065 = vmatpush2.msra.mxu0 %v3064
    %3066 = vmatprep.subr.mxu0 0.0
    %v3067 = vand.u32 %v455, 4294901760
    %3068 = vmatpush2.msra.mxu0 %v3067
    %3069 = vmatprep.subr.mxu0 0.0
    %v3070 = vand.u32 %v454, 4294901760
    %3071 = vmatpush2.msra.mxu0 %v3070
    %3072 = vmatprep.subr.mxu0 0.0
    %v3073 = vand.u32 %v453, 4294901760
    %3074 = vmatpush2.msra.mxu0 %v3073
    %3075 = vmatprep.subr.mxu0 0.0
    %v3076 = vand.u32 %v452, 4294901760
    %3077 = vmatpush2.msra.mxu0 %v3076
    %v3078 = vand.u32 %v237, 4294901760
    %3079 = vmatprep.mubr.f32.mxu0 %v3078
    %v3080 = vand.u32 %v236, 4294901760
    %3081 = vmatmul.mubr.f32.gmra.mxu0 %v3080
    %v3082 = vpop.f32.mrf.mxu0
    %v3083 = vadd.f32 %v2979, %v3082
    %v3084 = vpop.f32.mrf.mxu0
    %3085 = vdwg.mxu0
    %3086 = vmatprep.subr.mxu0 0.0
    %v3087 = vand.u32 %v483, 4294901760
    %3088 = vmatpush1.msra.mxu0 %v3087
    %3089 = vmatprep.subr.mxu0 0.0
    %v3090 = vand.u32 %v482, 4294901760
    %3091 = vmatpush1.msra.mxu0 %v3090
    %3092 = vmatprep.subr.mxu0 0.0
    %v3093 = vand.u32 %v481, 4294901760
    %3094 = vmatpush1.msra.mxu0 %v3093
    %3095 = vmatprep.subr.mxu0 0.0
    %v3096 = vand.u32 %v480, 4294901760
    %3097 = vmatpush1.msra.mxu0 %v3096
    %3098 = vmatprep.subr.mxu0 0.0
    %v3099 = vand.u32 %v479, 4294901760
    %3100 = vmatpush1.msra.mxu0 %v3099
    %3101 = vmatprep.subr.mxu0 0.0
    %v3102 = vand.u32 %v478, 4294901760
    %3103 = vmatpush1.msra.mxu0 %v3102
    %3104 = vmatprep.subr.mxu0 0.0
    %v3105 = vand.u32 %v477, 4294901760
    %3106 = vmatpush1.msra.mxu0 %v3105
    %3107 = vmatprep.subr.mxu0 0.0
    %v3108 = vand.u32 %v476, 4294901760
    %3109 = vmatpush1.msra.mxu0 %v3108
    %3110 = vmatprep.subr.mxu0 0.0
    %v3111 = vand.u32 %v475, 4294901760
    %3112 = vmatpush1.msra.mxu0 %v3111
    %3113 = vmatprep.subr.mxu0 0.0
    %v3114 = vand.u32 %v474, 4294901760
    %3115 = vmatpush1.msra.mxu0 %v3114
    %3116 = vmatprep.subr.mxu0 0.0
    %v3117 = vand.u32 %v473, 4294901760
    %3118 = vmatpush1.msra.mxu0 %v3117
    %3119 = vmatprep.subr.mxu0 0.0
    %v3120 = vand.u32 %v472, 4294901760
    %3121 = vmatpush1.msra.mxu0 %v3120
    %3122 = vmatprep.subr.mxu0 0.0
    %v3123 = vand.u32 %v471, 4294901760
    %3124 = vmatpush1.msra.mxu0 %v3123
    %3125 = vmatprep.subr.mxu0 0.0
    %v3126 = vand.u32 %v470, 4294901760
    %3127 = vmatpush1.msra.mxu0 %v3126
    %3128 = vmatprep.subr.mxu0 0.0
    %v3129 = vand.u32 %v469, 4294901760
    %3130 = vmatpush1.msra.mxu0 %v3129
    %3131 = vmatprep.subr.mxu0 0.0
    %v3132 = vand.u32 %v468, 4294901760
    %3133 = vmatpush1.msra.mxu0 %v3132
    %3134 = vmatprep.subr.mxu0 0.0
    %v3135 = vand.u32 %v499, 4294901760
    %3136 = vmatpush2.msra.mxu0 %v3135
    %3137 = vmatprep.subr.mxu0 0.0
    %v3138 = vand.u32 %v498, 4294901760
    %3139 = vmatpush2.msra.mxu0 %v3138
    %3140 = vmatprep.subr.mxu0 0.0
    %v3141 = vand.u32 %v497, 4294901760
    %3142 = vmatpush2.msra.mxu0 %v3141
    %3143 = vmatprep.subr.mxu0 0.0
    %v3144 = vand.u32 %v496, 4294901760
    %3145 = vmatpush2.msra.mxu0 %v3144
    %3146 = vmatprep.subr.mxu0 0.0
    %v3147 = vand.u32 %v495, 4294901760
    %3148 = vmatpush2.msra.mxu0 %v3147
    %3149 = vmatprep.subr.mxu0 0.0
    %v3150 = vand.u32 %v494, 4294901760
    %3151 = vmatpush2.msra.mxu0 %v3150
    %3152 = vmatprep.subr.mxu0 0.0
    %v3153 = vand.u32 %v493, 4294901760
    %3154 = vmatpush2.msra.mxu0 %v3153
    %3155 = vmatprep.subr.mxu0 0.0
    %v3156 = vand.u32 %v492, 4294901760
    %3157 = vmatpush2.msra.mxu0 %v3156
    %3158 = vmatprep.subr.mxu0 0.0
    %v3159 = vand.u32 %v491, 4294901760
    %3160 = vmatpush2.msra.mxu0 %v3159
    %3161 = vmatprep.subr.mxu0 0.0
    %v3162 = vand.u32 %v490, 4294901760
    %3163 = vmatpush2.msra.mxu0 %v3162
    %3164 = vmatprep.subr.mxu0 0.0
    %v3165 = vand.u32 %v489, 4294901760
    %3166 = vmatpush2.msra.mxu0 %v3165
    %3167 = vmatprep.subr.mxu0 0.0
    %v3168 = vand.u32 %v488, 4294901760
    %3169 = vmatpush2.msra.mxu0 %v3168
    %3170 = vmatprep.subr.mxu0 0.0
    %v3171 = vand.u32 %v487, 4294901760
    %3172 = vmatpush2.msra.mxu0 %v3171
    %3173 = vmatprep.subr.mxu0 0.0
    %v3174 = vand.u32 %v486, 4294901760
    %3175 = vmatpush2.msra.mxu0 %v3174
    %3176 = vmatprep.subr.mxu0 0.0
    %v3177 = vand.u32 %v485, 4294901760
    %3178 = vmatpush2.msra.mxu0 %v3177
    %3179 = vmatprep.subr.mxu0 0.0
    %v3180 = vand.u32 %v484, 4294901760
    %3181 = vmatpush2.msra.mxu0 %v3180
    %v3182 = vand.u32 %v239, 4294901760
    %v3183 = vsub.f32 %v239, %v3182
    %v3184 = vand.u32 %v3183, 4294901760
    %v3185 = vsub.f32 %v3183, %v3184
    %v3186 = vand.u32 %v3185, 4294901760
    %3187 = vmatprep.mubr.f32.mxu0 %v3186
    %v3188 = vand.u32 %v238, 4294901760
    %v3189 = vsub.f32 %v238, %v3188
    %v3190 = vand.u32 %v3189, 4294901760
    %v3191 = vsub.f32 %v3189, %v3190
    %v3192 = vand.u32 %v3191, 4294901760
    %3193 = vmatmul.mubr.f32.gmra.mxu0 %v3192
    %v3194 = vpop.f32.mrf.mxu0
    %v3195 = vadd.f32 %v3083, %v3194
    %v3196 = vpop.f32.mrf.mxu0
    %3197 = vdwg.mxu0
    %3198 = vmatprep.subr.mxu0 0.0
    %v3199 = vand.u32 %v483, 4294901760
    %v3200 = vsub.f32 %v483, %v3199
    %v3201 = vand.u32 %v3200, 4294901760
    %v3202 = vsub.f32 %v3200, %v3201
    %v3203 = vand.u32 %v3202, 4294901760
    %3204 = vmatpush1.msra.mxu0 %v3203
    %3205 = vmatprep.subr.mxu0 0.0
    %v3206 = vand.u32 %v482, 4294901760
    %v3207 = vsub.f32 %v482, %v3206
    %v3208 = vand.u32 %v3207, 4294901760
    %v3209 = vsub.f32 %v3207, %v3208
    %v3210 = vand.u32 %v3209, 4294901760
    %3211 = vmatpush1.msra.mxu0 %v3210
    %3212 = vmatprep.subr.mxu0 0.0
    %v3213 = vand.u32 %v481, 4294901760
    %v3214 = vsub.f32 %v481, %v3213
    %v3215 = vand.u32 %v3214, 4294901760
    %v3216 = vsub.f32 %v3214, %v3215
    %v3217 = vand.u32 %v3216, 4294901760
    %3218 = vmatpush1.msra.mxu0 %v3217
    %3219 = vmatprep.subr.mxu0 0.0
    %v3220 = vand.u32 %v480, 4294901760
    %v3221 = vsub.f32 %v480, %v3220
    %v3222 = vand.u32 %v3221, 4294901760
    %v3223 = vsub.f32 %v3221, %v3222
    %v3224 = vand.u32 %v3223, 4294901760
    %3225 = vmatpush1.msra.mxu0 %v3224
    %3226 = vmatprep.subr.mxu0 0.0
    %v3227 = vand.u32 %v479, 4294901760
    %v3228 = vsub.f32 %v479, %v3227
    %v3229 = vand.u32 %v3228, 4294901760
    %v3230 = vsub.f32 %v3228, %v3229
    %v3231 = vand.u32 %v3230, 4294901760
    %3232 = vmatpush1.msra.mxu0 %v3231
    %3233 = vmatprep.subr.mxu0 0.0
    %v3234 = vand.u32 %v478, 4294901760
    %v3235 = vsub.f32 %v478, %v3234
    %v3236 = vand.u32 %v3235, 4294901760
    %v3237 = vsub.f32 %v3235, %v3236
    %v3238 = vand.u32 %v3237, 4294901760
    %3239 = vmatpush1.msra.mxu0 %v3238
    %3240 = vmatprep.subr.mxu0 0.0
    %v3241 = vand.u32 %v477, 4294901760
    %v3242 = vsub.f32 %v477, %v3241
    %v3243 = vand.u32 %v3242, 4294901760
    %v3244 = vsub.f32 %v3242, %v3243
    %v3245 = vand.u32 %v3244, 4294901760
    %3246 = vmatpush1.msra.mxu0 %v3245
    %3247 = vmatprep.subr.mxu0 0.0
    %v3248 = vand.u32 %v476, 4294901760
    %v3249 = vsub.f32 %v476, %v3248
    %v3250 = vand.u32 %v3249, 4294901760
    %v3251 = vsub.f32 %v3249, %v3250
    %v3252 = vand.u32 %v3251, 4294901760
    %3253 = vmatpush1.msra.mxu0 %v3252
    %3254 = vmatprep.subr.mxu0 0.0
    %v3255 = vand.u32 %v475, 4294901760
    %v3256 = vsub.f32 %v475, %v3255
    %v3257 = vand.u32 %v3256, 4294901760
    %v3258 = vsub.f32 %v3256, %v3257
    %v3259 = vand.u32 %v3258, 4294901760
    %3260 = vmatpush1.msra.mxu0 %v3259
    %3261 = vmatprep.subr.mxu0 0.0
    %v3262 = vand.u32 %v474, 4294901760
    %v3263 = vsub.f32 %v474, %v3262
    %v3264 = vand.u32 %v3263, 4294901760
    %v3265 = vsub.f32 %v3263, %v3264
    %v3266 = vand.u32 %v3265, 4294901760
    %3267 = vmatpush1.msra.mxu0 %v3266
    %3268 = vmatprep.subr.mxu0 0.0
    %v3269 = vand.u32 %v473, 4294901760
    %v3270 = vsub.f32 %v473, %v3269
    %v3271 = vand.u32 %v3270, 4294901760
    %v3272 = vsub.f32 %v3270, %v3271
    %v3273 = vand.u32 %v3272, 4294901760
    %3274 = vmatpush1.msra.mxu0 %v3273
    %3275 = vmatprep.subr.mxu0 0.0
    %v3276 = vand.u32 %v472, 4294901760
    %v3277 = vsub.f32 %v472, %v3276
    %v3278 = vand.u32 %v3277, 4294901760
    %v3279 = vsub.f32 %v3277, %v3278
    %v3280 = vand.u32 %v3279, 4294901760
    %3281 = vmatpush1.msra.mxu0 %v3280
    %3282 = vmatprep.subr.mxu0 0.0
    %v3283 = vand.u32 %v471, 4294901760
    %v3284 = vsub.f32 %v471, %v3283
    %v3285 = vand.u32 %v3284, 4294901760
    %v3286 = vsub.f32 %v3284, %v3285
    %v3287 = vand.u32 %v3286, 4294901760
    %3288 = vmatpush1.msra.mxu0 %v3287
    %3289 = vmatprep.subr.mxu0 0.0
    %v3290 = vand.u32 %v470, 4294901760
    %v3291 = vsub.f32 %v470, %v3290
    %v3292 = vand.u32 %v3291, 4294901760
    %v3293 = vsub.f32 %v3291, %v3292
    %v3294 = vand.u32 %v3293, 4294901760
    %3295 = vmatpush1.msra.mxu0 %v3294
    %3296 = vmatprep.subr.mxu0 0.0
    %v3297 = vand.u32 %v469, 4294901760
    %v3298 = vsub.f32 %v469, %v3297
    %v3299 = vand.u32 %v3298, 4294901760
    %v3300 = vsub.f32 %v3298, %v3299
    %v3301 = vand.u32 %v3300, 4294901760
    %3302 = vmatpush1.msra.mxu0 %v3301
    %3303 = vmatprep.subr.mxu0 0.0
    %v3304 = vand.u32 %v468, 4294901760
    %v3305 = vsub.f32 %v468, %v3304
    %v3306 = vand.u32 %v3305, 4294901760
    %v3307 = vsub.f32 %v3305, %v3306
    %v3308 = vand.u32 %v3307, 4294901760
    %3309 = vmatpush1.msra.mxu0 %v3308
    %3310 = vmatprep.subr.mxu0 0.0
    %v3311 = vand.u32 %v499, 4294901760
    %v3312 = vsub.f32 %v499, %v3311
    %v3313 = vand.u32 %v3312, 4294901760
    %v3314 = vsub.f32 %v3312, %v3313
    %v3315 = vand.u32 %v3314, 4294901760
    %3316 = vmatpush2.msra.mxu0 %v3315
    %3317 = vmatprep.subr.mxu0 0.0
    %v3318 = vand.u32 %v498, 4294901760
    %v3319 = vsub.f32 %v498, %v3318
    %v3320 = vand.u32 %v3319, 4294901760
    %v3321 = vsub.f32 %v3319, %v3320
    %v3322 = vand.u32 %v3321, 4294901760
    %3323 = vmatpush2.msra.mxu0 %v3322
    %3324 = vmatprep.subr.mxu0 0.0
    %v3325 = vand.u32 %v497, 4294901760
    %v3326 = vsub.f32 %v497, %v3325
    %v3327 = vand.u32 %v3326, 4294901760
    %v3328 = vsub.f32 %v3326, %v3327
    %v3329 = vand.u32 %v3328, 4294901760
    %3330 = vmatpush2.msra.mxu0 %v3329
    %3331 = vmatprep.subr.mxu0 0.0
    %v3332 = vand.u32 %v496, 4294901760
    %v3333 = vsub.f32 %v496, %v3332
    %v3334 = vand.u32 %v3333, 4294901760
    %v3335 = vsub.f32 %v3333, %v3334
    %v3336 = vand.u32 %v3335, 4294901760
    %3337 = vmatpush2.msra.mxu0 %v3336
    %3338 = vmatprep.subr.mxu0 0.0
    %v3339 = vand.u32 %v495, 4294901760
    %v3340 = vsub.f32 %v495, %v3339
    %v3341 = vand.u32 %v3340, 4294901760
    %v3342 = vsub.f32 %v3340, %v3341
    %v3343 = vand.u32 %v3342, 4294901760
    %3344 = vmatpush2.msra.mxu0 %v3343
    %3345 = vmatprep.subr.mxu0 0.0
    %v3346 = vand.u32 %v494, 4294901760
    %v3347 = vsub.f32 %v494, %v3346
    %v3348 = vand.u32 %v3347, 4294901760
    %v3349 = vsub.f32 %v3347, %v3348
    %v3350 = vand.u32 %v3349, 4294901760
    %3351 = vmatpush2.msra.mxu0 %v3350
    %3352 = vmatprep.subr.mxu0 0.0
    %v3353 = vand.u32 %v493, 4294901760
    %v3354 = vsub.f32 %v493, %v3353
    %v3355 = vand.u32 %v3354, 4294901760
    %v3356 = vsub.f32 %v3354, %v3355
    %v3357 = vand.u32 %v3356, 4294901760
    %3358 = vmatpush2.msra.mxu0 %v3357
    %3359 = vmatprep.subr.mxu0 0.0
    %v3360 = vand.u32 %v492, 4294901760
    %v3361 = vsub.f32 %v492, %v3360
    %v3362 = vand.u32 %v3361, 4294901760
    %v3363 = vsub.f32 %v3361, %v3362
    %v3364 = vand.u32 %v3363, 4294901760
    %3365 = vmatpush2.msra.mxu0 %v3364
    %3366 = vmatprep.subr.mxu0 0.0
    %v3367 = vand.u32 %v491, 4294901760
    %v3368 = vsub.f32 %v491, %v3367
    %v3369 = vand.u32 %v3368, 4294901760
    %v3370 = vsub.f32 %v3368, %v3369
    %v3371 = vand.u32 %v3370, 4294901760
    %3372 = vmatpush2.msra.mxu0 %v3371
    %3373 = vmatprep.subr.mxu0 0.0
    %v3374 = vand.u32 %v490, 4294901760
    %v3375 = vsub.f32 %v490, %v3374
    %v3376 = vand.u32 %v3375, 4294901760
    %v3377 = vsub.f32 %v3375, %v3376
    %v3378 = vand.u32 %v3377, 4294901760
    %3379 = vmatpush2.msra.mxu0 %v3378
    %3380 = vmatprep.subr.mxu0 0.0
    %v3381 = vand.u32 %v489, 4294901760
    %v3382 = vsub.f32 %v489, %v3381
    %v3383 = vand.u32 %v3382, 4294901760
    %v3384 = vsub.f32 %v3382, %v3383
    %v3385 = vand.u32 %v3384, 4294901760
    %3386 = vmatpush2.msra.mxu0 %v3385
    %3387 = vmatprep.subr.mxu0 0.0
    %v3388 = vand.u32 %v488, 4294901760
    %v3389 = vsub.f32 %v488, %v3388
    %v3390 = vand.u32 %v3389, 4294901760
    %v3391 = vsub.f32 %v3389, %v3390
    %v3392 = vand.u32 %v3391, 4294901760
    %3393 = vmatpush2.msra.mxu0 %v3392
    %3394 = vmatprep.subr.mxu0 0.0
    %v3395 = vand.u32 %v487, 4294901760
    %v3396 = vsub.f32 %v487, %v3395
    %v3397 = vand.u32 %v3396, 4294901760
    %v3398 = vsub.f32 %v3396, %v3397
    %v3399 = vand.u32 %v3398, 4294901760
    %3400 = vmatpush2.msra.mxu0 %v3399
    %3401 = vmatprep.subr.mxu0 0.0
    %v3402 = vand.u32 %v486, 4294901760
    %v3403 = vsub.f32 %v486, %v3402
    %v3404 = vand.u32 %v3403, 4294901760
    %v3405 = vsub.f32 %v3403, %v3404
    %v3406 = vand.u32 %v3405, 4294901760
    %3407 = vmatpush2.msra.mxu0 %v3406
    %3408 = vmatprep.subr.mxu0 0.0
    %v3409 = vand.u32 %v485, 4294901760
    %v3410 = vsub.f32 %v485, %v3409
    %v3411 = vand.u32 %v3410, 4294901760
    %v3412 = vsub.f32 %v3410, %v3411
    %v3413 = vand.u32 %v3412, 4294901760
    %3414 = vmatpush2.msra.mxu0 %v3413
    %3415 = vmatprep.subr.mxu0 0.0
    %v3416 = vand.u32 %v484, 4294901760
    %v3417 = vsub.f32 %v484, %v3416
    %v3418 = vand.u32 %v3417, 4294901760
    %v3419 = vsub.f32 %v3417, %v3418
    %v3420 = vand.u32 %v3419, 4294901760
    %3421 = vmatpush2.msra.mxu0 %v3420
    %v3422 = vand.u32 %v239, 4294901760
    %3423 = vmatprep.mubr.f32.mxu0 %v3422
    %v3424 = vand.u32 %v238, 4294901760
    %3425 = vmatmul.mubr.f32.gmra.mxu0 %v3424
    %v3426 = vpop.f32.mrf.mxu0
    %v3427 = vadd.f32 %v3195, %v3426
    %v3428 = vpop.f32.mrf.mxu0
    %3429 = vdwg.mxu0
    %3430 = vmatprep.subr.mxu0 0.0
    %v3431 = vand.u32 %v483, 4294901760
    %v3432 = vsub.f32 %v483, %v3431
    %3433 = vmatpush1.msra.mxu0 %v3432
    %3434 = vmatprep.subr.mxu0 0.0
    %v3435 = vand.u32 %v482, 4294901760
    %v3436 = vsub.f32 %v482, %v3435
    %3437 = vmatpush1.msra.mxu0 %v3436
    %3438 = vmatprep.subr.mxu0 0.0
    %v3439 = vand.u32 %v481, 4294901760
    %v3440 = vsub.f32 %v481, %v3439
    %3441 = vmatpush1.msra.mxu0 %v3440
    %3442 = vmatprep.subr.mxu0 0.0
    %v3443 = vand.u32 %v480, 4294901760
    %v3444 = vsub.f32 %v480, %v3443
    %3445 = vmatpush1.msra.mxu0 %v3444
    %3446 = vmatprep.subr.mxu0 0.0
    %v3447 = vand.u32 %v479, 4294901760
    %v3448 = vsub.f32 %v479, %v3447
    %3449 = vmatpush1.msra.mxu0 %v3448
    %3450 = vmatprep.subr.mxu0 0.0
    %v3451 = vand.u32 %v478, 4294901760
    %v3452 = vsub.f32 %v478, %v3451
    %3453 = vmatpush1.msra.mxu0 %v3452
    %3454 = vmatprep.subr.mxu0 0.0
    %v3455 = vand.u32 %v477, 4294901760
    %v3456 = vsub.f32 %v477, %v3455
    %3457 = vmatpush1.msra.mxu0 %v3456
    %3458 = vmatprep.subr.mxu0 0.0
    %v3459 = vand.u32 %v476, 4294901760
    %v3460 = vsub.f32 %v476, %v3459
    %3461 = vmatpush1.msra.mxu0 %v3460
    %3462 = vmatprep.subr.mxu0 0.0
    %v3463 = vand.u32 %v475, 4294901760
    %v3464 = vsub.f32 %v475, %v3463
    %3465 = vmatpush1.msra.mxu0 %v3464
    %3466 = vmatprep.subr.mxu0 0.0
    %v3467 = vand.u32 %v474, 4294901760
    %v3468 = vsub.f32 %v474, %v3467
    %3469 = vmatpush1.msra.mxu0 %v3468
    %3470 = vmatprep.subr.mxu0 0.0
    %v3471 = vand.u32 %v473, 4294901760
    %v3472 = vsub.f32 %v473, %v3471
    %3473 = vmatpush1.msra.mxu0 %v3472
    %3474 = vmatprep.subr.mxu0 0.0
    %v3475 = vand.u32 %v472, 4294901760
    %v3476 = vsub.f32 %v472, %v3475
    %3477 = vmatpush1.msra.mxu0 %v3476
    %3478 = vmatprep.subr.mxu0 0.0
    %v3479 = vand.u32 %v471, 4294901760
    %v3480 = vsub.f32 %v471, %v3479
    %3481 = vmatpush1.msra.mxu0 %v3480
    %3482 = vmatprep.subr.mxu0 0.0
    %v3483 = vand.u32 %v470, 4294901760
    %v3484 = vsub.f32 %v470, %v3483
    %3485 = vmatpush1.msra.mxu0 %v3484
    %3486 = vmatprep.subr.mxu0 0.0
    %v3487 = vand.u32 %v469, 4294901760
    %v3488 = vsub.f32 %v469, %v3487
    %3489 = vmatpush1.msra.mxu0 %v3488
    %3490 = vmatprep.subr.mxu0 0.0
    %v3491 = vand.u32 %v468, 4294901760
    %v3492 = vsub.f32 %v468, %v3491
    %3493 = vmatpush1.msra.mxu0 %v3492
    %3494 = vmatprep.subr.mxu0 0.0
    %v3495 = vand.u32 %v499, 4294901760
    %v3496 = vsub.f32 %v499, %v3495
    %3497 = vmatpush2.msra.mxu0 %v3496
    %3498 = vmatprep.subr.mxu0 0.0
    %v3499 = vand.u32 %v498, 4294901760
    %v3500 = vsub.f32 %v498, %v3499
    %3501 = vmatpush2.msra.mxu0 %v3500
    %3502 = vmatprep.subr.mxu0 0.0
    %v3503 = vand.u32 %v497, 4294901760
    %v3504 = vsub.f32 %v497, %v3503
    %3505 = vmatpush2.msra.mxu0 %v3504
    %3506 = vmatprep.subr.mxu0 0.0
    %v3507 = vand.u32 %v496, 4294901760
    %v3508 = vsub.f32 %v496, %v3507
    %3509 = vmatpush2.msra.mxu0 %v3508
    %3510 = vmatprep.subr.mxu0 0.0
    %v3511 = vand.u32 %v495, 4294901760
    %v3512 = vsub.f32 %v495, %v3511
    %3513 = vmatpush2.msra.mxu0 %v3512
    %3514 = vmatprep.subr.mxu0 0.0
    %v3515 = vand.u32 %v494, 4294901760
    %v3516 = vsub.f32 %v494, %v3515
    %3517 = vmatpush2.msra.mxu0 %v3516
    %3518 = vmatprep.subr.mxu0 0.0
    %v3519 = vand.u32 %v493, 4294901760
    %v3520 = vsub.f32 %v493, %v3519
    %3521 = vmatpush2.msra.mxu0 %v3520
    %3522 = vmatprep.subr.mxu0 0.0
    %v3523 = vand.u32 %v492, 4294901760
    %v3524 = vsub.f32 %v492, %v3523
    %3525 = vmatpush2.msra.mxu0 %v3524
    %3526 = vmatprep.subr.mxu0 0.0
    %v3527 = vand.u32 %v491, 4294901760
    %v3528 = vsub.f32 %v491, %v3527
    %3529 = vmatpush2.msra.mxu0 %v3528
    %3530 = vmatprep.subr.mxu0 0.0
    %v3531 = vand.u32 %v490, 4294901760
    %v3532 = vsub.f32 %v490, %v3531
    %3533 = vmatpush2.msra.mxu0 %v3532
    %3534 = vmatprep.subr.mxu0 0.0
    %v3535 = vand.u32 %v489, 4294901760
    %v3536 = vsub.f32 %v489, %v3535
    %3537 = vmatpush2.msra.mxu0 %v3536
    %3538 = vmatprep.subr.mxu0 0.0
    %v3539 = vand.u32 %v488, 4294901760
    %v3540 = vsub.f32 %v488, %v3539
    %3541 = vmatpush2.msra.mxu0 %v3540
    %3542 = vmatprep.subr.mxu0 0.0
    %v3543 = vand.u32 %v487, 4294901760
    %v3544 = vsub.f32 %v487, %v3543
    %3545 = vmatpush2.msra.mxu0 %v3544
    %3546 = vmatprep.subr.mxu0 0.0
    %v3547 = vand.u32 %v486, 4294901760
    %v3548 = vsub.f32 %v486, %v3547
    %3549 = vmatpush2.msra.mxu0 %v3548
    %3550 = vmatprep.subr.mxu0 0.0
    %v3551 = vand.u32 %v485, 4294901760
    %v3552 = vsub.f32 %v485, %v3551
    %3553 = vmatpush2.msra.mxu0 %v3552
    %3554 = vmatprep.subr.mxu0 0.0
    %v3555 = vand.u32 %v484, 4294901760
    %v3556 = vsub.f32 %v484, %v3555
    %3557 = vmatpush2.msra.mxu0 %v3556
    %v3558 = vand.u32 %v239, 4294901760
    %v3559 = vsub.f32 %v239, %v3558
    %3560 = vmatprep.mubr.f32.mxu0 %v3559
    %v3561 = vand.u32 %v238, 4294901760
    %v3562 = vsub.f32 %v238, %v3561
    %3563 = vmatmul.mubr.f32.gmra.mxu0 %v3562
    %v3564 = vpop.f32.mrf.mxu0
    %v3565 = vadd.f32 %v3427, %v3564
    %v3566 = vpop.f32.mrf.mxu0
    %3567 = vdwg.mxu0
    %3568 = vmatprep.subr.mxu0 0.0
    %v3569 = vand.u32 %v483, 4294901760
    %3570 = vmatpush1.msra.mxu0 %v3569
    %3571 = vmatprep.subr.mxu0 0.0
    %v3572 = vand.u32 %v482, 4294901760
    %3573 = vmatpush1.msra.mxu0 %v3572
    %3574 = vmatprep.subr.mxu0 0.0
    %v3575 = vand.u32 %v481, 4294901760
    %3576 = vmatpush1.msra.mxu0 %v3575
    %3577 = vmatprep.subr.mxu0 0.0
    %v3578 = vand.u32 %v480, 4294901760
    %3579 = vmatpush1.msra.mxu0 %v3578
    %3580 = vmatprep.subr.mxu0 0.0
    %v3581 = vand.u32 %v479, 4294901760
    %3582 = vmatpush1.msra.mxu0 %v3581
    %3583 = vmatprep.subr.mxu0 0.0
    %v3584 = vand.u32 %v478, 4294901760
    %3585 = vmatpush1.msra.mxu0 %v3584
    %3586 = vmatprep.subr.mxu0 0.0
    %v3587 = vand.u32 %v477, 4294901760
    %3588 = vmatpush1.msra.mxu0 %v3587
    %3589 = vmatprep.subr.mxu0 0.0
    %v3590 = vand.u32 %v476, 4294901760
    %3591 = vmatpush1.msra.mxu0 %v3590
    %3592 = vmatprep.subr.mxu0 0.0
    %v3593 = vand.u32 %v475, 4294901760
    %3594 = vmatpush1.msra.mxu0 %v3593
    %3595 = vmatprep.subr.mxu0 0.0
    %v3596 = vand.u32 %v474, 4294901760
    %3597 = vmatpush1.msra.mxu0 %v3596
    %3598 = vmatprep.subr.mxu0 0.0
    %v3599 = vand.u32 %v473, 4294901760
    %3600 = vmatpush1.msra.mxu0 %v3599
    %3601 = vmatprep.subr.mxu0 0.0
    %v3602 = vand.u32 %v472, 4294901760
    %3603 = vmatpush1.msra.mxu0 %v3602
    %3604 = vmatprep.subr.mxu0 0.0
    %v3605 = vand.u32 %v471, 4294901760
    %3606 = vmatpush1.msra.mxu0 %v3605
    %3607 = vmatprep.subr.mxu0 0.0
    %v3608 = vand.u32 %v470, 4294901760
    %3609 = vmatpush1.msra.mxu0 %v3608
    %3610 = vmatprep.subr.mxu0 0.0
    %v3611 = vand.u32 %v469, 4294901760
    %3612 = vmatpush1.msra.mxu0 %v3611
    %3613 = vmatprep.subr.mxu0 0.0
    %v3614 = vand.u32 %v468, 4294901760
    %3615 = vmatpush1.msra.mxu0 %v3614
    %3616 = vmatprep.subr.mxu0 0.0
    %v3617 = vand.u32 %v499, 4294901760
    %3618 = vmatpush2.msra.mxu0 %v3617
    %3619 = vmatprep.subr.mxu0 0.0
    %v3620 = vand.u32 %v498, 4294901760
    %3621 = vmatpush2.msra.mxu0 %v3620
    %3622 = vmatprep.subr.mxu0 0.0
    %v3623 = vand.u32 %v497, 4294901760
    %3624 = vmatpush2.msra.mxu0 %v3623
    %3625 = vmatprep.subr.mxu0 0.0
    %v3626 = vand.u32 %v496, 4294901760
    %3627 = vmatpush2.msra.mxu0 %v3626
    %3628 = vmatprep.subr.mxu0 0.0
    %v3629 = vand.u32 %v495, 4294901760
    %3630 = vmatpush2.msra.mxu0 %v3629
    %3631 = vmatprep.subr.mxu0 0.0
    %v3632 = vand.u32 %v494, 4294901760
    %3633 = vmatpush2.msra.mxu0 %v3632
    %3634 = vmatprep.subr.mxu0 0.0
    %v3635 = vand.u32 %v493, 4294901760
    %3636 = vmatpush2.msra.mxu0 %v3635
    %3637 = vmatprep.subr.mxu0 0.0
    %v3638 = vand.u32 %v492, 4294901760
    %3639 = vmatpush2.msra.mxu0 %v3638
    %3640 = vmatprep.subr.mxu0 0.0
    %v3641 = vand.u32 %v491, 4294901760
    %3642 = vmatpush2.msra.mxu0 %v3641
    %3643 = vmatprep.subr.mxu0 0.0
    %v3644 = vand.u32 %v490, 4294901760
    %3645 = vmatpush2.msra.mxu0 %v3644
    %3646 = vmatprep.subr.mxu0 0.0
    %v3647 = vand.u32 %v489, 4294901760
    %3648 = vmatpush2.msra.mxu0 %v3647
    %3649 = vmatprep.subr.mxu0 0.0
    %v3650 = vand.u32 %v488, 4294901760
    %3651 = vmatpush2.msra.mxu0 %v3650
    %3652 = vmatprep.subr.mxu0 0.0
    %v3653 = vand.u32 %v487, 4294901760
    %3654 = vmatpush2.msra.mxu0 %v3653
    %3655 = vmatprep.subr.mxu0 0.0
    %v3656 = vand.u32 %v486, 4294901760
    %3657 = vmatpush2.msra.mxu0 %v3656
    %3658 = vmatprep.subr.mxu0 0.0
    %v3659 = vand.u32 %v485, 4294901760
    %3660 = vmatpush2.msra.mxu0 %v3659
    %3661 = vmatprep.subr.mxu0 0.0
    %v3662 = vand.u32 %v484, 4294901760
    %3663 = vmatpush2.msra.mxu0 %v3662
    %v3664 = vand.u32 %v239, 4294901760
    %v3665 = vsub.f32 %v239, %v3664
    %v3666 = vand.u32 %v3665, 4294901760
    %3667 = vmatprep.mubr.f32.mxu0 %v3666
    %v3668 = vand.u32 %v238, 4294901760
    %v3669 = vsub.f32 %v238, %v3668
    %v3670 = vand.u32 %v3669, 4294901760
    %3671 = vmatmul.mubr.f32.gmra.mxu0 %v3670
    %v3672 = vpop.f32.mrf.mxu0
    %v3673 = vadd.f32 %v3565, %v3672
    %v3674 = vpop.f32.mrf.mxu0
    %3675 = vdwg.mxu0
    %3676 = vmatprep.subr.mxu0 0.0
    %v3677 = vand.u32 %v483, 4294901760
    %v3678 = vsub.f32 %v483, %v3677
    %v3679 = vand.u32 %v3678, 4294901760
    %3680 = vmatpush1.msra.mxu0 %v3679
    %3681 = vmatprep.subr.mxu0 0.0
    %v3682 = vand.u32 %v482, 4294901760
    %v3683 = vsub.f32 %v482, %v3682
    %v3684 = vand.u32 %v3683, 4294901760
    %3685 = vmatpush1.msra.mxu0 %v3684
    %3686 = vmatprep.subr.mxu0 0.0
    %v3687 = vand.u32 %v481, 4294901760
    %v3688 = vsub.f32 %v481, %v3687
    %v3689 = vand.u32 %v3688, 4294901760
    %3690 = vmatpush1.msra.mxu0 %v3689
    %3691 = vmatprep.subr.mxu0 0.0
    %v3692 = vand.u32 %v480, 4294901760
    %v3693 = vsub.f32 %v480, %v3692
    %v3694 = vand.u32 %v3693, 4294901760
    %3695 = vmatpush1.msra.mxu0 %v3694
    %3696 = vmatprep.subr.mxu0 0.0
    %v3697 = vand.u32 %v479, 4294901760
    %v3698 = vsub.f32 %v479, %v3697
    %v3699 = vand.u32 %v3698, 4294901760
    %3700 = vmatpush1.msra.mxu0 %v3699
    %3701 = vmatprep.subr.mxu0 0.0
    %v3702 = vand.u32 %v478, 4294901760
    %v3703 = vsub.f32 %v478, %v3702
    %v3704 = vand.u32 %v3703, 4294901760
    %3705 = vmatpush1.msra.mxu0 %v3704
    %3706 = vmatprep.subr.mxu0 0.0
    %v3707 = vand.u32 %v477, 4294901760
    %v3708 = vsub.f32 %v477, %v3707
    %v3709 = vand.u32 %v3708, 4294901760
    %3710 = vmatpush1.msra.mxu0 %v3709
    %3711 = vmatprep.subr.mxu0 0.0
    %v3712 = vand.u32 %v476, 4294901760
    %v3713 = vsub.f32 %v476, %v3712
    %v3714 = vand.u32 %v3713, 4294901760
    %3715 = vmatpush1.msra.mxu0 %v3714
    %3716 = vmatprep.subr.mxu0 0.0
    %v3717 = vand.u32 %v475, 4294901760
    %v3718 = vsub.f32 %v475, %v3717
    %v3719 = vand.u32 %v3718, 4294901760
    %3720 = vmatpush1.msra.mxu0 %v3719
    %3721 = vmatprep.subr.mxu0 0.0
    %v3722 = vand.u32 %v474, 4294901760
    %v3723 = vsub.f32 %v474, %v3722
    %v3724 = vand.u32 %v3723, 4294901760
    %3725 = vmatpush1.msra.mxu0 %v3724
    %3726 = vmatprep.subr.mxu0 0.0
    %v3727 = vand.u32 %v473, 4294901760
    %v3728 = vsub.f32 %v473, %v3727
    %v3729 = vand.u32 %v3728, 4294901760
    %3730 = vmatpush1.msra.mxu0 %v3729
    %3731 = vmatprep.subr.mxu0 0.0
    %v3732 = vand.u32 %v472, 4294901760
    %v3733 = vsub.f32 %v472, %v3732
    %v3734 = vand.u32 %v3733, 4294901760
    %3735 = vmatpush1.msra.mxu0 %v3734
    %3736 = vmatprep.subr.mxu0 0.0
    %v3737 = vand.u32 %v471, 4294901760
    %v3738 = vsub.f32 %v471, %v3737
    %v3739 = vand.u32 %v3738, 4294901760
    %3740 = vmatpush1.msra.mxu0 %v3739
    %3741 = vmatprep.subr.mxu0 0.0
    %v3742 = vand.u32 %v470, 4294901760
    %v3743 = vsub.f32 %v470, %v3742
    %v3744 = vand.u32 %v3743, 4294901760
    %3745 = vmatpush1.msra.mxu0 %v3744
    %3746 = vmatprep.subr.mxu0 0.0
    %v3747 = vand.u32 %v469, 4294901760
    %v3748 = vsub.f32 %v469, %v3747
    %v3749 = vand.u32 %v3748, 4294901760
    %3750 = vmatpush1.msra.mxu0 %v3749
    %3751 = vmatprep.subr.mxu0 0.0
    %v3752 = vand.u32 %v468, 4294901760
    %v3753 = vsub.f32 %v468, %v3752
    %v3754 = vand.u32 %v3753, 4294901760
    %3755 = vmatpush1.msra.mxu0 %v3754
    %3756 = vmatprep.subr.mxu0 0.0
    %v3757 = vand.u32 %v499, 4294901760
    %v3758 = vsub.f32 %v499, %v3757
    %v3759 = vand.u32 %v3758, 4294901760
    %3760 = vmatpush2.msra.mxu0 %v3759
    %3761 = vmatprep.subr.mxu0 0.0
    %v3762 = vand.u32 %v498, 4294901760
    %v3763 = vsub.f32 %v498, %v3762
    %v3764 = vand.u32 %v3763, 4294901760
    %3765 = vmatpush2.msra.mxu0 %v3764
    %3766 = vmatprep.subr.mxu0 0.0
    %v3767 = vand.u32 %v497, 4294901760
    %v3768 = vsub.f32 %v497, %v3767
    %v3769 = vand.u32 %v3768, 4294901760
    %3770 = vmatpush2.msra.mxu0 %v3769
    %3771 = vmatprep.subr.mxu0 0.0
    %v3772 = vand.u32 %v496, 4294901760
    %v3773 = vsub.f32 %v496, %v3772
    %v3774 = vand.u32 %v3773, 4294901760
    %3775 = vmatpush2.msra.mxu0 %v3774
    %3776 = vmatprep.subr.mxu0 0.0
    %v3777 = vand.u32 %v495, 4294901760
    %v3778 = vsub.f32 %v495, %v3777
    %v3779 = vand.u32 %v3778, 4294901760
    %3780 = vmatpush2.msra.mxu0 %v3779
    %3781 = vmatprep.subr.mxu0 0.0
    %v3782 = vand.u32 %v494, 4294901760
    %v3783 = vsub.f32 %v494, %v3782
    %v3784 = vand.u32 %v3783, 4294901760
    %3785 = vmatpush2.msra.mxu0 %v3784
    %3786 = vmatprep.subr.mxu0 0.0
    %v3787 = vand.u32 %v493, 4294901760
    %v3788 = vsub.f32 %v493, %v3787
    %v3789 = vand.u32 %v3788, 4294901760
    %3790 = vmatpush2.msra.mxu0 %v3789
    %3791 = vmatprep.subr.mxu0 0.0
    %v3792 = vand.u32 %v492, 4294901760
    %v3793 = vsub.f32 %v492, %v3792
    %v3794 = vand.u32 %v3793, 4294901760
    %3795 = vmatpush2.msra.mxu0 %v3794
    %3796 = vmatprep.subr.mxu0 0.0
    %v3797 = vand.u32 %v491, 4294901760
    %v3798 = vsub.f32 %v491, %v3797
    %v3799 = vand.u32 %v3798, 4294901760
    %3800 = vmatpush2.msra.mxu0 %v3799
    %3801 = vmatprep.subr.mxu0 0.0
    %v3802 = vand.u32 %v490, 4294901760
    %v3803 = vsub.f32 %v490, %v3802
    %v3804 = vand.u32 %v3803, 4294901760
    %3805 = vmatpush2.msra.mxu0 %v3804
    %3806 = vmatprep.subr.mxu0 0.0
    %v3807 = vand.u32 %v489, 4294901760
    %v3808 = vsub.f32 %v489, %v3807
    %v3809 = vand.u32 %v3808, 4294901760
    %3810 = vmatpush2.msra.mxu0 %v3809
    %3811 = vmatprep.subr.mxu0 0.0
    %v3812 = vand.u32 %v488, 4294901760
    %v3813 = vsub.f32 %v488, %v3812
    %v3814 = vand.u32 %v3813, 4294901760
    %3815 = vmatpush2.msra.mxu0 %v3814
    %3816 = vmatprep.subr.mxu0 0.0
    %v3817 = vand.u32 %v487, 4294901760
    %v3818 = vsub.f32 %v487, %v3817
    %v3819 = vand.u32 %v3818, 4294901760
    %3820 = vmatpush2.msra.mxu0 %v3819
    %3821 = vmatprep.subr.mxu0 0.0
    %v3822 = vand.u32 %v486, 4294901760
    %v3823 = vsub.f32 %v486, %v3822
    %v3824 = vand.u32 %v3823, 4294901760
    %3825 = vmatpush2.msra.mxu0 %v3824
    %3826 = vmatprep.subr.mxu0 0.0
    %v3827 = vand.u32 %v485, 4294901760
    %v3828 = vsub.f32 %v485, %v3827
    %v3829 = vand.u32 %v3828, 4294901760
    %3830 = vmatpush2.msra.mxu0 %v3829
    %3831 = vmatprep.subr.mxu0 0.0
    %v3832 = vand.u32 %v484, 4294901760
    %v3833 = vsub.f32 %v484, %v3832
    %v3834 = vand.u32 %v3833, 4294901760
    %3835 = vmatpush2.msra.mxu0 %v3834
    %v3836 = vand.u32 %v239, 4294901760
    %3837 = vmatprep.mubr.f32.mxu0 %v3836
    %v3838 = vand.u32 %v238, 4294901760
    %3839 = vmatmul.mubr.f32.gmra.mxu0 %v3838
    %v3840 = vpop.f32.mrf.mxu0
    %v3841 = vadd.f32 %v3673, %v3840
    %v3842 = vpop.f32.mrf.mxu0
    %3843 = vdwg.mxu0
    %3844 = vmatprep.subr.mxu0 0.0
    %v3845 = vand.u32 %v483, 4294901760
    %3846 = vmatpush1.msra.mxu0 %v3845
    %3847 = vmatprep.subr.mxu0 0.0
    %v3848 = vand.u32 %v482, 4294901760
    %3849 = vmatpush1.msra.mxu0 %v3848
    %3850 = vmatprep.subr.mxu0 0.0
    %v3851 = vand.u32 %v481, 4294901760
    %3852 = vmatpush1.msra.mxu0 %v3851
    %3853 = vmatprep.subr.mxu0 0.0
    %v3854 = vand.u32 %v480, 4294901760
    %3855 = vmatpush1.msra.mxu0 %v3854
    %3856 = vmatprep.subr.mxu0 0.0
    %v3857 = vand.u32 %v479, 4294901760
    %3858 = vmatpush1.msra.mxu0 %v3857
    %3859 = vmatprep.subr.mxu0 0.0
    %v3860 = vand.u32 %v478, 4294901760
    %3861 = vmatpush1.msra.mxu0 %v3860
    %3862 = vmatprep.subr.mxu0 0.0
    %v3863 = vand.u32 %v477, 4294901760
    %3864 = vmatpush1.msra.mxu0 %v3863
    %3865 = vmatprep.subr.mxu0 0.0
    %v3866 = vand.u32 %v476, 4294901760
    %3867 = vmatpush1.msra.mxu0 %v3866
    %3868 = vmatprep.subr.mxu0 0.0
    %v3869 = vand.u32 %v475, 4294901760
    %3870 = vmatpush1.msra.mxu0 %v3869
    %3871 = vmatprep.subr.mxu0 0.0
    %v3872 = vand.u32 %v474, 4294901760
    %3873 = vmatpush1.msra.mxu0 %v3872
    %3874 = vmatprep.subr.mxu0 0.0
    %v3875 = vand.u32 %v473, 4294901760
    %3876 = vmatpush1.msra.mxu0 %v3875
    %3877 = vmatprep.subr.mxu0 0.0
    %v3878 = vand.u32 %v472, 4294901760
    %3879 = vmatpush1.msra.mxu0 %v3878
    %3880 = vmatprep.subr.mxu0 0.0
    %v3881 = vand.u32 %v471, 4294901760
    %3882 = vmatpush1.msra.mxu0 %v3881
    %3883 = vmatprep.subr.mxu0 0.0
    %v3884 = vand.u32 %v470, 4294901760
    %3885 = vmatpush1.msra.mxu0 %v3884
    %3886 = vmatprep.subr.mxu0 0.0
    %v3887 = vand.u32 %v469, 4294901760
    %3888 = vmatpush1.msra.mxu0 %v3887
    %3889 = vmatprep.subr.mxu0 0.0
    %v3890 = vand.u32 %v468, 4294901760
    %3891 = vmatpush1.msra.mxu0 %v3890
    %3892 = vmatprep.subr.mxu0 0.0
    %v3893 = vand.u32 %v499, 4294901760
    %3894 = vmatpush2.msra.mxu0 %v3893
    %3895 = vmatprep.subr.mxu0 0.0
    %v3896 = vand.u32 %v498, 4294901760
    %3897 = vmatpush2.msra.mxu0 %v3896
    %3898 = vmatprep.subr.mxu0 0.0
    %v3899 = vand.u32 %v497, 4294901760
    %3900 = vmatpush2.msra.mxu0 %v3899
    %3901 = vmatprep.subr.mxu0 0.0
    %v3902 = vand.u32 %v496, 4294901760
    %3903 = vmatpush2.msra.mxu0 %v3902
    %3904 = vmatprep.subr.mxu0 0.0
    %v3905 = vand.u32 %v495, 4294901760
    %3906 = vmatpush2.msra.mxu0 %v3905
    %3907 = vmatprep.subr.mxu0 0.0
    %v3908 = vand.u32 %v494, 4294901760
    %3909 = vmatpush2.msra.mxu0 %v3908
    %3910 = vmatprep.subr.mxu0 0.0
    %v3911 = vand.u32 %v493, 4294901760
    %3912 = vmatpush2.msra.mxu0 %v3911
    %3913 = vmatprep.subr.mxu0 0.0
    %v3914 = vand.u32 %v492, 4294901760
    %3915 = vmatpush2.msra.mxu0 %v3914
    %3916 = vmatprep.subr.mxu0 0.0
    %v3917 = vand.u32 %v491, 4294901760
    %3918 = vmatpush2.msra.mxu0 %v3917
    %3919 = vmatprep.subr.mxu0 0.0
    %v3920 = vand.u32 %v490, 4294901760
    %3921 = vmatpush2.msra.mxu0 %v3920
    %3922 = vmatprep.subr.mxu0 0.0
    %v3923 = vand.u32 %v489, 4294901760
    %3924 = vmatpush2.msra.mxu0 %v3923
    %3925 = vmatprep.subr.mxu0 0.0
    %v3926 = vand.u32 %v488, 4294901760
    %3927 = vmatpush2.msra.mxu0 %v3926
    %3928 = vmatprep.subr.mxu0 0.0
    %v3929 = vand.u32 %v487, 4294901760
    %3930 = vmatpush2.msra.mxu0 %v3929
    %3931 = vmatprep.subr.mxu0 0.0
    %v3932 = vand.u32 %v486, 4294901760
    %3933 = vmatpush2.msra.mxu0 %v3932
    %3934 = vmatprep.subr.mxu0 0.0
    %v3935 = vand.u32 %v485, 4294901760
    %3936 = vmatpush2.msra.mxu0 %v3935
    %3937 = vmatprep.subr.mxu0 0.0
    %v3938 = vand.u32 %v484, 4294901760
    %3939 = vmatpush2.msra.mxu0 %v3938
    %v3940 = vand.u32 %v239, 4294901760
    %3941 = vmatprep.mubr.f32.mxu0 %v3940
    %v3942 = vand.u32 %v238, 4294901760
    %3943 = vmatmul.mubr.f32.gmra.mxu0 %v3942
    %v3944 = vpop.f32.mrf.mxu0
    %v3945 = vadd.f32 %v3841, %v3944
    %v3946 = vpop.f32.mrf.mxu0
    %3947 = vdwg.mxu0
    %3948 = vmatprep.subr.mxu0 0.0
    %v3949 = vand.u32 %v451, 4294901760
    %3950 = vmatpush1.msra.mxu0 %v3949
    %3951 = vmatprep.subr.mxu0 0.0
    %v3952 = vand.u32 %v450, 4294901760
    %3953 = vmatpush1.msra.mxu0 %v3952
    %3954 = vmatprep.subr.mxu0 0.0
    %v3955 = vand.u32 %v449, 4294901760
    %3956 = vmatpush1.msra.mxu0 %v3955
    %3957 = vmatprep.subr.mxu0 0.0
    %v3958 = vand.u32 %v448, 4294901760
    %3959 = vmatpush1.msra.mxu0 %v3958
    %3960 = vmatprep.subr.mxu0 0.0
    %v3961 = vand.u32 %v447, 4294901760
    %3962 = vmatpush1.msra.mxu0 %v3961
    %3963 = vmatprep.subr.mxu0 0.0
    %v3964 = vand.u32 %v446, 4294901760
    %3965 = vmatpush1.msra.mxu0 %v3964
    %3966 = vmatprep.subr.mxu0 0.0
    %v3967 = vand.u32 %v445, 4294901760
    %3968 = vmatpush1.msra.mxu0 %v3967
    %3969 = vmatprep.subr.mxu0 0.0
    %v3970 = vand.u32 %v444, 4294901760
    %3971 = vmatpush1.msra.mxu0 %v3970
    %3972 = vmatprep.subr.mxu0 0.0
    %v3973 = vand.u32 %v443, 4294901760
    %3974 = vmatpush1.msra.mxu0 %v3973
    %3975 = vmatprep.subr.mxu0 0.0
    %v3976 = vand.u32 %v442, 4294901760
    %3977 = vmatpush1.msra.mxu0 %v3976
    %3978 = vmatprep.subr.mxu0 0.0
    %v3979 = vand.u32 %v441, 4294901760
    %3980 = vmatpush1.msra.mxu0 %v3979
    %3981 = vmatprep.subr.mxu0 0.0
    %v3982 = vand.u32 %v440, 4294901760
    %3983 = vmatpush1.msra.mxu0 %v3982
    %3984 = vmatprep.subr.mxu0 0.0
    %v3985 = vand.u32 %v439, 4294901760
    %3986 = vmatpush1.msra.mxu0 %v3985
    %3987 = vmatprep.subr.mxu0 0.0
    %v3988 = vand.u32 %v438, 4294901760
    %3989 = vmatpush1.msra.mxu0 %v3988
    %3990 = vmatprep.subr.mxu0 0.0
    %v3991 = vand.u32 %v437, 4294901760
    %3992 = vmatpush1.msra.mxu0 %v3991
    %3993 = vmatprep.subr.mxu0 0.0
    %v3994 = vand.u32 %v436, 4294901760
    %3995 = vmatpush1.msra.mxu0 %v3994
    %3996 = vmatprep.subr.mxu0 0.0
    %v3997 = vand.u32 %v467, 4294901760
    %3998 = vmatpush2.msra.mxu0 %v3997
    %3999 = vmatprep.subr.mxu0 0.0
    %v4000 = vand.u32 %v466, 4294901760
    %4001 = vmatpush2.msra.mxu0 %v4000
    %4002 = vmatprep.subr.mxu0 0.0
    %v4003 = vand.u32 %v465, 4294901760
    %4004 = vmatpush2.msra.mxu0 %v4003
    %4005 = vmatprep.subr.mxu0 0.0
    %v4006 = vand.u32 %v464, 4294901760
    %4007 = vmatpush2.msra.mxu0 %v4006
    %4008 = vmatprep.subr.mxu0 0.0
    %v4009 = vand.u32 %v463, 4294901760
    %4010 = vmatpush2.msra.mxu0 %v4009
    %4011 = vmatprep.subr.mxu0 0.0
    %v4012 = vand.u32 %v462, 4294901760
    %4013 = vmatpush2.msra.mxu0 %v4012
    %4014 = vmatprep.subr.mxu0 0.0
    %v4015 = vand.u32 %v461, 4294901760
    %4016 = vmatpush2.msra.mxu0 %v4015
    %4017 = vmatprep.subr.mxu0 0.0
    %v4018 = vand.u32 %v460, 4294901760
    %4019 = vmatpush2.msra.mxu0 %v4018
    %4020 = vmatprep.subr.mxu0 0.0
    %v4021 = vand.u32 %v459, 4294901760
    %4022 = vmatpush2.msra.mxu0 %v4021
    %4023 = vmatprep.subr.mxu0 0.0
    %v4024 = vand.u32 %v458, 4294901760
    %4025 = vmatpush2.msra.mxu0 %v4024
    %4026 = vmatprep.subr.mxu0 0.0
    %v4027 = vand.u32 %v457, 4294901760
    %4028 = vmatpush2.msra.mxu0 %v4027
    %4029 = vmatprep.subr.mxu0 0.0
    %v4030 = vand.u32 %v456, 4294901760
    %4031 = vmatpush2.msra.mxu0 %v4030
    %4032 = vmatprep.subr.mxu0 0.0
    %v4033 = vand.u32 %v455, 4294901760
    %4034 = vmatpush2.msra.mxu0 %v4033
    %4035 = vmatprep.subr.mxu0 0.0
    %v4036 = vand.u32 %v454, 4294901760
    %4037 = vmatpush2.msra.mxu0 %v4036
    %4038 = vmatprep.subr.mxu0 0.0
    %v4039 = vand.u32 %v453, 4294901760
    %4040 = vmatpush2.msra.mxu0 %v4039
    %4041 = vmatprep.subr.mxu0 0.0
    %v4042 = vand.u32 %v452, 4294901760
    %4043 = vmatpush2.msra.mxu0 %v4042
    %v4044 = vand.u32 %v229, 4294901760
    %v4045 = vsub.f32 %v229, %v4044
    %v4046 = vand.u32 %v4045, 4294901760
    %v4047 = vsub.f32 %v4045, %v4046
    %v4048 = vand.u32 %v4047, 4294901760
    %4049 = vmatprep.mubr.f32.mxu0 %v4048
    %v4050 = vand.u32 %v228, 4294901760
    %v4051 = vsub.f32 %v228, %v4050
    %v4052 = vand.u32 %v4051, 4294901760
    %v4053 = vsub.f32 %v4051, %v4052
    %v4054 = vand.u32 %v4053, 4294901760
    %4055 = vmatmul.mubr.f32.gmra.mxu0 %v4054
    %v4056 = vpop.f32.mrf.mxu0
    %v4057 = vadd.f32 0.0, %v4056
    %v4058 = vpop.f32.mrf.mxu0
    %4059 = vdwg.mxu0
    %4060 = vmatprep.subr.mxu0 0.0
    %v4061 = vand.u32 %v451, 4294901760
    %v4062 = vsub.f32 %v451, %v4061
    %v4063 = vand.u32 %v4062, 4294901760
    %v4064 = vsub.f32 %v4062, %v4063
    %v4065 = vand.u32 %v4064, 4294901760
    %4066 = vmatpush1.msra.mxu0 %v4065
    %4067 = vmatprep.subr.mxu0 0.0
    %v4068 = vand.u32 %v450, 4294901760
    %v4069 = vsub.f32 %v450, %v4068
    %v4070 = vand.u32 %v4069, 4294901760
    %v4071 = vsub.f32 %v4069, %v4070
    %v4072 = vand.u32 %v4071, 4294901760
    %4073 = vmatpush1.msra.mxu0 %v4072
    %4074 = vmatprep.subr.mxu0 0.0
    %v4075 = vand.u32 %v449, 4294901760
    %v4076 = vsub.f32 %v449, %v4075
    %v4077 = vand.u32 %v4076, 4294901760
    %v4078 = vsub.f32 %v4076, %v4077
    %v4079 = vand.u32 %v4078, 4294901760
    %4080 = vmatpush1.msra.mxu0 %v4079
    %4081 = vmatprep.subr.mxu0 0.0
    %v4082 = vand.u32 %v448, 4294901760
    %v4083 = vsub.f32 %v448, %v4082
    %v4084 = vand.u32 %v4083, 4294901760
    %v4085 = vsub.f32 %v4083, %v4084
    %v4086 = vand.u32 %v4085, 4294901760
    %4087 = vmatpush1.msra.mxu0 %v4086
    %4088 = vmatprep.subr.mxu0 0.0
    %v4089 = vand.u32 %v447, 4294901760
    %v4090 = vsub.f32 %v447, %v4089
    %v4091 = vand.u32 %v4090, 4294901760
    %v4092 = vsub.f32 %v4090, %v4091
    %v4093 = vand.u32 %v4092, 4294901760
    %4094 = vmatpush1.msra.mxu0 %v4093
    %4095 = vmatprep.subr.mxu0 0.0
    %v4096 = vand.u32 %v446, 4294901760
    %v4097 = vsub.f32 %v446, %v4096
    %v4098 = vand.u32 %v4097, 4294901760
    %v4099 = vsub.f32 %v4097, %v4098
    %v4100 = vand.u32 %v4099, 4294901760
    %4101 = vmatpush1.msra.mxu0 %v4100
    %4102 = vmatprep.subr.mxu0 0.0
    %v4103 = vand.u32 %v445, 4294901760
    %v4104 = vsub.f32 %v445, %v4103
    %v4105 = vand.u32 %v4104, 4294901760
    %v4106 = vsub.f32 %v4104, %v4105
    %v4107 = vand.u32 %v4106, 4294901760
    %4108 = vmatpush1.msra.mxu0 %v4107
    %4109 = vmatprep.subr.mxu0 0.0
    %v4110 = vand.u32 %v444, 4294901760
    %v4111 = vsub.f32 %v444, %v4110
    %v4112 = vand.u32 %v4111, 4294901760
    %v4113 = vsub.f32 %v4111, %v4112
    %v4114 = vand.u32 %v4113, 4294901760
    %4115 = vmatpush1.msra.mxu0 %v4114
    %4116 = vmatprep.subr.mxu0 0.0
    %v4117 = vand.u32 %v443, 4294901760
    %v4118 = vsub.f32 %v443, %v4117
    %v4119 = vand.u32 %v4118, 4294901760
    %v4120 = vsub.f32 %v4118, %v4119
    %v4121 = vand.u32 %v4120, 4294901760
    %4122 = vmatpush1.msra.mxu0 %v4121
    %4123 = vmatprep.subr.mxu0 0.0
    %v4124 = vand.u32 %v442, 4294901760
    %v4125 = vsub.f32 %v442, %v4124
    %v4126 = vand.u32 %v4125, 4294901760
    %v4127 = vsub.f32 %v4125, %v4126
    %v4128 = vand.u32 %v4127, 4294901760
    %4129 = vmatpush1.msra.mxu0 %v4128
    %4130 = vmatprep.subr.mxu0 0.0
    %v4131 = vand.u32 %v441, 4294901760
    %v4132 = vsub.f32 %v441, %v4131
    %v4133 = vand.u32 %v4132, 4294901760
    %v4134 = vsub.f32 %v4132, %v4133
    %v4135 = vand.u32 %v4134, 4294901760
    %4136 = vmatpush1.msra.mxu0 %v4135
    %4137 = vmatprep.subr.mxu0 0.0
    %v4138 = vand.u32 %v440, 4294901760
    %v4139 = vsub.f32 %v440, %v4138
    %v4140 = vand.u32 %v4139, 4294901760
    %v4141 = vsub.f32 %v4139, %v4140
    %v4142 = vand.u32 %v4141, 4294901760
    %4143 = vmatpush1.msra.mxu0 %v4142
    %4144 = vmatprep.subr.mxu0 0.0
    %v4145 = vand.u32 %v439, 4294901760
    %v4146 = vsub.f32 %v439, %v4145
    %v4147 = vand.u32 %v4146, 4294901760
    %v4148 = vsub.f32 %v4146, %v4147
    %v4149 = vand.u32 %v4148, 4294901760
    %4150 = vmatpush1.msra.mxu0 %v4149
    %4151 = vmatprep.subr.mxu0 0.0
    %v4152 = vand.u32 %v438, 4294901760
    %v4153 = vsub.f32 %v438, %v4152
    %v4154 = vand.u32 %v4153, 4294901760
    %v4155 = vsub.f32 %v4153, %v4154
    %v4156 = vand.u32 %v4155, 4294901760
    %4157 = vmatpush1.msra.mxu0 %v4156
    %4158 = vmatprep.subr.mxu0 0.0
    %v4159 = vand.u32 %v437, 4294901760
    %v4160 = vsub.f32 %v437, %v4159
    %v4161 = vand.u32 %v4160, 4294901760
    %v4162 = vsub.f32 %v4160, %v4161
    %v4163 = vand.u32 %v4162, 4294901760
    %4164 = vmatpush1.msra.mxu0 %v4163
    %4165 = vmatprep.subr.mxu0 0.0
    %v4166 = vand.u32 %v436, 4294901760
    %v4167 = vsub.f32 %v436, %v4166
    %v4168 = vand.u32 %v4167, 4294901760
    %v4169 = vsub.f32 %v4167, %v4168
    %v4170 = vand.u32 %v4169, 4294901760
    %4171 = vmatpush1.msra.mxu0 %v4170
    %4172 = vmatprep.subr.mxu0 0.0
    %v4173 = vand.u32 %v467, 4294901760
    %v4174 = vsub.f32 %v467, %v4173
    %v4175 = vand.u32 %v4174, 4294901760
    %v4176 = vsub.f32 %v4174, %v4175
    %v4177 = vand.u32 %v4176, 4294901760
    %4178 = vmatpush2.msra.mxu0 %v4177
    %4179 = vmatprep.subr.mxu0 0.0
    %v4180 = vand.u32 %v466, 4294901760
    %v4181 = vsub.f32 %v466, %v4180
    %v4182 = vand.u32 %v4181, 4294901760
    %v4183 = vsub.f32 %v4181, %v4182
    %v4184 = vand.u32 %v4183, 4294901760
    %4185 = vmatpush2.msra.mxu0 %v4184
    %4186 = vmatprep.subr.mxu0 0.0
    %v4187 = vand.u32 %v465, 4294901760
    %v4188 = vsub.f32 %v465, %v4187
    %v4189 = vand.u32 %v4188, 4294901760
    %v4190 = vsub.f32 %v4188, %v4189
    %v4191 = vand.u32 %v4190, 4294901760
    %4192 = vmatpush2.msra.mxu0 %v4191
    %4193 = vmatprep.subr.mxu0 0.0
    %v4194 = vand.u32 %v464, 4294901760
    %v4195 = vsub.f32 %v464, %v4194
    %v4196 = vand.u32 %v4195, 4294901760
    %v4197 = vsub.f32 %v4195, %v4196
    %v4198 = vand.u32 %v4197, 4294901760
    %4199 = vmatpush2.msra.mxu0 %v4198
    %4200 = vmatprep.subr.mxu0 0.0
    %v4201 = vand.u32 %v463, 4294901760
    %v4202 = vsub.f32 %v463, %v4201
    %v4203 = vand.u32 %v4202, 4294901760
    %v4204 = vsub.f32 %v4202, %v4203
    %v4205 = vand.u32 %v4204, 4294901760
    %4206 = vmatpush2.msra.mxu0 %v4205
    %4207 = vmatprep.subr.mxu0 0.0
    %v4208 = vand.u32 %v462, 4294901760
    %v4209 = vsub.f32 %v462, %v4208
    %v4210 = vand.u32 %v4209, 4294901760
    %v4211 = vsub.f32 %v4209, %v4210
    %v4212 = vand.u32 %v4211, 4294901760
    %4213 = vmatpush2.msra.mxu0 %v4212
    %4214 = vmatprep.subr.mxu0 0.0
    %v4215 = vand.u32 %v461, 4294901760
    %v4216 = vsub.f32 %v461, %v4215
    %v4217 = vand.u32 %v4216, 4294901760
    %v4218 = vsub.f32 %v4216, %v4217
    %v4219 = vand.u32 %v4218, 4294901760
    %4220 = vmatpush2.msra.mxu0 %v4219
    %4221 = vmatprep.subr.mxu0 0.0
    %v4222 = vand.u32 %v460, 4294901760
    %v4223 = vsub.f32 %v460, %v4222
    %v4224 = vand.u32 %v4223, 4294901760
    %v4225 = vsub.f32 %v4223, %v4224
    %v4226 = vand.u32 %v4225, 4294901760
    %4227 = vmatpush2.msra.mxu0 %v4226
    %4228 = vmatprep.subr.mxu0 0.0
    %v4229 = vand.u32 %v459, 4294901760
    %v4230 = vsub.f32 %v459, %v4229
    %v4231 = vand.u32 %v4230, 4294901760
    %v4232 = vsub.f32 %v4230, %v4231
    %v4233 = vand.u32 %v4232, 4294901760
    %4234 = vmatpush2.msra.mxu0 %v4233
    %4235 = vmatprep.subr.mxu0 0.0
    %v4236 = vand.u32 %v458, 4294901760
    %v4237 = vsub.f32 %v458, %v4236
    %v4238 = vand.u32 %v4237, 4294901760
    %v4239 = vsub.f32 %v4237, %v4238
    %v4240 = vand.u32 %v4239, 4294901760
    %4241 = vmatpush2.msra.mxu0 %v4240
    %4242 = vmatprep.subr.mxu0 0.0
    %v4243 = vand.u32 %v457, 4294901760
    %v4244 = vsub.f32 %v457, %v4243
    %v4245 = vand.u32 %v4244, 4294901760
    %v4246 = vsub.f32 %v4244, %v4245
    %v4247 = vand.u32 %v4246, 4294901760
    %4248 = vmatpush2.msra.mxu0 %v4247
    %4249 = vmatprep.subr.mxu0 0.0
    %v4250 = vand.u32 %v456, 4294901760
    %v4251 = vsub.f32 %v456, %v4250
    %v4252 = vand.u32 %v4251, 4294901760
    %v4253 = vsub.f32 %v4251, %v4252
    %v4254 = vand.u32 %v4253, 4294901760
    %4255 = vmatpush2.msra.mxu0 %v4254
    %4256 = vmatprep.subr.mxu0 0.0
    %v4257 = vand.u32 %v455, 4294901760
    %v4258 = vsub.f32 %v455, %v4257
    %v4259 = vand.u32 %v4258, 4294901760
    %v4260 = vsub.f32 %v4258, %v4259
    %v4261 = vand.u32 %v4260, 4294901760
    %4262 = vmatpush2.msra.mxu0 %v4261
    %4263 = vmatprep.subr.mxu0 0.0
    %v4264 = vand.u32 %v454, 4294901760
    %v4265 = vsub.f32 %v454, %v4264
    %v4266 = vand.u32 %v4265, 4294901760
    %v4267 = vsub.f32 %v4265, %v4266
    %v4268 = vand.u32 %v4267, 4294901760
    %4269 = vmatpush2.msra.mxu0 %v4268
    %4270 = vmatprep.subr.mxu0 0.0
    %v4271 = vand.u32 %v453, 4294901760
    %v4272 = vsub.f32 %v453, %v4271
    %v4273 = vand.u32 %v4272, 4294901760
    %v4274 = vsub.f32 %v4272, %v4273
    %v4275 = vand.u32 %v4274, 4294901760
    %4276 = vmatpush2.msra.mxu0 %v4275
    %4277 = vmatprep.subr.mxu0 0.0
    %v4278 = vand.u32 %v452, 4294901760
    %v4279 = vsub.f32 %v452, %v4278
    %v4280 = vand.u32 %v4279, 4294901760
    %v4281 = vsub.f32 %v4279, %v4280
    %v4282 = vand.u32 %v4281, 4294901760
    %4283 = vmatpush2.msra.mxu0 %v4282
    %v4284 = vand.u32 %v229, 4294901760
    %4285 = vmatprep.mubr.f32.mxu0 %v4284
    %v4286 = vand.u32 %v228, 4294901760
    %4287 = vmatmul.mubr.f32.gmra.mxu0 %v4286
    %v4288 = vpop.f32.mrf.mxu0
    %v4289 = vadd.f32 %v4057, %v4288
    %v4290 = vpop.f32.mrf.mxu0
    %4291 = vdwg.mxu0
    %4292 = vmatprep.subr.mxu0 0.0
    %v4293 = vand.u32 %v451, 4294901760
    %v4294 = vsub.f32 %v451, %v4293
    %4295 = vmatpush1.msra.mxu0 %v4294
    %4296 = vmatprep.subr.mxu0 0.0
    %v4297 = vand.u32 %v450, 4294901760
    %v4298 = vsub.f32 %v450, %v4297
    %4299 = vmatpush1.msra.mxu0 %v4298
    %4300 = vmatprep.subr.mxu0 0.0
    %v4301 = vand.u32 %v449, 4294901760
    %v4302 = vsub.f32 %v449, %v4301
    %4303 = vmatpush1.msra.mxu0 %v4302
    %4304 = vmatprep.subr.mxu0 0.0
    %v4305 = vand.u32 %v448, 4294901760
    %v4306 = vsub.f32 %v448, %v4305
    %4307 = vmatpush1.msra.mxu0 %v4306
    %4308 = vmatprep.subr.mxu0 0.0
    %v4309 = vand.u32 %v447, 4294901760
    %v4310 = vsub.f32 %v447, %v4309
    %4311 = vmatpush1.msra.mxu0 %v4310
    %4312 = vmatprep.subr.mxu0 0.0
    %v4313 = vand.u32 %v446, 4294901760
    %v4314 = vsub.f32 %v446, %v4313
    %4315 = vmatpush1.msra.mxu0 %v4314
    %4316 = vmatprep.subr.mxu0 0.0
    %v4317 = vand.u32 %v445, 4294901760
    %v4318 = vsub.f32 %v445, %v4317
    %4319 = vmatpush1.msra.mxu0 %v4318
    %4320 = vmatprep.subr.mxu0 0.0
    %v4321 = vand.u32 %v444, 4294901760
    %v4322 = vsub.f32 %v444, %v4321
    %4323 = vmatpush1.msra.mxu0 %v4322
    %4324 = vmatprep.subr.mxu0 0.0
    %v4325 = vand.u32 %v443, 4294901760
    %v4326 = vsub.f32 %v443, %v4325
    %4327 = vmatpush1.msra.mxu0 %v4326
    %4328 = vmatprep.subr.mxu0 0.0
    %v4329 = vand.u32 %v442, 4294901760
    %v4330 = vsub.f32 %v442, %v4329
    %4331 = vmatpush1.msra.mxu0 %v4330
    %4332 = vmatprep.subr.mxu0 0.0
    %v4333 = vand.u32 %v441, 4294901760
    %v4334 = vsub.f32 %v441, %v4333
    %4335 = vmatpush1.msra.mxu0 %v4334
    %4336 = vmatprep.subr.mxu0 0.0
    %v4337 = vand.u32 %v440, 4294901760
    %v4338 = vsub.f32 %v440, %v4337
    %4339 = vmatpush1.msra.mxu0 %v4338
    %4340 = vmatprep.subr.mxu0 0.0
    %v4341 = vand.u32 %v439, 4294901760
    %v4342 = vsub.f32 %v439, %v4341
    %4343 = vmatpush1.msra.mxu0 %v4342
    %4344 = vmatprep.subr.mxu0 0.0
    %v4345 = vand.u32 %v438, 4294901760
    %v4346 = vsub.f32 %v438, %v4345
    %4347 = vmatpush1.msra.mxu0 %v4346
    %4348 = vmatprep.subr.mxu0 0.0
    %v4349 = vand.u32 %v437, 4294901760
    %v4350 = vsub.f32 %v437, %v4349
    %4351 = vmatpush1.msra.mxu0 %v4350
    %4352 = vmatprep.subr.mxu0 0.0
    %v4353 = vand.u32 %v436, 4294901760
    %v4354 = vsub.f32 %v436, %v4353
    %4355 = vmatpush1.msra.mxu0 %v4354
    %4356 = vmatprep.subr.mxu0 0.0
    %v4357 = vand.u32 %v467, 4294901760
    %v4358 = vsub.f32 %v467, %v4357
    %4359 = vmatpush2.msra.mxu0 %v4358
    %4360 = vmatprep.subr.mxu0 0.0
    %v4361 = vand.u32 %v466, 4294901760
    %v4362 = vsub.f32 %v466, %v4361
    %4363 = vmatpush2.msra.mxu0 %v4362
    %4364 = vmatprep.subr.mxu0 0.0
    %v4365 = vand.u32 %v465, 4294901760
    %v4366 = vsub.f32 %v465, %v4365
    %4367 = vmatpush2.msra.mxu0 %v4366
    %4368 = vmatprep.subr.mxu0 0.0
    %v4369 = vand.u32 %v464, 4294901760
    %v4370 = vsub.f32 %v464, %v4369
    %4371 = vmatpush2.msra.mxu0 %v4370
    %4372 = vmatprep.subr.mxu0 0.0
    %v4373 = vand.u32 %v463, 4294901760
    %v4374 = vsub.f32 %v463, %v4373
    %4375 = vmatpush2.msra.mxu0 %v4374
    %4376 = vmatprep.subr.mxu0 0.0
    %v4377 = vand.u32 %v462, 4294901760
    %v4378 = vsub.f32 %v462, %v4377
    %4379 = vmatpush2.msra.mxu0 %v4378
    %4380 = vmatprep.subr.mxu0 0.0
    %v4381 = vand.u32 %v461, 4294901760
    %v4382 = vsub.f32 %v461, %v4381
    %4383 = vmatpush2.msra.mxu0 %v4382
    %4384 = vmatprep.subr.mxu0 0.0
    %v4385 = vand.u32 %v460, 4294901760
    %v4386 = vsub.f32 %v460, %v4385
    %4387 = vmatpush2.msra.mxu0 %v4386
    %4388 = vmatprep.subr.mxu0 0.0
    %v4389 = vand.u32 %v459, 4294901760
    %v4390 = vsub.f32 %v459, %v4389
    %4391 = vmatpush2.msra.mxu0 %v4390
    %4392 = vmatprep.subr.mxu0 0.0
    %v4393 = vand.u32 %v458, 4294901760
    %v4394 = vsub.f32 %v458, %v4393
    %4395 = vmatpush2.msra.mxu0 %v4394
    %4396 = vmatprep.subr.mxu0 0.0
    %v4397 = vand.u32 %v457, 4294901760
    %v4398 = vsub.f32 %v457, %v4397
    %4399 = vmatpush2.msra.mxu0 %v4398
    %4400 = vmatprep.subr.mxu0 0.0
    %v4401 = vand.u32 %v456, 4294901760
    %v4402 = vsub.f32 %v456, %v4401
    %4403 = vmatpush2.msra.mxu0 %v4402
    %4404 = vmatprep.subr.mxu0 0.0
    %v4405 = vand.u32 %v455, 4294901760
    %v4406 = vsub.f32 %v455, %v4405
    %4407 = vmatpush2.msra.mxu0 %v4406
    %4408 = vmatprep.subr.mxu0 0.0
    %v4409 = vand.u32 %v454, 4294901760
    %v4410 = vsub.f32 %v454, %v4409
    %4411 = vmatpush2.msra.mxu0 %v4410
    %4412 = vmatprep.subr.mxu0 0.0
    %v4413 = vand.u32 %v453, 4294901760
    %v4414 = vsub.f32 %v453, %v4413
    %4415 = vmatpush2.msra.mxu0 %v4414
    %4416 = vmatprep.subr.mxu0 0.0
    %v4417 = vand.u32 %v452, 4294901760
    %v4418 = vsub.f32 %v452, %v4417
    %4419 = vmatpush2.msra.mxu0 %v4418
    %v4420 = vand.u32 %v229, 4294901760
    %v4421 = vsub.f32 %v229, %v4420
    %4422 = vmatprep.mubr.f32.mxu0 %v4421
    %v4423 = vand.u32 %v228, 4294901760
    %v4424 = vsub.f32 %v228, %v4423
    %4425 = vmatmul.mubr.f32.gmra.mxu0 %v4424
    %v4426 = vpop.f32.mrf.mxu0
    %v4427 = vadd.f32 %v4289, %v4426
    %v4428 = vpop.f32.mrf.mxu0
    %4429 = vdwg.mxu0
    %4430 = vmatprep.subr.mxu0 0.0
    %v4431 = vand.u32 %v451, 4294901760
    %4432 = vmatpush1.msra.mxu0 %v4431
    %4433 = vmatprep.subr.mxu0 0.0
    %v4434 = vand.u32 %v450, 4294901760
    %4435 = vmatpush1.msra.mxu0 %v4434
    %4436 = vmatprep.subr.mxu0 0.0
    %v4437 = vand.u32 %v449, 4294901760
    %4438 = vmatpush1.msra.mxu0 %v4437
    %4439 = vmatprep.subr.mxu0 0.0
    %v4440 = vand.u32 %v448, 4294901760
    %4441 = vmatpush1.msra.mxu0 %v4440
    %4442 = vmatprep.subr.mxu0 0.0
    %v4443 = vand.u32 %v447, 4294901760
    %4444 = vmatpush1.msra.mxu0 %v4443
    %4445 = vmatprep.subr.mxu0 0.0
    %v4446 = vand.u32 %v446, 4294901760
    %4447 = vmatpush1.msra.mxu0 %v4446
    %4448 = vmatprep.subr.mxu0 0.0
    %v4449 = vand.u32 %v445, 4294901760
    %4450 = vmatpush1.msra.mxu0 %v4449
    %4451 = vmatprep.subr.mxu0 0.0
    %v4452 = vand.u32 %v444, 4294901760
    %4453 = vmatpush1.msra.mxu0 %v4452
    %4454 = vmatprep.subr.mxu0 0.0
    %v4455 = vand.u32 %v443, 4294901760
    %4456 = vmatpush1.msra.mxu0 %v4455
    %4457 = vmatprep.subr.mxu0 0.0
    %v4458 = vand.u32 %v442, 4294901760
    %4459 = vmatpush1.msra.mxu0 %v4458
    %4460 = vmatprep.subr.mxu0 0.0
    %v4461 = vand.u32 %v441, 4294901760
    %4462 = vmatpush1.msra.mxu0 %v4461
    %4463 = vmatprep.subr.mxu0 0.0
    %v4464 = vand.u32 %v440, 4294901760
    %4465 = vmatpush1.msra.mxu0 %v4464
    %4466 = vmatprep.subr.mxu0 0.0
    %v4467 = vand.u32 %v439, 4294901760
    %4468 = vmatpush1.msra.mxu0 %v4467
    %4469 = vmatprep.subr.mxu0 0.0
    %v4470 = vand.u32 %v438, 4294901760
    %4471 = vmatpush1.msra.mxu0 %v4470
    %4472 = vmatprep.subr.mxu0 0.0
    %v4473 = vand.u32 %v437, 4294901760
    %4474 = vmatpush1.msra.mxu0 %v4473
    %4475 = vmatprep.subr.mxu0 0.0
    %v4476 = vand.u32 %v436, 4294901760
    %4477 = vmatpush1.msra.mxu0 %v4476
    %4478 = vmatprep.subr.mxu0 0.0
    %v4479 = vand.u32 %v467, 4294901760
    %4480 = vmatpush2.msra.mxu0 %v4479
    %4481 = vmatprep.subr.mxu0 0.0
    %v4482 = vand.u32 %v466, 4294901760
    %4483 = vmatpush2.msra.mxu0 %v4482
    %4484 = vmatprep.subr.mxu0 0.0
    %v4485 = vand.u32 %v465, 4294901760
    %4486 = vmatpush2.msra.mxu0 %v4485
    %4487 = vmatprep.subr.mxu0 0.0
    %v4488 = vand.u32 %v464, 4294901760
    %4489 = vmatpush2.msra.mxu0 %v4488
    %4490 = vmatprep.subr.mxu0 0.0
    %v4491 = vand.u32 %v463, 4294901760
    %4492 = vmatpush2.msra.mxu0 %v4491
    %4493 = vmatprep.subr.mxu0 0.0
    %v4494 = vand.u32 %v462, 4294901760
    %4495 = vmatpush2.msra.mxu0 %v4494
    %4496 = vmatprep.subr.mxu0 0.0
    %v4497 = vand.u32 %v461, 4294901760
    %4498 = vmatpush2.msra.mxu0 %v4497
    %4499 = vmatprep.subr.mxu0 0.0
    %v4500 = vand.u32 %v460, 4294901760
    %4501 = vmatpush2.msra.mxu0 %v4500
    %4502 = vmatprep.subr.mxu0 0.0
    %v4503 = vand.u32 %v459, 4294901760
    %4504 = vmatpush2.msra.mxu0 %v4503
    %4505 = vmatprep.subr.mxu0 0.0
    %v4506 = vand.u32 %v458, 4294901760
    %4507 = vmatpush2.msra.mxu0 %v4506
    %4508 = vmatprep.subr.mxu0 0.0
    %v4509 = vand.u32 %v457, 4294901760
    %4510 = vmatpush2.msra.mxu0 %v4509
    %4511 = vmatprep.subr.mxu0 0.0
    %v4512 = vand.u32 %v456, 4294901760
    %4513 = vmatpush2.msra.mxu0 %v4512
    %4514 = vmatprep.subr.mxu0 0.0
    %v4515 = vand.u32 %v455, 4294901760
    %4516 = vmatpush2.msra.mxu0 %v4515
    %4517 = vmatprep.subr.mxu0 0.0
    %v4518 = vand.u32 %v454, 4294901760
    %4519 = vmatpush2.msra.mxu0 %v4518
    %4520 = vmatprep.subr.mxu0 0.0
    %v4521 = vand.u32 %v453, 4294901760
    %4522 = vmatpush2.msra.mxu0 %v4521
    %4523 = vmatprep.subr.mxu0 0.0
    %v4524 = vand.u32 %v452, 4294901760
    %4525 = vmatpush2.msra.mxu0 %v4524
    %v4526 = vand.u32 %v229, 4294901760
    %v4527 = vsub.f32 %v229, %v4526
    %v4528 = vand.u32 %v4527, 4294901760
    %4529 = vmatprep.mubr.f32.mxu0 %v4528
    %v4530 = vand.u32 %v228, 4294901760
    %v4531 = vsub.f32 %v228, %v4530
    %v4532 = vand.u32 %v4531, 4294901760
    %4533 = vmatmul.mubr.f32.gmra.mxu0 %v4532
    %v4534 = vpop.f32.mrf.mxu0
    %v4535 = vadd.f32 %v4427, %v4534
    %v4536 = vpop.f32.mrf.mxu0
    %4537 = vdwg.mxu0
    %4538 = vmatprep.subr.mxu0 0.0
    %v4539 = vand.u32 %v451, 4294901760
    %v4540 = vsub.f32 %v451, %v4539
    %v4541 = vand.u32 %v4540, 4294901760
    %4542 = vmatpush1.msra.mxu0 %v4541
    %4543 = vmatprep.subr.mxu0 0.0
    %v4544 = vand.u32 %v450, 4294901760
    %v4545 = vsub.f32 %v450, %v4544
    %v4546 = vand.u32 %v4545, 4294901760
    %4547 = vmatpush1.msra.mxu0 %v4546
    %4548 = vmatprep.subr.mxu0 0.0
    %v4549 = vand.u32 %v449, 4294901760
    %v4550 = vsub.f32 %v449, %v4549
    %v4551 = vand.u32 %v4550, 4294901760
    %4552 = vmatpush1.msra.mxu0 %v4551
    %4553 = vmatprep.subr.mxu0 0.0
    %v4554 = vand.u32 %v448, 4294901760
    %v4555 = vsub.f32 %v448, %v4554
    %v4556 = vand.u32 %v4555, 4294901760
    %4557 = vmatpush1.msra.mxu0 %v4556
    %4558 = vmatprep.subr.mxu0 0.0
    %v4559 = vand.u32 %v447, 4294901760
    %v4560 = vsub.f32 %v447, %v4559
    %v4561 = vand.u32 %v4560, 4294901760
    %4562 = vmatpush1.msra.mxu0 %v4561
    %4563 = vmatprep.subr.mxu0 0.0
    %v4564 = vand.u32 %v446, 4294901760
    %v4565 = vsub.f32 %v446, %v4564
    %v4566 = vand.u32 %v4565, 4294901760
    %4567 = vmatpush1.msra.mxu0 %v4566
    %4568 = vmatprep.subr.mxu0 0.0
    %v4569 = vand.u32 %v445, 4294901760
    %v4570 = vsub.f32 %v445, %v4569
    %v4571 = vand.u32 %v4570, 4294901760
    %4572 = vmatpush1.msra.mxu0 %v4571
    %4573 = vmatprep.subr.mxu0 0.0
    %v4574 = vand.u32 %v444, 4294901760
    %v4575 = vsub.f32 %v444, %v4574
    %v4576 = vand.u32 %v4575, 4294901760
    %4577 = vmatpush1.msra.mxu0 %v4576
    %4578 = vmatprep.subr.mxu0 0.0
    %v4579 = vand.u32 %v443, 4294901760
    %v4580 = vsub.f32 %v443, %v4579
    %v4581 = vand.u32 %v4580, 4294901760
    %4582 = vmatpush1.msra.mxu0 %v4581
    %4583 = vmatprep.subr.mxu0 0.0
    %v4584 = vand.u32 %v442, 4294901760
    %v4585 = vsub.f32 %v442, %v4584
    %v4586 = vand.u32 %v4585, 4294901760
    %4587 = vmatpush1.msra.mxu0 %v4586
    %4588 = vmatprep.subr.mxu0 0.0
    %v4589 = vand.u32 %v441, 4294901760
    %v4590 = vsub.f32 %v441, %v4589
    %v4591 = vand.u32 %v4590, 4294901760
    %4592 = vmatpush1.msra.mxu0 %v4591
    %4593 = vmatprep.subr.mxu0 0.0
    %v4594 = vand.u32 %v440, 4294901760
    %v4595 = vsub.f32 %v440, %v4594
    %v4596 = vand.u32 %v4595, 4294901760
    %4597 = vmatpush1.msra.mxu0 %v4596
    %4598 = vmatprep.subr.mxu0 0.0
    %v4599 = vand.u32 %v439, 4294901760
    %v4600 = vsub.f32 %v439, %v4599
    %v4601 = vand.u32 %v4600, 4294901760
    %4602 = vmatpush1.msra.mxu0 %v4601
    %4603 = vmatprep.subr.mxu0 0.0
    %v4604 = vand.u32 %v438, 4294901760
    %v4605 = vsub.f32 %v438, %v4604
    %v4606 = vand.u32 %v4605, 4294901760
    %4607 = vmatpush1.msra.mxu0 %v4606
    %4608 = vmatprep.subr.mxu0 0.0
    %v4609 = vand.u32 %v437, 4294901760
    %v4610 = vsub.f32 %v437, %v4609
    %v4611 = vand.u32 %v4610, 4294901760
    %4612 = vmatpush1.msra.mxu0 %v4611
    %4613 = vmatprep.subr.mxu0 0.0
    %v4614 = vand.u32 %v436, 4294901760
    %v4615 = vsub.f32 %v436, %v4614
    %v4616 = vand.u32 %v4615, 4294901760
    %4617 = vmatpush1.msra.mxu0 %v4616
    %4618 = vmatprep.subr.mxu0 0.0
    %v4619 = vand.u32 %v467, 4294901760
    %v4620 = vsub.f32 %v467, %v4619
    %v4621 = vand.u32 %v4620, 4294901760
    %4622 = vmatpush2.msra.mxu0 %v4621
    %4623 = vmatprep.subr.mxu0 0.0
    %v4624 = vand.u32 %v466, 4294901760
    %v4625 = vsub.f32 %v466, %v4624
    %v4626 = vand.u32 %v4625, 4294901760
    %4627 = vmatpush2.msra.mxu0 %v4626
    %4628 = vmatprep.subr.mxu0 0.0
    %v4629 = vand.u32 %v465, 4294901760
    %v4630 = vsub.f32 %v465, %v4629
    %v4631 = vand.u32 %v4630, 4294901760
    %4632 = vmatpush2.msra.mxu0 %v4631
    %4633 = vmatprep.subr.mxu0 0.0
    %v4634 = vand.u32 %v464, 4294901760
    %v4635 = vsub.f32 %v464, %v4634
    %v4636 = vand.u32 %v4635, 4294901760
    %4637 = vmatpush2.msra.mxu0 %v4636
    %4638 = vmatprep.subr.mxu0 0.0
    %v4639 = vand.u32 %v463, 4294901760
    %v4640 = vsub.f32 %v463, %v4639
    %v4641 = vand.u32 %v4640, 4294901760
    %4642 = vmatpush2.msra.mxu0 %v4641
    %4643 = vmatprep.subr.mxu0 0.0
    %v4644 = vand.u32 %v462, 4294901760
    %v4645 = vsub.f32 %v462, %v4644
    %v4646 = vand.u32 %v4645, 4294901760
    %4647 = vmatpush2.msra.mxu0 %v4646
    %4648 = vmatprep.subr.mxu0 0.0
    %v4649 = vand.u32 %v461, 4294901760
    %v4650 = vsub.f32 %v461, %v4649
    %v4651 = vand.u32 %v4650, 4294901760
    %4652 = vmatpush2.msra.mxu0 %v4651
    %4653 = vmatprep.subr.mxu0 0.0
    %v4654 = vand.u32 %v460, 4294901760
    %v4655 = vsub.f32 %v460, %v4654
    %v4656 = vand.u32 %v4655, 4294901760
    %4657 = vmatpush2.msra.mxu0 %v4656
    %4658 = vmatprep.subr.mxu0 0.0
    %v4659 = vand.u32 %v459, 4294901760
    %v4660 = vsub.f32 %v459, %v4659
    %v4661 = vand.u32 %v4660, 4294901760
    %4662 = vmatpush2.msra.mxu0 %v4661
    %4663 = vmatprep.subr.mxu0 0.0
    %v4664 = vand.u32 %v458, 4294901760
    %v4665 = vsub.f32 %v458, %v4664
    %v4666 = vand.u32 %v4665, 4294901760
    %4667 = vmatpush2.msra.mxu0 %v4666
    %4668 = vmatprep.subr.mxu0 0.0
    %v4669 = vand.u32 %v457, 4294901760
    %v4670 = vsub.f32 %v457, %v4669
    %v4671 = vand.u32 %v4670, 4294901760
    %4672 = vmatpush2.msra.mxu0 %v4671
    %4673 = vmatprep.subr.mxu0 0.0
    %v4674 = vand.u32 %v456, 4294901760
    %v4675 = vsub.f32 %v456, %v4674
    %v4676 = vand.u32 %v4675, 4294901760
    %4677 = vmatpush2.msra.mxu0 %v4676
    %4678 = vmatprep.subr.mxu0 0.0
    %v4679 = vand.u32 %v455, 4294901760
    %v4680 = vsub.f32 %v455, %v4679
    %v4681 = vand.u32 %v4680, 4294901760
    %4682 = vmatpush2.msra.mxu0 %v4681
    %4683 = vmatprep.subr.mxu0 0.0
    %v4684 = vand.u32 %v454, 4294901760
    %v4685 = vsub.f32 %v454, %v4684
    %v4686 = vand.u32 %v4685, 4294901760
    %4687 = vmatpush2.msra.mxu0 %v4686
    %4688 = vmatprep.subr.mxu0 0.0
    %v4689 = vand.u32 %v453, 4294901760
    %v4690 = vsub.f32 %v453, %v4689
    %v4691 = vand.u32 %v4690, 4294901760
    %4692 = vmatpush2.msra.mxu0 %v4691
    %4693 = vmatprep.subr.mxu0 0.0
    %v4694 = vand.u32 %v452, 4294901760
    %v4695 = vsub.f32 %v452, %v4694
    %v4696 = vand.u32 %v4695, 4294901760
    %4697 = vmatpush2.msra.mxu0 %v4696
    %v4698 = vand.u32 %v229, 4294901760
    %4699 = vmatprep.mubr.f32.mxu0 %v4698
    %v4700 = vand.u32 %v228, 4294901760
    %4701 = vmatmul.mubr.f32.gmra.mxu0 %v4700
    %v4702 = vpop.f32.mrf.mxu0
    %v4703 = vadd.f32 %v4535, %v4702
    %v4704 = vpop.f32.mrf.mxu0
    %4705 = vdwg.mxu0
    %4706 = vmatprep.subr.mxu0 0.0
    %v4707 = vand.u32 %v451, 4294901760
    %4708 = vmatpush1.msra.mxu0 %v4707
    %4709 = vmatprep.subr.mxu0 0.0
    %v4710 = vand.u32 %v450, 4294901760
    %4711 = vmatpush1.msra.mxu0 %v4710
    %4712 = vmatprep.subr.mxu0 0.0
    %v4713 = vand.u32 %v449, 4294901760
    %4714 = vmatpush1.msra.mxu0 %v4713
    %4715 = vmatprep.subr.mxu0 0.0
    %v4716 = vand.u32 %v448, 4294901760
    %4717 = vmatpush1.msra.mxu0 %v4716
    %4718 = vmatprep.subr.mxu0 0.0
    %v4719 = vand.u32 %v447, 4294901760
    %4720 = vmatpush1.msra.mxu0 %v4719
    %4721 = vmatprep.subr.mxu0 0.0
    %v4722 = vand.u32 %v446, 4294901760
    %4723 = vmatpush1.msra.mxu0 %v4722
    %4724 = vmatprep.subr.mxu0 0.0
    %v4725 = vand.u32 %v445, 4294901760
    %4726 = vmatpush1.msra.mxu0 %v4725
    %4727 = vmatprep.subr.mxu0 0.0
    %v4728 = vand.u32 %v444, 4294901760
    %4729 = vmatpush1.msra.mxu0 %v4728
    %4730 = vmatprep.subr.mxu0 0.0
    %v4731 = vand.u32 %v443, 4294901760
    %4732 = vmatpush1.msra.mxu0 %v4731
    %4733 = vmatprep.subr.mxu0 0.0
    %v4734 = vand.u32 %v442, 4294901760
    %4735 = vmatpush1.msra.mxu0 %v4734
    %4736 = vmatprep.subr.mxu0 0.0
    %v4737 = vand.u32 %v441, 4294901760
    %4738 = vmatpush1.msra.mxu0 %v4737
    %4739 = vmatprep.subr.mxu0 0.0
    %v4740 = vand.u32 %v440, 4294901760
    %4741 = vmatpush1.msra.mxu0 %v4740
    %4742 = vmatprep.subr.mxu0 0.0
    %v4743 = vand.u32 %v439, 4294901760
    %4744 = vmatpush1.msra.mxu0 %v4743
    %4745 = vmatprep.subr.mxu0 0.0
    %v4746 = vand.u32 %v438, 4294901760
    %4747 = vmatpush1.msra.mxu0 %v4746
    %4748 = vmatprep.subr.mxu0 0.0
    %v4749 = vand.u32 %v437, 4294901760
    %4750 = vmatpush1.msra.mxu0 %v4749
    %4751 = vmatprep.subr.mxu0 0.0
    %v4752 = vand.u32 %v436, 4294901760
    %4753 = vmatpush1.msra.mxu0 %v4752
    %4754 = vmatprep.subr.mxu0 0.0
    %v4755 = vand.u32 %v467, 4294901760
    %4756 = vmatpush2.msra.mxu0 %v4755
    %4757 = vmatprep.subr.mxu0 0.0
    %v4758 = vand.u32 %v466, 4294901760
    %4759 = vmatpush2.msra.mxu0 %v4758
    %4760 = vmatprep.subr.mxu0 0.0
    %v4761 = vand.u32 %v465, 4294901760
    %4762 = vmatpush2.msra.mxu0 %v4761
    %4763 = vmatprep.subr.mxu0 0.0
    %v4764 = vand.u32 %v464, 4294901760
    %4765 = vmatpush2.msra.mxu0 %v4764
    %4766 = vmatprep.subr.mxu0 0.0
    %v4767 = vand.u32 %v463, 4294901760
    %4768 = vmatpush2.msra.mxu0 %v4767
    %4769 = vmatprep.subr.mxu0 0.0
    %v4770 = vand.u32 %v462, 4294901760
    %4771 = vmatpush2.msra.mxu0 %v4770
    %4772 = vmatprep.subr.mxu0 0.0
    %v4773 = vand.u32 %v461, 4294901760
    %4774 = vmatpush2.msra.mxu0 %v4773
    %4775 = vmatprep.subr.mxu0 0.0
    %v4776 = vand.u32 %v460, 4294901760
    %4777 = vmatpush2.msra.mxu0 %v4776
    %4778 = vmatprep.subr.mxu0 0.0
    %v4779 = vand.u32 %v459, 4294901760
    %4780 = vmatpush2.msra.mxu0 %v4779
    %4781 = vmatprep.subr.mxu0 0.0
    %v4782 = vand.u32 %v458, 4294901760
    %4783 = vmatpush2.msra.mxu0 %v4782
    %4784 = vmatprep.subr.mxu0 0.0
    %v4785 = vand.u32 %v457, 4294901760
    %4786 = vmatpush2.msra.mxu0 %v4785
    %4787 = vmatprep.subr.mxu0 0.0
    %v4788 = vand.u32 %v456, 4294901760
    %4789 = vmatpush2.msra.mxu0 %v4788
    %4790 = vmatprep.subr.mxu0 0.0
    %v4791 = vand.u32 %v455, 4294901760
    %4792 = vmatpush2.msra.mxu0 %v4791
    %4793 = vmatprep.subr.mxu0 0.0
    %v4794 = vand.u32 %v454, 4294901760
    %4795 = vmatpush2.msra.mxu0 %v4794
    %4796 = vmatprep.subr.mxu0 0.0
    %v4797 = vand.u32 %v453, 4294901760
    %4798 = vmatpush2.msra.mxu0 %v4797
    %4799 = vmatprep.subr.mxu0 0.0
    %v4800 = vand.u32 %v452, 4294901760
    %4801 = vmatpush2.msra.mxu0 %v4800
    %v4802 = vand.u32 %v229, 4294901760
    %4803 = vmatprep.mubr.f32.mxu0 %v4802
    %v4804 = vand.u32 %v228, 4294901760
    %4805 = vmatmul.mubr.f32.gmra.mxu0 %v4804
    %v4806 = vpop.f32.mrf.mxu0
    %v4807 = vadd.f32 %v4703, %v4806
    %v4808 = vpop.f32.mrf.mxu0
    %4809 = vdwg.mxu0
    %4810 = vmatprep.subr.mxu0 0.0
    %v4811 = vand.u32 %v483, 4294901760
    %4812 = vmatpush1.msra.mxu0 %v4811
    %4813 = vmatprep.subr.mxu0 0.0
    %v4814 = vand.u32 %v482, 4294901760
    %4815 = vmatpush1.msra.mxu0 %v4814
    %4816 = vmatprep.subr.mxu0 0.0
    %v4817 = vand.u32 %v481, 4294901760
    %4818 = vmatpush1.msra.mxu0 %v4817
    %4819 = vmatprep.subr.mxu0 0.0
    %v4820 = vand.u32 %v480, 4294901760
    %4821 = vmatpush1.msra.mxu0 %v4820
    %4822 = vmatprep.subr.mxu0 0.0
    %v4823 = vand.u32 %v479, 4294901760
    %4824 = vmatpush1.msra.mxu0 %v4823
    %4825 = vmatprep.subr.mxu0 0.0
    %v4826 = vand.u32 %v478, 4294901760
    %4827 = vmatpush1.msra.mxu0 %v4826
    %4828 = vmatprep.subr.mxu0 0.0
    %v4829 = vand.u32 %v477, 4294901760
    %4830 = vmatpush1.msra.mxu0 %v4829
    %4831 = vmatprep.subr.mxu0 0.0
    %v4832 = vand.u32 %v476, 4294901760
    %4833 = vmatpush1.msra.mxu0 %v4832
    %4834 = vmatprep.subr.mxu0 0.0
    %v4835 = vand.u32 %v475, 4294901760
    %4836 = vmatpush1.msra.mxu0 %v4835
    %4837 = vmatprep.subr.mxu0 0.0
    %v4838 = vand.u32 %v474, 4294901760
    %4839 = vmatpush1.msra.mxu0 %v4838
    %4840 = vmatprep.subr.mxu0 0.0
    %v4841 = vand.u32 %v473, 4294901760
    %4842 = vmatpush1.msra.mxu0 %v4841
    %4843 = vmatprep.subr.mxu0 0.0
    %v4844 = vand.u32 %v472, 4294901760
    %4845 = vmatpush1.msra.mxu0 %v4844
    %4846 = vmatprep.subr.mxu0 0.0
    %v4847 = vand.u32 %v471, 4294901760
    %4848 = vmatpush1.msra.mxu0 %v4847
    %4849 = vmatprep.subr.mxu0 0.0
    %v4850 = vand.u32 %v470, 4294901760
    %4851 = vmatpush1.msra.mxu0 %v4850
    %4852 = vmatprep.subr.mxu0 0.0
    %v4853 = vand.u32 %v469, 4294901760
    %4854 = vmatpush1.msra.mxu0 %v4853
    %4855 = vmatprep.subr.mxu0 0.0
    %v4856 = vand.u32 %v468, 4294901760
    %4857 = vmatpush1.msra.mxu0 %v4856
    %4858 = vmatprep.subr.mxu0 0.0
    %v4859 = vand.u32 %v499, 4294901760
    %4860 = vmatpush2.msra.mxu0 %v4859
    %4861 = vmatprep.subr.mxu0 0.0
    %v4862 = vand.u32 %v498, 4294901760
    %4863 = vmatpush2.msra.mxu0 %v4862
    %4864 = vmatprep.subr.mxu0 0.0
    %v4865 = vand.u32 %v497, 4294901760
    %4866 = vmatpush2.msra.mxu0 %v4865
    %4867 = vmatprep.subr.mxu0 0.0
    %v4868 = vand.u32 %v496, 4294901760
    %4869 = vmatpush2.msra.mxu0 %v4868
    %4870 = vmatprep.subr.mxu0 0.0
    %v4871 = vand.u32 %v495, 4294901760
    %4872 = vmatpush2.msra.mxu0 %v4871
    %4873 = vmatprep.subr.mxu0 0.0
    %v4874 = vand.u32 %v494, 4294901760
    %4875 = vmatpush2.msra.mxu0 %v4874
    %4876 = vmatprep.subr.mxu0 0.0
    %v4877 = vand.u32 %v493, 4294901760
    %4878 = vmatpush2.msra.mxu0 %v4877
    %4879 = vmatprep.subr.mxu0 0.0
    %v4880 = vand.u32 %v492, 4294901760
    %4881 = vmatpush2.msra.mxu0 %v4880
    %4882 = vmatprep.subr.mxu0 0.0
    %v4883 = vand.u32 %v491, 4294901760
    %4884 = vmatpush2.msra.mxu0 %v4883
    %4885 = vmatprep.subr.mxu0 0.0
    %v4886 = vand.u32 %v490, 4294901760
    %4887 = vmatpush2.msra.mxu0 %v4886
    %4888 = vmatprep.subr.mxu0 0.0
    %v4889 = vand.u32 %v489, 4294901760
    %4890 = vmatpush2.msra.mxu0 %v4889
    %4891 = vmatprep.subr.mxu0 0.0
    %v4892 = vand.u32 %v488, 4294901760
    %4893 = vmatpush2.msra.mxu0 %v4892
    %4894 = vmatprep.subr.mxu0 0.0
    %v4895 = vand.u32 %v487, 4294901760
    %4896 = vmatpush2.msra.mxu0 %v4895
    %4897 = vmatprep.subr.mxu0 0.0
    %v4898 = vand.u32 %v486, 4294901760
    %4899 = vmatpush2.msra.mxu0 %v4898
    %4900 = vmatprep.subr.mxu0 0.0
    %v4901 = vand.u32 %v485, 4294901760
    %4902 = vmatpush2.msra.mxu0 %v4901
    %4903 = vmatprep.subr.mxu0 0.0
    %v4904 = vand.u32 %v484, 4294901760
    %4905 = vmatpush2.msra.mxu0 %v4904
    %v4906 = vand.u32 %v231, 4294901760
    %v4907 = vsub.f32 %v231, %v4906
    %v4908 = vand.u32 %v4907, 4294901760
    %v4909 = vsub.f32 %v4907, %v4908
    %v4910 = vand.u32 %v4909, 4294901760
    %4911 = vmatprep.mubr.f32.mxu0 %v4910
    %v4912 = vand.u32 %v230, 4294901760
    %v4913 = vsub.f32 %v230, %v4912
    %v4914 = vand.u32 %v4913, 4294901760
    %v4915 = vsub.f32 %v4913, %v4914
    %v4916 = vand.u32 %v4915, 4294901760
    %4917 = vmatmul.mubr.f32.gmra.mxu0 %v4916
    %v4918 = vpop.f32.mrf.mxu0
    %v4919 = vadd.f32 %v4807, %v4918
    %v4920 = vpop.f32.mrf.mxu0
    %4921 = vdwg.mxu0
    %4922 = vmatprep.subr.mxu0 0.0
    %v4923 = vand.u32 %v483, 4294901760
    %v4924 = vsub.f32 %v483, %v4923
    %v4925 = vand.u32 %v4924, 4294901760
    %v4926 = vsub.f32 %v4924, %v4925
    %v4927 = vand.u32 %v4926, 4294901760
    %4928 = vmatpush1.msra.mxu0 %v4927
    %4929 = vmatprep.subr.mxu0 0.0
    %v4930 = vand.u32 %v482, 4294901760
    %v4931 = vsub.f32 %v482, %v4930
    %v4932 = vand.u32 %v4931, 4294901760
    %v4933 = vsub.f32 %v4931, %v4932
    %v4934 = vand.u32 %v4933, 4294901760
    %4935 = vmatpush1.msra.mxu0 %v4934
    %4936 = vmatprep.subr.mxu0 0.0
    %v4937 = vand.u32 %v481, 4294901760
    %v4938 = vsub.f32 %v481, %v4937
    %v4939 = vand.u32 %v4938, 4294901760
    %v4940 = vsub.f32 %v4938, %v4939
    %v4941 = vand.u32 %v4940, 4294901760
    %4942 = vmatpush1.msra.mxu0 %v4941
    %4943 = vmatprep.subr.mxu0 0.0
    %v4944 = vand.u32 %v480, 4294901760
    %v4945 = vsub.f32 %v480, %v4944
    %v4946 = vand.u32 %v4945, 4294901760
    %v4947 = vsub.f32 %v4945, %v4946
    %v4948 = vand.u32 %v4947, 4294901760
    %4949 = vmatpush1.msra.mxu0 %v4948
    %4950 = vmatprep.subr.mxu0 0.0
    %v4951 = vand.u32 %v479, 4294901760
    %v4952 = vsub.f32 %v479, %v4951
    %v4953 = vand.u32 %v4952, 4294901760
    %v4954 = vsub.f32 %v4952, %v4953
    %v4955 = vand.u32 %v4954, 4294901760
    %4956 = vmatpush1.msra.mxu0 %v4955
    %4957 = vmatprep.subr.mxu0 0.0
    %v4958 = vand.u32 %v478, 4294901760
    %v4959 = vsub.f32 %v478, %v4958
    %v4960 = vand.u32 %v4959, 4294901760
    %v4961 = vsub.f32 %v4959, %v4960
    %v4962 = vand.u32 %v4961, 4294901760
    %4963 = vmatpush1.msra.mxu0 %v4962
    %4964 = vmatprep.subr.mxu0 0.0
    %v4965 = vand.u32 %v477, 4294901760
    %v4966 = vsub.f32 %v477, %v4965
    %v4967 = vand.u32 %v4966, 4294901760
    %v4968 = vsub.f32 %v4966, %v4967
    %v4969 = vand.u32 %v4968, 4294901760
    %4970 = vmatpush1.msra.mxu0 %v4969
    %4971 = vmatprep.subr.mxu0 0.0
    %v4972 = vand.u32 %v476, 4294901760
    %v4973 = vsub.f32 %v476, %v4972
    %v4974 = vand.u32 %v4973, 4294901760
    %v4975 = vsub.f32 %v4973, %v4974
    %v4976 = vand.u32 %v4975, 4294901760
    %4977 = vmatpush1.msra.mxu0 %v4976
    %4978 = vmatprep.subr.mxu0 0.0
    %v4979 = vand.u32 %v475, 4294901760
    %v4980 = vsub.f32 %v475, %v4979
    %v4981 = vand.u32 %v4980, 4294901760
    %v4982 = vsub.f32 %v4980, %v4981
    %v4983 = vand.u32 %v4982, 4294901760
    %4984 = vmatpush1.msra.mxu0 %v4983
    %4985 = vmatprep.subr.mxu0 0.0
    %v4986 = vand.u32 %v474, 4294901760
    %v4987 = vsub.f32 %v474, %v4986
    %v4988 = vand.u32 %v4987, 4294901760
    %v4989 = vsub.f32 %v4987, %v4988
    %v4990 = vand.u32 %v4989, 4294901760
    %4991 = vmatpush1.msra.mxu0 %v4990
    %4992 = vmatprep.subr.mxu0 0.0
    %v4993 = vand.u32 %v473, 4294901760
    %v4994 = vsub.f32 %v473, %v4993
    %v4995 = vand.u32 %v4994, 4294901760
    %v4996 = vsub.f32 %v4994, %v4995
    %v4997 = vand.u32 %v4996, 4294901760
    %4998 = vmatpush1.msra.mxu0 %v4997
    %4999 = vmatprep.subr.mxu0 0.0
    %v5000 = vand.u32 %v472, 4294901760
    %v5001 = vsub.f32 %v472, %v5000
    %v5002 = vand.u32 %v5001, 4294901760
    %v5003 = vsub.f32 %v5001, %v5002
    %v5004 = vand.u32 %v5003, 4294901760
    %5005 = vmatpush1.msra.mxu0 %v5004
    %5006 = vmatprep.subr.mxu0 0.0
    %v5007 = vand.u32 %v471, 4294901760
    %v5008 = vsub.f32 %v471, %v5007
    %v5009 = vand.u32 %v5008, 4294901760
    %v5010 = vsub.f32 %v5008, %v5009
    %v5011 = vand.u32 %v5010, 4294901760
    %5012 = vmatpush1.msra.mxu0 %v5011
    %5013 = vmatprep.subr.mxu0 0.0
    %v5014 = vand.u32 %v470, 4294901760
    %v5015 = vsub.f32 %v470, %v5014
    %v5016 = vand.u32 %v5015, 4294901760
    %v5017 = vsub.f32 %v5015, %v5016
    %v5018 = vand.u32 %v5017, 4294901760
    %5019 = vmatpush1.msra.mxu0 %v5018
    %5020 = vmatprep.subr.mxu0 0.0
    %v5021 = vand.u32 %v469, 4294901760
    %v5022 = vsub.f32 %v469, %v5021
    %v5023 = vand.u32 %v5022, 4294901760
    %v5024 = vsub.f32 %v5022, %v5023
    %v5025 = vand.u32 %v5024, 4294901760
    %5026 = vmatpush1.msra.mxu0 %v5025
    %5027 = vmatprep.subr.mxu0 0.0
    %v5028 = vand.u32 %v468, 4294901760
    %v5029 = vsub.f32 %v468, %v5028
    %v5030 = vand.u32 %v5029, 4294901760
    %v5031 = vsub.f32 %v5029, %v5030
    %v5032 = vand.u32 %v5031, 4294901760
    %5033 = vmatpush1.msra.mxu0 %v5032
    %5034 = vmatprep.subr.mxu0 0.0
    %v5035 = vand.u32 %v499, 4294901760
    %v5036 = vsub.f32 %v499, %v5035
    %v5037 = vand.u32 %v5036, 4294901760
    %v5038 = vsub.f32 %v5036, %v5037
    %v5039 = vand.u32 %v5038, 4294901760
    %5040 = vmatpush2.msra.mxu0 %v5039
    %5041 = vmatprep.subr.mxu0 0.0
    %v5042 = vand.u32 %v498, 4294901760
    %v5043 = vsub.f32 %v498, %v5042
    %v5044 = vand.u32 %v5043, 4294901760
    %v5045 = vsub.f32 %v5043, %v5044
    %v5046 = vand.u32 %v5045, 4294901760
    %5047 = vmatpush2.msra.mxu0 %v5046
    %5048 = vmatprep.subr.mxu0 0.0
    %v5049 = vand.u32 %v497, 4294901760
    %v5050 = vsub.f32 %v497, %v5049
    %v5051 = vand.u32 %v5050, 4294901760
    %v5052 = vsub.f32 %v5050, %v5051
    %v5053 = vand.u32 %v5052, 4294901760
    %5054 = vmatpush2.msra.mxu0 %v5053
    %5055 = vmatprep.subr.mxu0 0.0
    %v5056 = vand.u32 %v496, 4294901760
    %v5057 = vsub.f32 %v496, %v5056
    %v5058 = vand.u32 %v5057, 4294901760
    %v5059 = vsub.f32 %v5057, %v5058
    %v5060 = vand.u32 %v5059, 4294901760
    %5061 = vmatpush2.msra.mxu0 %v5060
    %5062 = vmatprep.subr.mxu0 0.0
    %v5063 = vand.u32 %v495, 4294901760
    %v5064 = vsub.f32 %v495, %v5063
    %v5065 = vand.u32 %v5064, 4294901760
    %v5066 = vsub.f32 %v5064, %v5065
    %v5067 = vand.u32 %v5066, 4294901760
    %5068 = vmatpush2.msra.mxu0 %v5067
    %5069 = vmatprep.subr.mxu0 0.0
    %v5070 = vand.u32 %v494, 4294901760
    %v5071 = vsub.f32 %v494, %v5070
    %v5072 = vand.u32 %v5071, 4294901760
    %v5073 = vsub.f32 %v5071, %v5072
    %v5074 = vand.u32 %v5073, 4294901760
    %5075 = vmatpush2.msra.mxu0 %v5074
    %5076 = vmatprep.subr.mxu0 0.0
    %v5077 = vand.u32 %v493, 4294901760
    %v5078 = vsub.f32 %v493, %v5077
    %v5079 = vand.u32 %v5078, 4294901760
    %v5080 = vsub.f32 %v5078, %v5079
    %v5081 = vand.u32 %v5080, 4294901760
    %5082 = vmatpush2.msra.mxu0 %v5081
    %5083 = vmatprep.subr.mxu0 0.0
    %v5084 = vand.u32 %v492, 4294901760
    %v5085 = vsub.f32 %v492, %v5084
    %v5086 = vand.u32 %v5085, 4294901760
    %v5087 = vsub.f32 %v5085, %v5086
    %v5088 = vand.u32 %v5087, 4294901760
    %5089 = vmatpush2.msra.mxu0 %v5088
    %5090 = vmatprep.subr.mxu0 0.0
    %v5091 = vand.u32 %v491, 4294901760
    %v5092 = vsub.f32 %v491, %v5091
    %v5093 = vand.u32 %v5092, 4294901760
    %v5094 = vsub.f32 %v5092, %v5093
    %v5095 = vand.u32 %v5094, 4294901760
    %5096 = vmatpush2.msra.mxu0 %v5095
    %5097 = vmatprep.subr.mxu0 0.0
    %v5098 = vand.u32 %v490, 4294901760
    %v5099 = vsub.f32 %v490, %v5098
    %v5100 = vand.u32 %v5099, 4294901760
    %v5101 = vsub.f32 %v5099, %v5100
    %v5102 = vand.u32 %v5101, 4294901760
    %5103 = vmatpush2.msra.mxu0 %v5102
    %5104 = vmatprep.subr.mxu0 0.0
    %v5105 = vand.u32 %v489, 4294901760
    %v5106 = vsub.f32 %v489, %v5105
    %v5107 = vand.u32 %v5106, 4294901760
    %v5108 = vsub.f32 %v5106, %v5107
    %v5109 = vand.u32 %v5108, 4294901760
    %5110 = vmatpush2.msra.mxu0 %v5109
    %5111 = vmatprep.subr.mxu0 0.0
    %v5112 = vand.u32 %v488, 4294901760
    %v5113 = vsub.f32 %v488, %v5112
    %v5114 = vand.u32 %v5113, 4294901760
    %v5115 = vsub.f32 %v5113, %v5114
    %v5116 = vand.u32 %v5115, 4294901760
    %5117 = vmatpush2.msra.mxu0 %v5116
    %5118 = vmatprep.subr.mxu0 0.0
    %v5119 = vand.u32 %v487, 4294901760
    %v5120 = vsub.f32 %v487, %v5119
    %v5121 = vand.u32 %v5120, 4294901760
    %v5122 = vsub.f32 %v5120, %v5121
    %v5123 = vand.u32 %v5122, 4294901760
    %5124 = vmatpush2.msra.mxu0 %v5123
    %5125 = vmatprep.subr.mxu0 0.0
    %v5126 = vand.u32 %v486, 4294901760
    %v5127 = vsub.f32 %v486, %v5126
    %v5128 = vand.u32 %v5127, 4294901760
    %v5129 = vsub.f32 %v5127, %v5128
    %v5130 = vand.u32 %v5129, 4294901760
    %5131 = vmatpush2.msra.mxu0 %v5130
    %5132 = vmatprep.subr.mxu0 0.0
    %v5133 = vand.u32 %v485, 4294901760
    %v5134 = vsub.f32 %v485, %v5133
    %v5135 = vand.u32 %v5134, 4294901760
    %v5136 = vsub.f32 %v5134, %v5135
    %v5137 = vand.u32 %v5136, 4294901760
    %5138 = vmatpush2.msra.mxu0 %v5137
    %5139 = vmatprep.subr.mxu0 0.0
    %v5140 = vand.u32 %v484, 4294901760
    %v5141 = vsub.f32 %v484, %v5140
    %v5142 = vand.u32 %v5141, 4294901760
    %v5143 = vsub.f32 %v5141, %v5142
    %v5144 = vand.u32 %v5143, 4294901760
    %5145 = vmatpush2.msra.mxu0 %v5144
    %v5146 = vand.u32 %v231, 4294901760
    %5147 = vmatprep.mubr.f32.mxu0 %v5146
    %v5148 = vand.u32 %v230, 4294901760
    %5149 = vmatmul.mubr.f32.gmra.mxu0 %v5148
    %v5150 = vpop.f32.mrf.mxu0
    %v5151 = vadd.f32 %v4919, %v5150
    %v5152 = vpop.f32.mrf.mxu0
    %5153 = vdwg.mxu0
    %5154 = vmatprep.subr.mxu0 0.0
    %v5155 = vand.u32 %v483, 4294901760
    %v5156 = vsub.f32 %v483, %v5155
    %5157 = vmatpush1.msra.mxu0 %v5156
    %5158 = vmatprep.subr.mxu0 0.0
    %v5159 = vand.u32 %v482, 4294901760
    %v5160 = vsub.f32 %v482, %v5159
    %5161 = vmatpush1.msra.mxu0 %v5160
    %5162 = vmatprep.subr.mxu0 0.0
    %v5163 = vand.u32 %v481, 4294901760
    %v5164 = vsub.f32 %v481, %v5163
    %5165 = vmatpush1.msra.mxu0 %v5164
    %5166 = vmatprep.subr.mxu0 0.0
    %v5167 = vand.u32 %v480, 4294901760
    %v5168 = vsub.f32 %v480, %v5167
    %5169 = vmatpush1.msra.mxu0 %v5168
    %5170 = vmatprep.subr.mxu0 0.0
    %v5171 = vand.u32 %v479, 4294901760
    %v5172 = vsub.f32 %v479, %v5171
    %5173 = vmatpush1.msra.mxu0 %v5172
    %5174 = vmatprep.subr.mxu0 0.0
    %v5175 = vand.u32 %v478, 4294901760
    %v5176 = vsub.f32 %v478, %v5175
    %5177 = vmatpush1.msra.mxu0 %v5176
    %5178 = vmatprep.subr.mxu0 0.0
    %v5179 = vand.u32 %v477, 4294901760
    %v5180 = vsub.f32 %v477, %v5179
    %5181 = vmatpush1.msra.mxu0 %v5180
    %5182 = vmatprep.subr.mxu0 0.0
    %v5183 = vand.u32 %v476, 4294901760
    %v5184 = vsub.f32 %v476, %v5183
    %5185 = vmatpush1.msra.mxu0 %v5184
    %5186 = vmatprep.subr.mxu0 0.0
    %v5187 = vand.u32 %v475, 4294901760
    %v5188 = vsub.f32 %v475, %v5187
    %5189 = vmatpush1.msra.mxu0 %v5188
    %5190 = vmatprep.subr.mxu0 0.0
    %v5191 = vand.u32 %v474, 4294901760
    %v5192 = vsub.f32 %v474, %v5191
    %5193 = vmatpush1.msra.mxu0 %v5192
    %5194 = vmatprep.subr.mxu0 0.0
    %v5195 = vand.u32 %v473, 4294901760
    %v5196 = vsub.f32 %v473, %v5195
    %5197 = vmatpush1.msra.mxu0 %v5196
    %5198 = vmatprep.subr.mxu0 0.0
    %v5199 = vand.u32 %v472, 4294901760
    %v5200 = vsub.f32 %v472, %v5199
    %5201 = vmatpush1.msra.mxu0 %v5200
    %5202 = vmatprep.subr.mxu0 0.0
    %v5203 = vand.u32 %v471, 4294901760
    %v5204 = vsub.f32 %v471, %v5203
    %5205 = vmatpush1.msra.mxu0 %v5204
    %5206 = vmatprep.subr.mxu0 0.0
    %v5207 = vand.u32 %v470, 4294901760
    %v5208 = vsub.f32 %v470, %v5207
    %5209 = vmatpush1.msra.mxu0 %v5208
    %5210 = vmatprep.subr.mxu0 0.0
    %v5211 = vand.u32 %v469, 4294901760
    %v5212 = vsub.f32 %v469, %v5211
    %5213 = vmatpush1.msra.mxu0 %v5212
    %5214 = vmatprep.subr.mxu0 0.0
    %v5215 = vand.u32 %v468, 4294901760
    %v5216 = vsub.f32 %v468, %v5215
    %5217 = vmatpush1.msra.mxu0 %v5216
    %5218 = vmatprep.subr.mxu0 0.0
    %v5219 = vand.u32 %v499, 4294901760
    %v5220 = vsub.f32 %v499, %v5219
    %5221 = vmatpush2.msra.mxu0 %v5220
    %5222 = vmatprep.subr.mxu0 0.0
    %v5223 = vand.u32 %v498, 4294901760
    %v5224 = vsub.f32 %v498, %v5223
    %5225 = vmatpush2.msra.mxu0 %v5224
    %5226 = vmatprep.subr.mxu0 0.0
    %v5227 = vand.u32 %v497, 4294901760
    %v5228 = vsub.f32 %v497, %v5227
    %5229 = vmatpush2.msra.mxu0 %v5228
    %5230 = vmatprep.subr.mxu0 0.0
    %v5231 = vand.u32 %v496, 4294901760
    %v5232 = vsub.f32 %v496, %v5231
    %5233 = vmatpush2.msra.mxu0 %v5232
    %5234 = vmatprep.subr.mxu0 0.0
    %v5235 = vand.u32 %v495, 4294901760
    %v5236 = vsub.f32 %v495, %v5235
    %5237 = vmatpush2.msra.mxu0 %v5236
    %5238 = vmatprep.subr.mxu0 0.0
    %v5239 = vand.u32 %v494, 4294901760
    %v5240 = vsub.f32 %v494, %v5239
    %5241 = vmatpush2.msra.mxu0 %v5240
    %5242 = vmatprep.subr.mxu0 0.0
    %v5243 = vand.u32 %v493, 4294901760
    %v5244 = vsub.f32 %v493, %v5243
    %5245 = vmatpush2.msra.mxu0 %v5244
    %5246 = vmatprep.subr.mxu0 0.0
    %v5247 = vand.u32 %v492, 4294901760
    %v5248 = vsub.f32 %v492, %v5247
    %5249 = vmatpush2.msra.mxu0 %v5248
    %5250 = vmatprep.subr.mxu0 0.0
    %v5251 = vand.u32 %v491, 4294901760
    %v5252 = vsub.f32 %v491, %v5251
    %5253 = vmatpush2.msra.mxu0 %v5252
    %5254 = vmatprep.subr.mxu0 0.0
    %v5255 = vand.u32 %v490, 4294901760
    %v5256 = vsub.f32 %v490, %v5255
    %5257 = vmatpush2.msra.mxu0 %v5256
    %5258 = vmatprep.subr.mxu0 0.0
    %v5259 = vand.u32 %v489, 4294901760
    %v5260 = vsub.f32 %v489, %v5259
    %5261 = vmatpush2.msra.mxu0 %v5260
    %5262 = vmatprep.subr.mxu0 0.0
    %v5263 = vand.u32 %v488, 4294901760
    %v5264 = vsub.f32 %v488, %v5263
    %5265 = vmatpush2.msra.mxu0 %v5264
    %5266 = vmatprep.subr.mxu0 0.0
    %v5267 = vand.u32 %v487, 4294901760
    %v5268 = vsub.f32 %v487, %v5267
    %5269 = vmatpush2.msra.mxu0 %v5268
    %5270 = vmatprep.subr.mxu0 0.0
    %v5271 = vand.u32 %v486, 4294901760
    %v5272 = vsub.f32 %v486, %v5271
    %5273 = vmatpush2.msra.mxu0 %v5272
    %5274 = vmatprep.subr.mxu0 0.0
    %v5275 = vand.u32 %v485, 4294901760
    %v5276 = vsub.f32 %v485, %v5275
    %5277 = vmatpush2.msra.mxu0 %v5276
    %5278 = vmatprep.subr.mxu0 0.0
    %v5279 = vand.u32 %v484, 4294901760
    %v5280 = vsub.f32 %v484, %v5279
    %5281 = vmatpush2.msra.mxu0 %v5280
    %v5282 = vand.u32 %v231, 4294901760
    %v5283 = vsub.f32 %v231, %v5282
    %5284 = vmatprep.mubr.f32.mxu0 %v5283
    %v5285 = vand.u32 %v230, 4294901760
    %v5286 = vsub.f32 %v230, %v5285
    %5287 = vmatmul.mubr.f32.gmra.mxu0 %v5286
    %v5288 = vpop.f32.mrf.mxu0
    %v5289 = vadd.f32 %v5151, %v5288
    %v5290 = vpop.f32.mrf.mxu0
    %5291 = vdwg.mxu0
    %5292 = vmatprep.subr.mxu0 0.0
    %v5293 = vand.u32 %v483, 4294901760
    %5294 = vmatpush1.msra.mxu0 %v5293
    %5295 = vmatprep.subr.mxu0 0.0
    %v5296 = vand.u32 %v482, 4294901760
    %5297 = vmatpush1.msra.mxu0 %v5296
    %5298 = vmatprep.subr.mxu0 0.0
    %v5299 = vand.u32 %v481, 4294901760
    %5300 = vmatpush1.msra.mxu0 %v5299
    %5301 = vmatprep.subr.mxu0 0.0
    %v5302 = vand.u32 %v480, 4294901760
    %5303 = vmatpush1.msra.mxu0 %v5302
    %5304 = vmatprep.subr.mxu0 0.0
    %v5305 = vand.u32 %v479, 4294901760
    %5306 = vmatpush1.msra.mxu0 %v5305
    %5307 = vmatprep.subr.mxu0 0.0
    %v5308 = vand.u32 %v478, 4294901760
    %5309 = vmatpush1.msra.mxu0 %v5308
    %5310 = vmatprep.subr.mxu0 0.0
    %v5311 = vand.u32 %v477, 4294901760
    %5312 = vmatpush1.msra.mxu0 %v5311
    %5313 = vmatprep.subr.mxu0 0.0
    %v5314 = vand.u32 %v476, 4294901760
    %5315 = vmatpush1.msra.mxu0 %v5314
    %5316 = vmatprep.subr.mxu0 0.0
    %v5317 = vand.u32 %v475, 4294901760
    %5318 = vmatpush1.msra.mxu0 %v5317
    %5319 = vmatprep.subr.mxu0 0.0
    %v5320 = vand.u32 %v474, 4294901760
    %5321 = vmatpush1.msra.mxu0 %v5320
    %5322 = vmatprep.subr.mxu0 0.0
    %v5323 = vand.u32 %v473, 4294901760
    %5324 = vmatpush1.msra.mxu0 %v5323
    %5325 = vmatprep.subr.mxu0 0.0
    %v5326 = vand.u32 %v472, 4294901760
    %5327 = vmatpush1.msra.mxu0 %v5326
    %5328 = vmatprep.subr.mxu0 0.0
    %v5329 = vand.u32 %v471, 4294901760
    %5330 = vmatpush1.msra.mxu0 %v5329
    %5331 = vmatprep.subr.mxu0 0.0
    %v5332 = vand.u32 %v470, 4294901760
    %5333 = vmatpush1.msra.mxu0 %v5332
    %5334 = vmatprep.subr.mxu0 0.0
    %v5335 = vand.u32 %v469, 4294901760
    %5336 = vmatpush1.msra.mxu0 %v5335
    %5337 = vmatprep.subr.mxu0 0.0
    %v5338 = vand.u32 %v468, 4294901760
    %5339 = vmatpush1.msra.mxu0 %v5338
    %5340 = vmatprep.subr.mxu0 0.0
    %v5341 = vand.u32 %v499, 4294901760
    %5342 = vmatpush2.msra.mxu0 %v5341
    %5343 = vmatprep.subr.mxu0 0.0
    %v5344 = vand.u32 %v498, 4294901760
    %5345 = vmatpush2.msra.mxu0 %v5344
    %5346 = vmatprep.subr.mxu0 0.0
    %v5347 = vand.u32 %v497, 4294901760
    %5348 = vmatpush2.msra.mxu0 %v5347
    %5349 = vmatprep.subr.mxu0 0.0
    %v5350 = vand.u32 %v496, 4294901760
    %5351 = vmatpush2.msra.mxu0 %v5350
    %5352 = vmatprep.subr.mxu0 0.0
    %v5353 = vand.u32 %v495, 4294901760
    %5354 = vmatpush2.msra.mxu0 %v5353
    %5355 = vmatprep.subr.mxu0 0.0
    %v5356 = vand.u32 %v494, 4294901760
    %5357 = vmatpush2.msra.mxu0 %v5356
    %5358 = vmatprep.subr.mxu0 0.0
    %v5359 = vand.u32 %v493, 4294901760
    %5360 = vmatpush2.msra.mxu0 %v5359
    %5361 = vmatprep.subr.mxu0 0.0
    %v5362 = vand.u32 %v492, 4294901760
    %5363 = vmatpush2.msra.mxu0 %v5362
    %5364 = vmatprep.subr.mxu0 0.0
    %v5365 = vand.u32 %v491, 4294901760
    %5366 = vmatpush2.msra.mxu0 %v5365
    %5367 = vmatprep.subr.mxu0 0.0
    %v5368 = vand.u32 %v490, 4294901760
    %5369 = vmatpush2.msra.mxu0 %v5368
    %5370 = vmatprep.subr.mxu0 0.0
    %v5371 = vand.u32 %v489, 4294901760
    %5372 = vmatpush2.msra.mxu0 %v5371
    %5373 = vmatprep.subr.mxu0 0.0
    %v5374 = vand.u32 %v488, 4294901760
    %5375 = vmatpush2.msra.mxu0 %v5374
    %5376 = vmatprep.subr.mxu0 0.0
    %v5377 = vand.u32 %v487, 4294901760
    %5378 = vmatpush2.msra.mxu0 %v5377
    %5379 = vmatprep.subr.mxu0 0.0
    %v5380 = vand.u32 %v486, 4294901760
    %5381 = vmatpush2.msra.mxu0 %v5380
    %5382 = vmatprep.subr.mxu0 0.0
    %v5383 = vand.u32 %v485, 4294901760
    %5384 = vmatpush2.msra.mxu0 %v5383
    %5385 = vmatprep.subr.mxu0 0.0
    %v5386 = vand.u32 %v484, 4294901760
    %5387 = vmatpush2.msra.mxu0 %v5386
    %v5388 = vand.u32 %v231, 4294901760
    %v5389 = vsub.f32 %v231, %v5388
    %v5390 = vand.u32 %v5389, 4294901760
    %5391 = vmatprep.mubr.f32.mxu0 %v5390
    %v5392 = vand.u32 %v230, 4294901760
    %v5393 = vsub.f32 %v230, %v5392
    %v5394 = vand.u32 %v5393, 4294901760
    %5395 = vmatmul.mubr.f32.gmra.mxu0 %v5394
    %v5396 = vpop.f32.mrf.mxu0
    %v5397 = vadd.f32 %v5289, %v5396
    %v5398 = vpop.f32.mrf.mxu0
    %5399 = vdwg.mxu0
    %5400 = vmatprep.subr.mxu0 0.0
    %v5401 = vand.u32 %v483, 4294901760
    %v5402 = vsub.f32 %v483, %v5401
    %v5403 = vand.u32 %v5402, 4294901760
    %5404 = vmatpush1.msra.mxu0 %v5403
    %5405 = vmatprep.subr.mxu0 0.0
    %v5406 = vand.u32 %v482, 4294901760
    %v5407 = vsub.f32 %v482, %v5406
    %v5408 = vand.u32 %v5407, 4294901760
    %5409 = vmatpush1.msra.mxu0 %v5408
    %5410 = vmatprep.subr.mxu0 0.0
    %v5411 = vand.u32 %v481, 4294901760
    %v5412 = vsub.f32 %v481, %v5411
    %v5413 = vand.u32 %v5412, 4294901760
    %5414 = vmatpush1.msra.mxu0 %v5413
    %5415 = vmatprep.subr.mxu0 0.0
    %v5416 = vand.u32 %v480, 4294901760
    %v5417 = vsub.f32 %v480, %v5416
    %v5418 = vand.u32 %v5417, 4294901760
    %5419 = vmatpush1.msra.mxu0 %v5418
    %5420 = vmatprep.subr.mxu0 0.0
    %v5421 = vand.u32 %v479, 4294901760
    %v5422 = vsub.f32 %v479, %v5421
    %v5423 = vand.u32 %v5422, 4294901760
    %5424 = vmatpush1.msra.mxu0 %v5423
    %5425 = vmatprep.subr.mxu0 0.0
    %v5426 = vand.u32 %v478, 4294901760
    %v5427 = vsub.f32 %v478, %v5426
    %v5428 = vand.u32 %v5427, 4294901760
    %5429 = vmatpush1.msra.mxu0 %v5428
    %5430 = vmatprep.subr.mxu0 0.0
    %v5431 = vand.u32 %v477, 4294901760
    %v5432 = vsub.f32 %v477, %v5431
    %v5433 = vand.u32 %v5432, 4294901760
    %5434 = vmatpush1.msra.mxu0 %v5433
    %5435 = vmatprep.subr.mxu0 0.0
    %v5436 = vand.u32 %v476, 4294901760
    %v5437 = vsub.f32 %v476, %v5436
    %v5438 = vand.u32 %v5437, 4294901760
    %5439 = vmatpush1.msra.mxu0 %v5438
    %5440 = vmatprep.subr.mxu0 0.0
    %v5441 = vand.u32 %v475, 4294901760
    %v5442 = vsub.f32 %v475, %v5441
    %v5443 = vand.u32 %v5442, 4294901760
    %5444 = vmatpush1.msra.mxu0 %v5443
    %5445 = vmatprep.subr.mxu0 0.0
    %v5446 = vand.u32 %v474, 4294901760
    %v5447 = vsub.f32 %v474, %v5446
    %v5448 = vand.u32 %v5447, 4294901760
    %5449 = vmatpush1.msra.mxu0 %v5448
    %5450 = vmatprep.subr.mxu0 0.0
    %v5451 = vand.u32 %v473, 4294901760
    %v5452 = vsub.f32 %v473, %v5451
    %v5453 = vand.u32 %v5452, 4294901760
    %5454 = vmatpush1.msra.mxu0 %v5453
    %5455 = vmatprep.subr.mxu0 0.0
    %v5456 = vand.u32 %v472, 4294901760
    %v5457 = vsub.f32 %v472, %v5456
    %v5458 = vand.u32 %v5457, 4294901760
    %5459 = vmatpush1.msra.mxu0 %v5458
    %5460 = vmatprep.subr.mxu0 0.0
    %v5461 = vand.u32 %v471, 4294901760
    %v5462 = vsub.f32 %v471, %v5461
    %v5463 = vand.u32 %v5462, 4294901760
    %5464 = vmatpush1.msra.mxu0 %v5463
    %5465 = vmatprep.subr.mxu0 0.0
    %v5466 = vand.u32 %v470, 4294901760
    %v5467 = vsub.f32 %v470, %v5466
    %v5468 = vand.u32 %v5467, 4294901760
    %5469 = vmatpush1.msra.mxu0 %v5468
    %5470 = vmatprep.subr.mxu0 0.0
    %v5471 = vand.u32 %v469, 4294901760
    %v5472 = vsub.f32 %v469, %v5471
    %v5473 = vand.u32 %v5472, 4294901760
    %5474 = vmatpush1.msra.mxu0 %v5473
    %5475 = vmatprep.subr.mxu0 0.0
    %v5476 = vand.u32 %v468, 4294901760
    %v5477 = vsub.f32 %v468, %v5476
    %v5478 = vand.u32 %v5477, 4294901760
    %5479 = vmatpush1.msra.mxu0 %v5478
    %5480 = vmatprep.subr.mxu0 0.0
    %v5481 = vand.u32 %v499, 4294901760
    %v5482 = vsub.f32 %v499, %v5481
    %v5483 = vand.u32 %v5482, 4294901760
    %5484 = vmatpush2.msra.mxu0 %v5483
    %5485 = vmatprep.subr.mxu0 0.0
    %v5486 = vand.u32 %v498, 4294901760
    %v5487 = vsub.f32 %v498, %v5486
    %v5488 = vand.u32 %v5487, 4294901760
    %5489 = vmatpush2.msra.mxu0 %v5488
    %5490 = vmatprep.subr.mxu0 0.0
    %v5491 = vand.u32 %v497, 4294901760
    %v5492 = vsub.f32 %v497, %v5491
    %v5493 = vand.u32 %v5492, 4294901760
    %5494 = vmatpush2.msra.mxu0 %v5493
    %5495 = vmatprep.subr.mxu0 0.0
    %v5496 = vand.u32 %v496, 4294901760
    %v5497 = vsub.f32 %v496, %v5496
    %v5498 = vand.u32 %v5497, 4294901760
    %5499 = vmatpush2.msra.mxu0 %v5498
    %5500 = vmatprep.subr.mxu0 0.0
    %v5501 = vand.u32 %v495, 4294901760
    %v5502 = vsub.f32 %v495, %v5501
    %v5503 = vand.u32 %v5502, 4294901760
    %5504 = vmatpush2.msra.mxu0 %v5503
    %5505 = vmatprep.subr.mxu0 0.0
    %v5506 = vand.u32 %v494, 4294901760
    %v5507 = vsub.f32 %v494, %v5506
    %v5508 = vand.u32 %v5507, 4294901760
    %5509 = vmatpush2.msra.mxu0 %v5508
    %5510 = vmatprep.subr.mxu0 0.0
    %v5511 = vand.u32 %v493, 4294901760
    %v5512 = vsub.f32 %v493, %v5511
    %v5513 = vand.u32 %v5512, 4294901760
    %5514 = vmatpush2.msra.mxu0 %v5513
    %5515 = vmatprep.subr.mxu0 0.0
    %v5516 = vand.u32 %v492, 4294901760
    %v5517 = vsub.f32 %v492, %v5516
    %v5518 = vand.u32 %v5517, 4294901760
    %5519 = vmatpush2.msra.mxu0 %v5518
    %5520 = vmatprep.subr.mxu0 0.0
    %v5521 = vand.u32 %v491, 4294901760
    %v5522 = vsub.f32 %v491, %v5521
    %v5523 = vand.u32 %v5522, 4294901760
    %5524 = vmatpush2.msra.mxu0 %v5523
    %5525 = vmatprep.subr.mxu0 0.0
    %v5526 = vand.u32 %v490, 4294901760
    %v5527 = vsub.f32 %v490, %v5526
    %v5528 = vand.u32 %v5527, 4294901760
    %5529 = vmatpush2.msra.mxu0 %v5528
    %5530 = vmatprep.subr.mxu0 0.0
    %v5531 = vand.u32 %v489, 4294901760
    %v5532 = vsub.f32 %v489, %v5531
    %v5533 = vand.u32 %v5532, 4294901760
    %5534 = vmatpush2.msra.mxu0 %v5533
    %5535 = vmatprep.subr.mxu0 0.0
    %v5536 = vand.u32 %v488, 4294901760
    %v5537 = vsub.f32 %v488, %v5536
    %v5538 = vand.u32 %v5537, 4294901760
    %5539 = vmatpush2.msra.mxu0 %v5538
    %5540 = vmatprep.subr.mxu0 0.0
    %v5541 = vand.u32 %v487, 4294901760
    %v5542 = vsub.f32 %v487, %v5541
    %v5543 = vand.u32 %v5542, 4294901760
    %5544 = vmatpush2.msra.mxu0 %v5543
    %5545 = vmatprep.subr.mxu0 0.0
    %v5546 = vand.u32 %v486, 4294901760
    %v5547 = vsub.f32 %v486, %v5546
    %v5548 = vand.u32 %v5547, 4294901760
    %5549 = vmatpush2.msra.mxu0 %v5548
    %5550 = vmatprep.subr.mxu0 0.0
    %v5551 = vand.u32 %v485, 4294901760
    %v5552 = vsub.f32 %v485, %v5551
    %v5553 = vand.u32 %v5552, 4294901760
    %5554 = vmatpush2.msra.mxu0 %v5553
    %5555 = vmatprep.subr.mxu0 0.0
    %v5556 = vand.u32 %v484, 4294901760
    %v5557 = vsub.f32 %v484, %v5556
    %v5558 = vand.u32 %v5557, 4294901760
    %5559 = vmatpush2.msra.mxu0 %v5558
    %v5560 = vand.u32 %v231, 4294901760
    %5561 = vmatprep.mubr.f32.mxu0 %v5560
    %v5562 = vand.u32 %v230, 4294901760
    %5563 = vmatmul.mubr.f32.gmra.mxu0 %v5562
    %v5564 = vpop.f32.mrf.mxu0
    %v5565 = vadd.f32 %v5397, %v5564
    %v5566 = vpop.f32.mrf.mxu0
    %5567 = vdwg.mxu0
    %5568 = vmatprep.subr.mxu0 0.0
    %v5569 = vand.u32 %v483, 4294901760
    %5570 = vmatpush1.msra.mxu0 %v5569
    %5571 = vmatprep.subr.mxu0 0.0
    %v5572 = vand.u32 %v482, 4294901760
    %5573 = vmatpush1.msra.mxu0 %v5572
    %5574 = vmatprep.subr.mxu0 0.0
    %v5575 = vand.u32 %v481, 4294901760
    %5576 = vmatpush1.msra.mxu0 %v5575
    %5577 = vmatprep.subr.mxu0 0.0
    %v5578 = vand.u32 %v480, 4294901760
    %5579 = vmatpush1.msra.mxu0 %v5578
    %5580 = vmatprep.subr.mxu0 0.0
    %v5581 = vand.u32 %v479, 4294901760
    %5582 = vmatpush1.msra.mxu0 %v5581
    %5583 = vmatprep.subr.mxu0 0.0
    %v5584 = vand.u32 %v478, 4294901760
    %5585 = vmatpush1.msra.mxu0 %v5584
    %5586 = vmatprep.subr.mxu0 0.0
    %v5587 = vand.u32 %v477, 4294901760
    %5588 = vmatpush1.msra.mxu0 %v5587
    %5589 = vmatprep.subr.mxu0 0.0
    %v5590 = vand.u32 %v476, 4294901760
    %5591 = vmatpush1.msra.mxu0 %v5590
    %5592 = vmatprep.subr.mxu0 0.0
    %v5593 = vand.u32 %v475, 4294901760
    %5594 = vmatpush1.msra.mxu0 %v5593
    %5595 = vmatprep.subr.mxu0 0.0
    %v5596 = vand.u32 %v474, 4294901760
    %5597 = vmatpush1.msra.mxu0 %v5596
    %5598 = vmatprep.subr.mxu0 0.0
    %v5599 = vand.u32 %v473, 4294901760
    %5600 = vmatpush1.msra.mxu0 %v5599
    %5601 = vmatprep.subr.mxu0 0.0
    %v5602 = vand.u32 %v472, 4294901760
    %5603 = vmatpush1.msra.mxu0 %v5602
    %5604 = vmatprep.subr.mxu0 0.0
    %v5605 = vand.u32 %v471, 4294901760
    %5606 = vmatpush1.msra.mxu0 %v5605
    %5607 = vmatprep.subr.mxu0 0.0
    %v5608 = vand.u32 %v470, 4294901760
    %5609 = vmatpush1.msra.mxu0 %v5608
    %5610 = vmatprep.subr.mxu0 0.0
    %v5611 = vand.u32 %v469, 4294901760
    %5612 = vmatpush1.msra.mxu0 %v5611
    %5613 = vmatprep.subr.mxu0 0.0
    %v5614 = vand.u32 %v468, 4294901760
    %5615 = vmatpush1.msra.mxu0 %v5614
    %5616 = vmatprep.subr.mxu0 0.0
    %v5617 = vand.u32 %v499, 4294901760
    %5618 = vmatpush2.msra.mxu0 %v5617
    %5619 = vmatprep.subr.mxu0 0.0
    %v5620 = vand.u32 %v498, 4294901760
    %5621 = vmatpush2.msra.mxu0 %v5620
    %5622 = vmatprep.subr.mxu0 0.0
    %v5623 = vand.u32 %v497, 4294901760
    %5624 = vmatpush2.msra.mxu0 %v5623
    %5625 = vmatprep.subr.mxu0 0.0
    %v5626 = vand.u32 %v496, 4294901760
    %5627 = vmatpush2.msra.mxu0 %v5626
    %5628 = vmatprep.subr.mxu0 0.0
    %v5629 = vand.u32 %v495, 4294901760
    %5630 = vmatpush2.msra.mxu0 %v5629
    %5631 = vmatprep.subr.mxu0 0.0
    %v5632 = vand.u32 %v494, 4294901760
    %5633 = vmatpush2.msra.mxu0 %v5632
    %5634 = vmatprep.subr.mxu0 0.0
    %v5635 = vand.u32 %v493, 4294901760
    %5636 = vmatpush2.msra.mxu0 %v5635
    %5637 = vmatprep.subr.mxu0 0.0
    %v5638 = vand.u32 %v492, 4294901760
    %5639 = vmatpush2.msra.mxu0 %v5638
    %5640 = vmatprep.subr.mxu0 0.0
    %v5641 = vand.u32 %v491, 4294901760
    %5642 = vmatpush2.msra.mxu0 %v5641
    %5643 = vmatprep.subr.mxu0 0.0
    %v5644 = vand.u32 %v490, 4294901760
    %5645 = vmatpush2.msra.mxu0 %v5644
    %5646 = vmatprep.subr.mxu0 0.0
    %v5647 = vand.u32 %v489, 4294901760
    %5648 = vmatpush2.msra.mxu0 %v5647
    %5649 = vmatprep.subr.mxu0 0.0
    %v5650 = vand.u32 %v488, 4294901760
    %5651 = vmatpush2.msra.mxu0 %v5650
    %5652 = vmatprep.subr.mxu0 0.0
    %v5653 = vand.u32 %v487, 4294901760
    %5654 = vmatpush2.msra.mxu0 %v5653
    %5655 = vmatprep.subr.mxu0 0.0
    %v5656 = vand.u32 %v486, 4294901760
    %5657 = vmatpush2.msra.mxu0 %v5656
    %5658 = vmatprep.subr.mxu0 0.0
    %v5659 = vand.u32 %v485, 4294901760
    %5660 = vmatpush2.msra.mxu0 %v5659
    %5661 = vmatprep.subr.mxu0 0.0
    %v5662 = vand.u32 %v484, 4294901760
    %5663 = vmatpush2.msra.mxu0 %v5662
    %v5664 = vand.u32 %v231, 4294901760
    %5665 = vmatprep.mubr.f32.mxu0 %v5664
    %v5666 = vand.u32 %v230, 4294901760
    %5667 = vmatmul.mubr.f32.gmra.mxu0 %v5666
    %v5668 = vpop.f32.mrf.mxu0
    %v5669 = vadd.f32 %v5565, %v5668
    %v5670 = vpop.f32.mrf.mxu0
    %5671 = vdwg.mxu0
    %vm5672 = vcmp.gt.f32.partialorder %v3945, 0.0
    %v5673 = vsel %vm5672, %v3945, 1.0
    %v5674 = vrcp.pop %v5673
    %v5675 = vmul.f32 %v5673, %v5674
    %v5676 = vsub.f32 2.0, %v5675
    %v5677 = vmul.f32 %v5674, %v5676
    %v5678 = vmul.f32 %v5673, %v5677
    %v5679 = vsub.f32 2.0, %v5678
    %v5680 = vmul.f32 %v5677, %v5679
    %v5681 = vmul.f32 %v2221, %v5680
    %v5682 = vsel %vm5672, %v5681, 0.0
    %v5683 = vrcp.pop %v5669
    %v5684 = vmul.f32 %v5669, %v5683
    %v5685 = vsub.f32 2.0, %v5684
    %v5686 = vmul.f32 %v5683, %v5685
    %v5687 = vmul.f32 %v5669, %v5686
    %v5688 = vsub.f32 2.0, %v5687
    %v5689 = vmul.f32 %v5686, %v5688
    %v5690 = vsub.f32 2.0, %v5682
    %v5691 = vmul.f32 %v3945, %v5689
    %v5692 = vsub.f32 %v5690, %v5691
    %5693 = vst [vmem:[#allocation7] sm:$0xff] %v5692
    // Predicated region
    $region18: #{tpu_custom_call.1} parent=1 // pred_check
      _
    $region19: #{tpu_custom_call.1} parent=1 // pred_check_branch
      %5695 = sbr.rel (0) target = $region21
    $region20: #{tpu_custom_call.1} parent=1 // pred_region
      %s5697 = ssub.s32 128, 128
      %5698 = vsyncadd [#allocation4], %s5697
      %s5700 = sshll.u32 [#allocation7], 4
      %s5701 = int_to_ptr.vmem [resolvable:$true] %s5700
      %5703 = dma.vmem_to_hbm [thread:$0]  %s5701, 128, %s2, [#allocation4]
    $region21: #{tpu_custom_call.1} parent=1 // pred_fallthru
      _
    // Predicated region
    $region22: #{tpu_custom_call.1} parent=1 // pred_check
      _
    $region23: #{tpu_custom_call.1} parent=1 // pred_check_branch
      %5705 = sbr.rel (0) target = $region25
    $region24: #{tpu_custom_call.1} parent=1 // pred_region
      %5706 = dma.done [#allocation4], 128
    $region25: #{tpu_custom_call.1} parent=1 // pred_fallthru
      _
    %5707 = vsyncpa [#allocation3], 1
    %5708 = vsyncpa [#allocation6], 1
    %5709 = vsyncpa [#allocation4], 1

</llo_original>
